<compile_context>
chip_gen: v5e
topology: v5e:2x2
jax: 0.10.0
libtpu: 0.0.40
codegen_flags: <defaults>
</compile_context>

<pallas_src>
import functools
import math

import numpy as np
import jax
import jax.numpy as jnp
from jax.experimental import pallas as pl
from jax.experimental.pallas import tpu as pltpu


# ----------------------------------------------------------------------------
# plain-JAX glue
# ----------------------------------------------------------------------------
def im2col_tokens(buffer, kernel_field):
    """F.unfold(rearrange(buffer,'b c a h w -> (b a) c h w'), k, pad=k//2),
    returned token-major as (b*a, h*w, c*k*k)."""
    b, c, a, h, w = buffer.shape
    x = buffer.transpose(0, 2, 1, 3, 4).reshape(b * a, c, h, w)
    pad = kernel_field // 2
    xp = jnp.pad(x, ((0, 0), (0, 0), (pad, pad), (pad, pad)))
    cols = []
    for kh in range(kernel_field):
        for kw in range(kernel_field):
            cols.append(xp[:, :, kh:kh + h, kw:kw + w])
    cols = jnp.stack(cols, axis=2)                              # (b*a, c, k*k, h, w)
    cols = cols.reshape(b * a, c * kernel_field ** 2, h * w)
    return cols.transpose(0, 2, 1)                              # (b*a, h*w, c*k*k)


def gen_mask(h, w, k):
    """Additive attention mask (h*w, h*w): 0 inside a k x k window, -inf outside.
    Used only by the pure-JAX reference."""
    kl = k // 2
    kr = k - kl
    ri = jnp.arange(h)
    ci = jnp.arange(w)
    row_ok = (ri[None, :] >= ri[:, None] - kl) & (ri[None, :] < ri[:, None] + kr)
    col_ok = (ci[None, :] >= ci[:, None] - kl) & (ci[None, :] < ci[:, None] + kr)
    allowed = row_ok[:, None, :, None] & col_ok[None, :, None, :]
    allowed = allowed.reshape(h * w, h * w)
    return jnp.where(allowed, 0.0, -jnp.inf).astype(jnp.float32)


# ----------------------------------------------------------------------------
# fused Pallas kernel: one program == one SAI view (all heads, all stages)
# ----------------------------------------------------------------------------
def _spa_trans_kernel(num_heads, kernel_search,
                      x_ref, pe_ref, ic_ref, jc_ref, ir_ref, jr_ref,
                      w1_ref, w2_ref, ng_ref, nb_ref,
                      wq_ref, wk_ref, wv_ref, wo_ref,
                      fg_ref, fb_ref, fw1_ref, fw2_ref, wl_ref,
                      o_ref):
    hd = wq_ref.shape[2]
    scale = 1.0 / math.sqrt(hd)

    def mlp(x):
        hid = jnp.maximum(
            jnp.dot(x, w1_ref[...], preferred_element_type=jnp.float32), 0.0)
        return jnp.dot(hid, w2_ref[...], preferred_element_type=jnp.float32)

    def layernorm(x, g, b):
        mu = jnp.mean(x, axis=-1, keepdims=True)
        var = jnp.mean((x - mu) ** 2, axis=-1, keepdims=True)
        return (x - mu) * jax.lax.rsqrt(var + 1e-5) * g + b

    # token embedding + positional encoding + pre-attention LayerNorm
    tok = mlp(x_ref[0])                                     # (L, E)
    pe = mlp(pe_ref[0])                                     # (L, E)
    xn = layernorm(tok + pe, ng_ref[...], nb_ref[...])      # (L, E)

    # local-window additive attention bias, built from O(L) index vectors.
    # Finite -1e30 (not -inf) so no NaN risk even in pathological rows.
    kl = kernel_search // 2
    kr = kernel_search - kl
    ic, jc = ic_ref[...], jc_ref[...]                       # (L, 1) query i / j
    ir, jr = ir_ref[...], jr_ref[...]                       # (1, L) key   i / j
    allowed = ((ir >= ic - kl) & (ir < ic + kr)
               & (jr >= jc - kl) & (jr < jc + kr))          # (L, L)
    bias = jnp.where(allowed, 0.0, -1e30)

    # multi-head attention; heads batched in this program, out-projection and
    # residual folded into the accumulator (Q/K from xn, V from pre-norm tok).
    acc = tok
    for hh in range(num_heads):
        qh = jnp.dot(xn, wq_ref[hh], preferred_element_type=jnp.float32)   # (L, hd)
        kh = jnp.dot(xn, wk_ref[hh], preferred_element_type=jnp.float32)
        vh = jnp.dot(tok, wv_ref[hh], preferred_element_type=jnp.float32)
        s = jax.lax.dot_general(qh, kh, (((1,), (1,)), ((), ())),
                                preferred_element_type=jnp.float32) * scale + bias
        s = s - jnp.max(s, axis=-1, keepdims=True)
        p = jnp.exp(s)
        p = p * pl.reciprocal(jnp.sum(p, axis=-1, keepdims=True), approx=True)
        oh = jnp.dot(p, vh, preferred_element_type=jnp.float32)            # (L, hd)
        acc = acc + jnp.dot(oh, wo_ref[hh], preferred_element_type=jnp.float32)

    # two feed-forward blocks (shared weights) with residuals, then the final
    # 1x1x1 conv (pointwise linear spa_dim -> channels), all in VMEM.
    x = acc
    fg, fb = fg_ref[...], fb_ref[...]
    fw1, fw2 = fw1_ref[...], fw2_ref[...]
    for _ in range(2):
        x2 = layernorm(x, fg, fb)
        hid = jnp.maximum(
            jnp.dot(x2, fw1, preferred_element_type=jnp.float32), 0.0)
        x = jnp.dot(hid, fw2, preferred_element_type=jnp.float32) + x
    o_ref[0] = jnp.dot(x, wl_ref[...], preferred_element_type=jnp.float32)


# ----------------------------------------------------------------------------
# SpaTrans module (parameters + forward)
# ----------------------------------------------------------------------------
class SpaTransPallas:
    def __init__(self, channels, angRes, num_heads, h, w, key):
        self.channels = channels
        self.angRes = angRes
        self.num_heads = num_heads
        self.h, self.w = h, w
        self.kernel_field = 3
        self.kernel_search = 5
        self.spa_dim = channels * 2
        E = self.spa_dim
        kin = channels * self.kernel_field ** 2
        ks = jax.random.split(key, 9)
        s = 0.1
        # MLP (token embedding), bias-free
        self.mlp_w1 = jax.random.normal(ks[0], (kin, E), jnp.float32) * s
        self.mlp_w2 = jax.random.normal(ks[1], (E, E), jnp.float32) * s
        # LayerNorm (pre-attention)
        self.norm_g = jnp.ones((E,), jnp.float32)
        self.norm_b = jnp.zeros((E,), jnp.float32)
        # MultiheadAttention (bias=False): in_proj (3E, E), out_proj (E, E)
        in_proj = jax.random.normal(ks[2], (3 * E, E), jnp.float32) * s
        self.wq = in_proj[:E].T
        self.wk = in_proj[E:2 * E].T
        self.wv = in_proj[2 * E:].T
        self.wo = (jax.random.normal(ks[3], (E, E), jnp.float32) * s).T
        # Feed-forward (LN -> E->2E -> ReLU -> 2E->E), no biases
        self.ff_g = jnp.ones((E,), jnp.float32)
        self.ff_b = jnp.zeros((E,), jnp.float32)
        self.ff_w1 = (jax.random.normal(ks[4], (2 * E, E), jnp.float32) * s).T   # (E, 2E)
        self.ff_w2 = (jax.random.normal(ks[5], (E, 2 * E), jnp.float32) * s).T   # (2E, E)
        # Conv3d 1x1x1 (spa_dim -> channels), no bias  ==> pointwise linear
        self.lin_w = (jax.random.normal(ks[6], (channels, E), jnp.float32) * s).T
        # learned spatial positional encoding buffer (batch dim = 1)
        self.spa_position = jax.random.normal(
            ks[7], (1, channels, angRes ** 2, h, w), jnp.float32) * s

    # --- Pallas-backed forward ----------------------------------------------
    def forward(self, buffer):
        b, c, a, h, w = buffer.shape
        L, E, H = h * w, self.spa_dim, self.num_heads
        hd = E // H
        ch = self.channels

        patches = im2col_tokens(buffer, self.kernel_field)                # (b*a, L, c*9)
        pe_patches = im2col_tokens(self.spa_position, self.kernel_field)  # (a, L, c*9)
        K = patches.shape[-1]

        # per-head projection weight slabs (host-side layout only) so the
        # kernel never lane-slices vector values at sub-128 offsets.
        wq_h = self.wq.reshape(E, H, hd).transpose(1, 0, 2)   # (H, E, hd)
        wk_h = self.wk.reshape(E, H, hd).transpose(1, 0, 2)
        wv_h = self.wv.reshape(E, H, hd).transpose(1, 0, 2)
        wo_h = self.wo.reshape(H, hd, E)                      # (H, hd, E)

        # O(L) spatial index vectors; the (L, L) window mask is built in-kernel.
        li = (jnp.arange(L) // w).astype(jnp.float32)
        lj = (jnp.arange(L) % w).astype(jnp.float32)
        ic, jc = li.reshape(L, 1), lj.reshape(L, 1)
        ir, jr = li.reshape(1, L), lj.reshape(1, L)

        full2 = lambda n: (0, 0)
        full3 = lambda n: (0, 0, 0)

        out = pl.pallas_call(
            functools.partial(_spa_trans_kernel, H, self.kernel_search),
            out_shape=jax.ShapeDtypeStruct((b * a, L, ch), jnp.float32),
            grid=(b * a,),
            in_specs=[
                pl.BlockSpec((1, L, K), lambda n: (n, 0, 0)),
                pl.BlockSpec((1, L, K), lambda n, a=a: (n % a, 0, 0)),  # PE broadcast
                pl.BlockSpec((L, 1), full2), pl.BlockSpec((L, 1), full2),
                pl.BlockSpec((1, L), full2), pl.BlockSpec((1, L), full2),
                pl.BlockSpec((K, E), full2), pl.BlockSpec((E, E), full2),
                pl.BlockSpec((1, E), full2), pl.BlockSpec((1, E), full2),
                pl.BlockSpec((H, E, hd), full3), pl.BlockSpec((H, E, hd), full3),
                pl.BlockSpec((H, E, hd), full3), pl.BlockSpec((H, hd, E), full3),
                pl.BlockSpec((1, E), full2), pl.BlockSpec((1, E), full2),
                pl.BlockSpec((E, 2 * E), full2), pl.BlockSpec((2 * E, E), full2),
                pl.BlockSpec((E, ch), full2),
            ],
            out_specs=pl.BlockSpec((1, L, ch), lambda n: (n, 0, 0)),
            compiler_params=pltpu.CompilerParams(
                dimension_semantics=("parallel",)),
        )(patches, pe_patches, ic, jc, ir, jr,
          self.mlp_w1, self.mlp_w2,
          self.norm_g.reshape(1, E), self.norm_b.reshape(1, E),
          wq_h, wk_h, wv_h, wo_h,
          self.ff_g.reshape(1, E), self.ff_b.reshape(1, E),
          self.ff_w1, self.ff_w2, self.lin_w)

        # Token2SAI rearrange: (b*a, h*w, c) -> (b, c, a, h, w)
        return out.reshape(b, a, h, w, ch).transpose(0, 4, 1, 2, 3)

    # --- pure-JAX reference (verification) ----------------------------------
    def reference(self, buffer):
        hp = jax.lax.Precision.HIGHEST
        b, c, a, h, w = buffer.shape
        L, N, E = h * w, b * a, self.spa_dim
        mask = gen_mask(h, w, self.kernel_search)

        def mlp(x):
            hid = jnp.maximum(jnp.dot(x, self.mlp_w1, precision=hp), 0.0)
            return jnp.dot(hid, self.mlp_w2, precision=hp)

        def ln(x, g, bb):
            mu = jnp.mean(x, -1, keepdims=True)
            var = jnp.mean((x - mu) ** 2, -1, keepdims=True)
            return (x - mu) / jnp.sqrt(var + 1e-5) * g + bb

        spa_token = mlp(im2col_tokens(buffer, self.kernel_field))            # (N, L, E)
        spa_pe = mlp(im2col_tokens(self.spa_position, self.kernel_field))    # (a, L, E)
        spa_pe = jnp.tile(spa_pe, (b, 1, 1))                                 # (N, L, E)
        xn = ln(spa_token + spa_pe, self.norm_g, self.norm_b)

        hd = E // self.num_heads

        def split(x):                                   # (N, L, E) -> (N, H, L, hd)
            return x.reshape(N, L, self.num_heads, hd).transpose(0, 2, 1, 3)

        q = split(jnp.dot(xn, self.wq, precision=hp))
        k = split(jnp.dot(xn, self.wk, precision=hp))
        v = split(jnp.dot(spa_token, self.wv, precision=hp))
        s = jnp.einsum('nhld,nhmd->nhlm', q, k, precision=hp) / math.sqrt(hd) + mask
        p = jax.nn.softmax(s, axis=-1)
        o = jnp.einsum('nhlm,nhmd->nhld', p, v, precision=hp)
        o = o.transpose(0, 2, 1, 3).reshape(N, L, E)
        spa_token = jnp.dot(o, self.wo, precision=hp) + spa_token

        def ffn(x):
            x2 = ln(x, self.ff_g, self.ff_b)
            hid = jnp.maximum(jnp.dot(x2, self.ff_w1, precision=hp), 0.0)
            return jnp.dot(hid, self.ff_w2, precision=hp) + x

        spa_token = ffn(spa_token)
        spa_token = ffn(spa_token)
        out = jnp.dot(spa_token, self.lin_w, precision=hp)                   # (N, L, c)
        return out.reshape(b, a, h, w, c).transpose(0, 4, 1, 2, 3)


if __name__ == "__main__":
    key = jax.random.PRNGKey(0)
    kp, kx = jax.random.split(key)
    channels, angRes, num_heads = 4, 2, 2
    h = w = 8
    model = SpaTransPallas(channels, angRes, num_heads, h, w, kp)
    # batch = 1 matches the original module's use of the batch-1 spa_position
    # buffer (the Pallas path also handles b > 1 via the n % a PE index_map).
    buffer = jax.random.normal(kx, (1, channels, angRes ** 2, h, w), jnp.float32)

    fwd = jax.jit(model.forward)
    out = jax.block_until_ready(fwd(buffer))
    ref = jax.block_until_ready(model.reference(buffer))
    assert out.shape == buffer.shape
    np.testing.assert_allclose(np.asarray(out), np.asarray(ref), rtol=1e-2, atol=1e-2)
    print("KERNEL_OK")
</pallas_src>

<mosaic_0001>
module attributes {stable_mosaic.version = 11 : i64} {
  func.func @_spa_trans_kernel(%arg0: i32, %arg1: memref<1x64x36xf32, #tpu.memory_space<vmem>>, %arg2: memref<1x64x36xf32, #tpu.memory_space<vmem>>, %arg3: memref<64x1xf32, #tpu.memory_space<vmem>>, %arg4: memref<64x1xf32, #tpu.memory_space<vmem>>, %arg5: memref<1x64xf32, #tpu.memory_space<vmem>>, %arg6: memref<1x64xf32, #tpu.memory_space<vmem>>, %arg7: memref<36x8xf32, #tpu.memory_space<vmem>>, %arg8: memref<8x8xf32, #tpu.memory_space<vmem>>, %arg9: memref<1x8xf32, #tpu.memory_space<vmem>>, %arg10: memref<1x8xf32, #tpu.memory_space<vmem>>, %arg11: memref<2x8x4xf32, #tpu.memory_space<vmem>>, %arg12: memref<2x8x4xf32, #tpu.memory_space<vmem>>, %arg13: memref<2x8x4xf32, #tpu.memory_space<vmem>>, %arg14: memref<2x4x8xf32, #tpu.memory_space<vmem>>, %arg15: memref<1x8xf32, #tpu.memory_space<vmem>>, %arg16: memref<1x8xf32, #tpu.memory_space<vmem>>, %arg17: memref<8x16xf32, #tpu.memory_space<vmem>>, %arg18: memref<16x8xf32, #tpu.memory_space<vmem>>, %arg19: memref<8x4xf32, #tpu.memory_space<vmem>>, %arg20: memref<1x64x4xf32, #tpu.memory_space<vmem>>) attributes {dimension_semantics = [#tpu.dimension_semantics<parallel>], iteration_bounds = array<i64: 4>, scalar_prefetch = 0 : i64, scratch_operands = 0 : i64, tpu.core_type = #tpu.core_type<tc>, window_params = [{transform_indices = @transform_0, window_bounds = array<i64: 1, 64, 36>}, {transform_indices = @transform_1, window_bounds = array<i64: 1, 64, 36>}, {pipeline_mode = #tpu.pipeline_mode<synchronous>, transform_indices = @transform_2, window_bounds = array<i64: 64, 1>}, {pipeline_mode = #tpu.pipeline_mode<synchronous>, transform_indices = @transform_3, window_bounds = array<i64: 64, 1>}, {pipeline_mode = #tpu.pipeline_mode<synchronous>, transform_indices = @transform_4, window_bounds = array<i64: 1, 64>}, {pipeline_mode = #tpu.pipeline_mode<synchronous>, transform_indices = @transform_5, window_bounds = array<i64: 1, 64>}, {pipeline_mode = #tpu.pipeline_mode<synchronous>, transform_indices = @transform_6, window_bounds = array<i64: 36, 8>}, {pipeline_mode = #tpu.pipeline_mode<synchronous>, transform_indices = @transform_7, window_bounds = array<i64: 8, 8>}, {pipeline_mode = #tpu.pipeline_mode<synchronous>, transform_indices = @transform_8, window_bounds = array<i64: 1, 8>}, {pipeline_mode = #tpu.pipeline_mode<synchronous>, transform_indices = @transform_9, window_bounds = array<i64: 1, 8>}, {pipeline_mode = #tpu.pipeline_mode<synchronous>, transform_indices = @transform_10, window_bounds = array<i64: 2, 8, 4>}, {pipeline_mode = #tpu.pipeline_mode<synchronous>, transform_indices = @transform_11, window_bounds = array<i64: 2, 8, 4>}, {pipeline_mode = #tpu.pipeline_mode<synchronous>, transform_indices = @transform_12, window_bounds = array<i64: 2, 8, 4>}, {pipeline_mode = #tpu.pipeline_mode<synchronous>, transform_indices = @transform_13, window_bounds = array<i64: 2, 4, 8>}, {pipeline_mode = #tpu.pipeline_mode<synchronous>, transform_indices = @transform_14, window_bounds = array<i64: 1, 8>}, {pipeline_mode = #tpu.pipeline_mode<synchronous>, transform_indices = @transform_15, window_bounds = array<i64: 1, 8>}, {pipeline_mode = #tpu.pipeline_mode<synchronous>, transform_indices = @transform_16, window_bounds = array<i64: 8, 16>}, {pipeline_mode = #tpu.pipeline_mode<synchronous>, transform_indices = @transform_17, window_bounds = array<i64: 16, 8>}, {pipeline_mode = #tpu.pipeline_mode<synchronous>, transform_indices = @transform_18, window_bounds = array<i64: 8, 4>}, {transform_indices = @transform_19, window_bounds = array<i64: 1, 64, 4>}]} {
    %c0 = arith.constant 0 : index
    %c0_0 = arith.constant 0 : index
    %c0_1 = arith.constant 0 : index
    %0 = vector.load %arg1[%c0, %c0_0, %c0_1] : memref<1x64x36xf32, #tpu.memory_space<vmem>>, vector<1x64x36xf32>
    %1 = vector.shape_cast %0 : vector<1x64x36xf32> to vector<64x36xf32>
    %c0_2 = arith.constant 0 : index
    %c0_3 = arith.constant 0 : index
    %2 = vector.load %arg7[%c0_2, %c0_3] : memref<36x8xf32, #tpu.memory_space<vmem>>, vector<36x8xf32>
    %cst = arith.constant dense<0.000000e+00> : vector<64x8xf32>
    %3 = tpu.matmul %1, %2, %cst {dimension_numbers = #tpu.dot_dimension_numbers<[1], [0], [0], [1], [0, 0, 1, 1], [], []>} : vector<64x36xf32>, vector<36x8xf32>, vector<64x8xf32> -> vector<64x8xf32>
    %cst_4 = arith.constant 0.000000e+00 : f32
    %4 = vector.broadcast %cst_4 : f32 to vector<64x8xf32>
    %5 = arith.maximumf %3, %4 : vector<64x8xf32>
    %c0_5 = arith.constant 0 : index
    %c0_6 = arith.constant 0 : index
    %6 = vector.load %arg8[%c0_5, %c0_6] : memref<8x8xf32, #tpu.memory_space<vmem>>, vector<8x8xf32>
    %cst_7 = arith.constant dense<0.000000e+00> : vector<64x8xf32>
    %7 = tpu.matmul %5, %6, %cst_7 {dimension_numbers = #tpu.dot_dimension_numbers<[1], [0], [0], [1], [0, 0, 1, 1], [], []>} : vector<64x8xf32>, vector<8x8xf32>, vector<64x8xf32> -> vector<64x8xf32>
    %c0_8 = arith.constant 0 : index
    %c0_9 = arith.constant 0 : index
    %c0_10 = arith.constant 0 : index
    %8 = vector.load %arg2[%c0_8, %c0_9, %c0_10] : memref<1x64x36xf32, #tpu.memory_space<vmem>>, vector<1x64x36xf32>
    %9 = vector.shape_cast %8 : vector<1x64x36xf32> to vector<64x36xf32>
    %c0_11 = arith.constant 0 : index
    %c0_12 = arith.constant 0 : index
    %10 = vector.load %arg7[%c0_11, %c0_12] : memref<36x8xf32, #tpu.memory_space<vmem>>, vector<36x8xf32>
    %cst_13 = arith.constant dense<0.000000e+00> : vector<64x8xf32>
    %11 = tpu.matmul %9, %10, %cst_13 {dimension_numbers = #tpu.dot_dimension_numbers<[1], [0], [0], [1], [0, 0, 1, 1], [], []>} : vector<64x36xf32>, vector<36x8xf32>, vector<64x8xf32> -> vector<64x8xf32>
    %cst_14 = arith.constant 0.000000e+00 : f32
    %12 = vector.broadcast %cst_14 : f32 to vector<64x8xf32>
    %13 = arith.maximumf %11, %12 : vector<64x8xf32>
    %c0_15 = arith.constant 0 : index
    %c0_16 = arith.constant 0 : index
    %14 = vector.load %arg8[%c0_15, %c0_16] : memref<8x8xf32, #tpu.memory_space<vmem>>, vector<8x8xf32>
    %cst_17 = arith.constant dense<0.000000e+00> : vector<64x8xf32>
    %15 = tpu.matmul %13, %14, %cst_17 {dimension_numbers = #tpu.dot_dimension_numbers<[1], [0], [0], [1], [0, 0, 1, 1], [], []>} : vector<64x8xf32>, vector<8x8xf32>, vector<64x8xf32> -> vector<64x8xf32>
    %16 = arith.addf %7, %15 : vector<64x8xf32>
    %c0_18 = arith.constant 0 : index
    %c0_19 = arith.constant 0 : index
    %17 = vector.load %arg9[%c0_18, %c0_19] : memref<1x8xf32, #tpu.memory_space<vmem>>, vector<1x8xf32>
    %c0_20 = arith.constant 0 : index
    %c0_21 = arith.constant 0 : index
    %18 = vector.load %arg10[%c0_20, %c0_21] : memref<1x8xf32, #tpu.memory_space<vmem>>, vector<1x8xf32>
    %cst_22 = arith.constant dense<0.000000e+00> : vector<64xf32>
    %19 = vector.multi_reduction <add>, %16, %cst_22 [1] : vector<64x8xf32> to vector<64xf32>
    %20 = vector.shape_cast %19 : vector<64xf32> to vector<64x1xf32>
    %cst_23 = arith.constant 8.000000e+00 : f32
    %21 = vector.broadcast %cst_23 : f32 to vector<64x1xf32>
    %22 = arith.divf %20, %21 : vector<64x1xf32>
    %23 = vector.broadcast %22 : vector<64x1xf32> to vector<64x8xf32>
    %24 = arith.subf %16, %23 : vector<64x8xf32>
    %25 = arith.mulf %24, %24 : vector<64x8xf32>
    %cst_24 = arith.constant dense<0.000000e+00> : vector<64xf32>
    %26 = vector.multi_reduction <add>, %25, %cst_24 [1] : vector<64x8xf32> to vector<64xf32>
    %27 = vector.shape_cast %26 : vector<64xf32> to vector<64x1xf32>
    %cst_25 = arith.constant 8.000000e+00 : f32
    %28 = vector.broadcast %cst_25 : f32 to vector<64x1xf32>
    %29 = arith.divf %27, %28 : vector<64x1xf32>
    %30 = vector.broadcast %22 : vector<64x1xf32> to vector<64x8xf32>
    %31 = arith.subf %16, %30 : vector<64x8xf32>
    %cst_26 = arith.constant 9.99999974E-6 : f32
    %32 = vector.broadcast %cst_26 : f32 to vector<64x1xf32>
    %33 = arith.addf %29, %32 : vector<64x1xf32>
    %34 = math.rsqrt %33 : vector<64x1xf32>
    %35 = vector.broadcast %34 : vector<64x1xf32> to vector<64x8xf32>
    %36 = arith.mulf %31, %35 : vector<64x8xf32>
    %37 = vector.broadcast %17 : vector<1x8xf32> to vector<64x8xf32>
    %38 = arith.mulf %36, %37 : vector<64x8xf32>
    %39 = vector.broadcast %18 : vector<1x8xf32> to vector<64x8xf32>
    %40 = arith.addf %38, %39 : vector<64x8xf32>
    %c0_27 = arith.constant 0 : index
    %c0_28 = arith.constant 0 : index
    %41 = vector.load %arg3[%c0_27, %c0_28] : memref<64x1xf32, #tpu.memory_space<vmem>>, vector<64x1xf32>
    %c0_29 = arith.constant 0 : index
    %c0_30 = arith.constant 0 : index
    %42 = vector.load %arg4[%c0_29, %c0_30] : memref<64x1xf32, #tpu.memory_space<vmem>>, vector<64x1xf32>
    %c0_31 = arith.constant 0 : index
    %c0_32 = arith.constant 0 : index
    %43 = vector.load %arg5[%c0_31, %c0_32] : memref<1x64xf32, #tpu.memory_space<vmem>>, vector<1x64xf32>
    %c0_33 = arith.constant 0 : index
    %c0_34 = arith.constant 0 : index
    %44 = vector.load %arg6[%c0_33, %c0_34] : memref<1x64xf32, #tpu.memory_space<vmem>>, vector<1x64xf32>
    %cst_35 = arith.constant 2.000000e+00 : f32
    %45 = vector.broadcast %cst_35 : f32 to vector<64x1xf32>
    %46 = arith.subf %41, %45 : vector<64x1xf32>
    %47 = vector.broadcast %43 : vector<1x64xf32> to vector<64x64xf32>
    %48 = vector.broadcast %46 : vector<64x1xf32> to vector<64x64xf32>
    %49 = arith.cmpf oge, %47, %48 : vector<64x64xf32>
    %cst_36 = arith.constant 3.000000e+00 : f32
    %50 = vector.broadcast %cst_36 : f32 to vector<64x1xf32>
    %51 = arith.addf %41, %50 : vector<64x1xf32>
    %52 = vector.broadcast %43 : vector<1x64xf32> to vector<64x64xf32>
    %53 = vector.broadcast %51 : vector<64x1xf32> to vector<64x64xf32>
    %54 = arith.cmpf olt, %52, %53 : vector<64x64xf32>
    %55 = arith.andi %49, %54 : vector<64x64xi1>
    %cst_37 = arith.constant 2.000000e+00 : f32
    %56 = vector.broadcast %cst_37 : f32 to vector<64x1xf32>
    %57 = arith.subf %42, %56 : vector<64x1xf32>
    %58 = vector.broadcast %44 : vector<1x64xf32> to vector<64x64xf32>
    %59 = vector.broadcast %57 : vector<64x1xf32> to vector<64x64xf32>
    %60 = arith.cmpf oge, %58, %59 : vector<64x64xf32>
    %61 = arith.andi %55, %60 : vector<64x64xi1>
    %cst_38 = arith.constant 3.000000e+00 : f32
    %62 = vector.broadcast %cst_38 : f32 to vector<64x1xf32>
    %63 = arith.addf %42, %62 : vector<64x1xf32>
    %64 = vector.broadcast %44 : vector<1x64xf32> to vector<64x64xf32>
    %65 = vector.broadcast %63 : vector<64x1xf32> to vector<64x64xf32>
    %66 = arith.cmpf olt, %64, %65 : vector<64x64xf32>
    %67 = arith.andi %61, %66 : vector<64x64xi1>
    %cst_39 = arith.constant 0.000000e+00 : f32
    %cst_40 = arith.constant -1.000000e+30 : f32
    %68 = vector.broadcast %cst_39 : f32 to vector<64x64xf32>
    %69 = vector.broadcast %cst_40 : f32 to vector<64x64xf32>
    %70 = arith.select %67, %68, %69 : vector<64x64xi1>, vector<64x64xf32>
    %c0_41 = arith.constant 0 : index
    %c0_42 = arith.constant 0 : index
    %c0_43 = arith.constant 0 : index
    %71 = vector.load %arg11[%c0_41, %c0_42, %c0_43] : memref<2x8x4xf32, #tpu.memory_space<vmem>>, vector<1x8x4xf32>
    %72 = vector.shape_cast %71 : vector<1x8x4xf32> to vector<8x4xf32>
    %cst_44 = arith.constant dense<0.000000e+00> : vector<64x4xf32>
    %73 = tpu.matmul %40, %72, %cst_44 {dimension_numbers = #tpu.dot_dimension_numbers<[1], [0], [0], [1], [0, 0, 1, 1], [], []>} : vector<64x8xf32>, vector<8x4xf32>, vector<64x4xf32> -> vector<64x4xf32>
    %c0_45 = arith.constant 0 : index
    %c0_46 = arith.constant 0 : index
    %c0_47 = arith.constant 0 : index
    %74 = vector.load %arg12[%c0_45, %c0_46, %c0_47] : memref<2x8x4xf32, #tpu.memory_space<vmem>>, vector<1x8x4xf32>
    %75 = vector.shape_cast %74 : vector<1x8x4xf32> to vector<8x4xf32>
    %cst_48 = arith.constant dense<0.000000e+00> : vector<64x4xf32>
    %76 = tpu.matmul %40, %75, %cst_48 {dimension_numbers = #tpu.dot_dimension_numbers<[1], [0], [0], [1], [0, 0, 1, 1], [], []>} : vector<64x8xf32>, vector<8x4xf32>, vector<64x4xf32> -> vector<64x4xf32>
    %c0_49 = arith.constant 0 : index
    %c0_50 = arith.constant 0 : index
    %c0_51 = arith.constant 0 : index
    %77 = vector.load %arg13[%c0_49, %c0_50, %c0_51] : memref<2x8x4xf32, #tpu.memory_space<vmem>>, vector<1x8x4xf32>
    %78 = vector.shape_cast %77 : vector<1x8x4xf32> to vector<8x4xf32>
    %cst_52 = arith.constant dense<0.000000e+00> : vector<64x4xf32>
    %79 = tpu.matmul %7, %78, %cst_52 {dimension_numbers = #tpu.dot_dimension_numbers<[1], [0], [0], [1], [0, 0, 1, 1], [], []>} : vector<64x8xf32>, vector<8x4xf32>, vector<64x4xf32> -> vector<64x4xf32>
    %cst_53 = arith.constant dense<0.000000e+00> : vector<64x64xf32>
    %80 = tpu.matmul %73, %76, %cst_53 {dimension_numbers = #tpu.dot_dimension_numbers<[1], [1], [0], [0], [0, 0, 1, 0], [], []>} : vector<64x4xf32>, vector<64x4xf32>, vector<64x64xf32> -> vector<64x64xf32>
    %cst_54 = arith.constant 5.000000e-01 : f32
    %81 = vector.broadcast %cst_54 : f32 to vector<64x64xf32>
    %82 = arith.mulf %80, %81 : vector<64x64xf32>
    %83 = arith.addf %82, %70 : vector<64x64xf32>
    %cst_55 = arith.constant dense<0xFF800000> : vector<64xf32>
    %84 = vector.multi_reduction <maximumf>, %83, %cst_55 [1] : vector<64x64xf32> to vector<64xf32>
    %85 = vector.shape_cast %84 : vector<64xf32> to vector<64x1xf32>
    %86 = vector.broadcast %85 : vector<64x1xf32> to vector<64x64xf32>
    %87 = arith.subf %83, %86 : vector<64x64xf32>
    %88 = math.exp %87 : vector<64x64xf32>
    %cst_56 = arith.constant dense<0.000000e+00> : vector<64xf32>
    %89 = vector.multi_reduction <add>, %88, %cst_56 [1] : vector<64x64xf32> to vector<64xf32>
    %90 = vector.shape_cast %89 : vector<64xf32> to vector<64x1xf32>
    %91 = tpu.reciprocal %90 {approx = true} : vector<64x1xf32> -> vector<64x1xf32>
    %92 = vector.broadcast %91 : vector<64x1xf32> to vector<64x64xf32>
    %93 = arith.mulf %88, %92 : vector<64x64xf32>
    %cst_57 = arith.constant dense<0.000000e+00> : vector<64x4xf32>
    %94 = tpu.matmul %93, %79, %cst_57 {dimension_numbers = #tpu.dot_dimension_numbers<[1], [0], [0], [1], [0, 0, 1, 1], [], []>} : vector<64x64xf32>, vector<64x4xf32>, vector<64x4xf32> -> vector<64x4xf32>
    %c0_58 = arith.constant 0 : index
    %c0_59 = arith.constant 0 : index
    %c0_60 = arith.constant 0 : index
    %95 = vector.load %arg14[%c0_58, %c0_59, %c0_60] : memref<2x4x8xf32, #tpu.memory_space<vmem>>, vector<1x4x8xf32>
    %96 = vector.shape_cast %95 : vector<1x4x8xf32> to vector<4x8xf32>
    %cst_61 = arith.constant dense<0.000000e+00> : vector<64x8xf32>
    %97 = tpu.matmul %94, %96, %cst_61 {dimension_numbers = #tpu.dot_dimension_numbers<[1], [0], [0], [1], [0, 0, 1, 1], [], []>} : vector<64x4xf32>, vector<4x8xf32>, vector<64x8xf32> -> vector<64x8xf32>
    %98 = arith.addf %7, %97 : vector<64x8xf32>
    %c1 = arith.constant 1 : index
    %c0_62 = arith.constant 0 : index
    %c0_63 = arith.constant 0 : index
    %99 = vector.load %arg11[%c1, %c0_62, %c0_63] : memref<2x8x4xf32, #tpu.memory_space<vmem>>, vector<1x8x4xf32>
    %100 = vector.shape_cast %99 : vector<1x8x4xf32> to vector<8x4xf32>
    %cst_64 = arith.constant dense<0.000000e+00> : vector<64x4xf32>
    %101 = tpu.matmul %40, %100, %cst_64 {dimension_numbers = #tpu.dot_dimension_numbers<[1], [0], [0], [1], [0, 0, 1, 1], [], []>} : vector<64x8xf32>, vector<8x4xf32>, vector<64x4xf32> -> vector<64x4xf32>
    %c1_65 = arith.constant 1 : index
    %c0_66 = arith.constant 0 : index
    %c0_67 = arith.constant 0 : index
    %102 = vector.load %arg12[%c1_65, %c0_66, %c0_67] : memref<2x8x4xf32, #tpu.memory_space<vmem>>, vector<1x8x4xf32>
    %103 = vector.shape_cast %102 : vector<1x8x4xf32> to vector<8x4xf32>
    %cst_68 = arith.constant dense<0.000000e+00> : vector<64x4xf32>
    %104 = tpu.matmul %40, %103, %cst_68 {dimension_numbers = #tpu.dot_dimension_numbers<[1], [0], [0], [1], [0, 0, 1, 1], [], []>} : vector<64x8xf32>, vector<8x4xf32>, vector<64x4xf32> -> vector<64x4xf32>
    %c1_69 = arith.constant 1 : index
    %c0_70 = arith.constant 0 : index
    %c0_71 = arith.constant 0 : index
    %105 = vector.load %arg13[%c1_69, %c0_70, %c0_71] : memref<2x8x4xf32, #tpu.memory_space<vmem>>, vector<1x8x4xf32>
    %106 = vector.shape_cast %105 : vector<1x8x4xf32> to vector<8x4xf32>
    %cst_72 = arith.constant dense<0.000000e+00> : vector<64x4xf32>
    %107 = tpu.matmul %7, %106, %cst_72 {dimension_numbers = #tpu.dot_dimension_numbers<[1], [0], [0], [1], [0, 0, 1, 1], [], []>} : vector<64x8xf32>, vector<8x4xf32>, vector<64x4xf32> -> vector<64x4xf32>
    %cst_73 = arith.constant dense<0.000000e+00> : vector<64x64xf32>
    %108 = tpu.matmul %101, %104, %cst_73 {dimension_numbers = #tpu.dot_dimension_numbers<[1], [1], [0], [0], [0, 0, 1, 0], [], []>} : vector<64x4xf32>, vector<64x4xf32>, vector<64x64xf32> -> vector<64x64xf32>
    %cst_74 = arith.constant 5.000000e-01 : f32
    %109 = vector.broadcast %cst_74 : f32 to vector<64x64xf32>
    %110 = arith.mulf %108, %109 : vector<64x64xf32>
    %111 = arith.addf %110, %70 : vector<64x64xf32>
    %cst_75 = arith.constant dense<0xFF800000> : vector<64xf32>
    %112 = vector.multi_reduction <maximumf>, %111, %cst_75 [1] : vector<64x64xf32> to vector<64xf32>
    %113 = vector.shape_cast %112 : vector<64xf32> to vector<64x1xf32>
    %114 = vector.broadcast %113 : vector<64x1xf32> to vector<64x64xf32>
    %115 = arith.subf %111, %114 : vector<64x64xf32>
    %116 = math.exp %115 : vector<64x64xf32>
    %cst_76 = arith.constant dense<0.000000e+00> : vector<64xf32>
    %117 = vector.multi_reduction <add>, %116, %cst_76 [1] : vector<64x64xf32> to vector<64xf32>
    %118 = vector.shape_cast %117 : vector<64xf32> to vector<64x1xf32>
    %119 = tpu.reciprocal %118 {approx = true} : vector<64x1xf32> -> vector<64x1xf32>
    %120 = vector.broadcast %119 : vector<64x1xf32> to vector<64x64xf32>
    %121 = arith.mulf %116, %120 : vector<64x64xf32>
    %cst_77 = arith.constant dense<0.000000e+00> : vector<64x4xf32>
    %122 = tpu.matmul %121, %107, %cst_77 {dimension_numbers = #tpu.dot_dimension_numbers<[1], [0], [0], [1], [0, 0, 1, 1], [], []>} : vector<64x64xf32>, vector<64x4xf32>, vector<64x4xf32> -> vector<64x4xf32>
    %c1_78 = arith.constant 1 : index
    %c0_79 = arith.constant 0 : index
    %c0_80 = arith.constant 0 : index
    %123 = vector.load %arg14[%c1_78, %c0_79, %c0_80] : memref<2x4x8xf32, #tpu.memory_space<vmem>>, vector<1x4x8xf32>
    %124 = vector.shape_cast %123 : vector<1x4x8xf32> to vector<4x8xf32>
    %cst_81 = arith.constant dense<0.000000e+00> : vector<64x8xf32>
    %125 = tpu.matmul %122, %124, %cst_81 {dimension_numbers = #tpu.dot_dimension_numbers<[1], [0], [0], [1], [0, 0, 1, 1], [], []>} : vector<64x4xf32>, vector<4x8xf32>, vector<64x8xf32> -> vector<64x8xf32>
    %126 = arith.addf %98, %125 : vector<64x8xf32>
    %c0_82 = arith.constant 0 : index
    %c0_83 = arith.constant 0 : index
    %127 = vector.load %arg15[%c0_82, %c0_83] : memref<1x8xf32, #tpu.memory_space<vmem>>, vector<1x8xf32>
    %c0_84 = arith.constant 0 : index
    %c0_85 = arith.constant 0 : index
    %128 = vector.load %arg16[%c0_84, %c0_85] : memref<1x8xf32, #tpu.memory_space<vmem>>, vector<1x8xf32>
    %c0_86 = arith.constant 0 : index
    %c0_87 = arith.constant 0 : index
    %129 = vector.load %arg17[%c0_86, %c0_87] : memref<8x16xf32, #tpu.memory_space<vmem>>, vector<8x16xf32>
    %c0_88 = arith.constant 0 : index
    %c0_89 = arith.constant 0 : index
    %130 = vector.load %arg18[%c0_88, %c0_89] : memref<16x8xf32, #tpu.memory_space<vmem>>, vector<16x8xf32>
    %cst_90 = arith.constant dense<0.000000e+00> : vector<64xf32>
    %131 = vector.multi_reduction <add>, %126, %cst_90 [1] : vector<64x8xf32> to vector<64xf32>
    %132 = vector.shape_cast %131 : vector<64xf32> to vector<64x1xf32>
    %cst_91 = arith.constant 8.000000e+00 : f32
    %133 = vector.broadcast %cst_91 : f32 to vector<64x1xf32>
    %134 = arith.divf %132, %133 : vector<64x1xf32>
    %135 = vector.broadcast %134 : vector<64x1xf32> to vector<64x8xf32>
    %136 = arith.subf %126, %135 : vector<64x8xf32>
    %137 = arith.mulf %136, %136 : vector<64x8xf32>
    %cst_92 = arith.constant dense<0.000000e+00> : vector<64xf32>
    %138 = vector.multi_reduction <add>, %137, %cst_92 [1] : vector<64x8xf32> to vector<64xf32>
    %139 = vector.shape_cast %138 : vector<64xf32> to vector<64x1xf32>
    %cst_93 = arith.constant 8.000000e+00 : f32
    %140 = vector.broadcast %cst_93 : f32 to vector<64x1xf32>
    %141 = arith.divf %139, %140 : vector<64x1xf32>
    %142 = vector.broadcast %134 : vector<64x1xf32> to vector<64x8xf32>
    %143 = arith.subf %126, %142 : vector<64x8xf32>
    %cst_94 = arith.constant 9.99999974E-6 : f32
    %144 = vector.broadcast %cst_94 : f32 to vector<64x1xf32>
    %145 = arith.addf %141, %144 : vector<64x1xf32>
    %146 = math.rsqrt %145 : vector<64x1xf32>
    %147 = vector.broadcast %146 : vector<64x1xf32> to vector<64x8xf32>
    %148 = arith.mulf %143, %147 : vector<64x8xf32>
    %149 = vector.broadcast %127 : vector<1x8xf32> to vector<64x8xf32>
    %150 = arith.mulf %148, %149 : vector<64x8xf32>
    %151 = vector.broadcast %128 : vector<1x8xf32> to vector<64x8xf32>
    %152 = arith.addf %150, %151 : vector<64x8xf32>
    %cst_95 = arith.constant dense<0.000000e+00> : vector<64x16xf32>
    %153 = tpu.matmul %152, %129, %cst_95 {dimension_numbers = #tpu.dot_dimension_numbers<[1], [0], [0], [1], [0, 0, 1, 1], [], []>} : vector<64x8xf32>, vector<8x16xf32>, vector<64x16xf32> -> vector<64x16xf32>
    %cst_96 = arith.constant 0.000000e+00 : f32
    %154 = vector.broadcast %cst_96 : f32 to vector<64x16xf32>
    %155 = arith.maximumf %153, %154 : vector<64x16xf32>
    %cst_97 = arith.constant dense<0.000000e+00> : vector<64x8xf32>
    %156 = tpu.matmul %155, %130, %cst_97 {dimension_numbers = #tpu.dot_dimension_numbers<[1], [0], [0], [1], [0, 0, 1, 1], [], []>} : vector<64x16xf32>, vector<16x8xf32>, vector<64x8xf32> -> vector<64x8xf32>
    %157 = arith.addf %156, %126 : vector<64x8xf32>
    %cst_98 = arith.constant dense<0.000000e+00> : vector<64xf32>
    %158 = vector.multi_reduction <add>, %157, %cst_98 [1] : vector<64x8xf32> to vector<64xf32>
    %159 = vector.shape_cast %158 : vector<64xf32> to vector<64x1xf32>
    %cst_99 = arith.constant 8.000000e+00 : f32
    %160 = vector.broadcast %cst_99 : f32 to vector<64x1xf32>
    %161 = arith.divf %159, %160 : vector<64x1xf32>
    %162 = vector.broadcast %161 : vector<64x1xf32> to vector<64x8xf32>
    %163 = arith.subf %157, %162 : vector<64x8xf32>
    %164 = arith.mulf %163, %163 : vector<64x8xf32>
    %cst_100 = arith.constant dense<0.000000e+00> : vector<64xf32>
    %165 = vector.multi_reduction <add>, %164, %cst_100 [1] : vector<64x8xf32> to vector<64xf32>
    %166 = vector.shape_cast %165 : vector<64xf32> to vector<64x1xf32>
    %cst_101 = arith.constant 8.000000e+00 : f32
    %167 = vector.broadcast %cst_101 : f32 to vector<64x1xf32>
    %168 = arith.divf %166, %167 : vector<64x1xf32>
    %169 = vector.broadcast %161 : vector<64x1xf32> to vector<64x8xf32>
    %170 = arith.subf %157, %169 : vector<64x8xf32>
    %cst_102 = arith.constant 9.99999974E-6 : f32
    %171 = vector.broadcast %cst_102 : f32 to vector<64x1xf32>
    %172 = arith.addf %168, %171 : vector<64x1xf32>
    %173 = math.rsqrt %172 : vector<64x1xf32>
    %174 = vector.broadcast %173 : vector<64x1xf32> to vector<64x8xf32>
    %175 = arith.mulf %170, %174 : vector<64x8xf32>
    %176 = vector.broadcast %127 : vector<1x8xf32> to vector<64x8xf32>
    %177 = arith.mulf %175, %176 : vector<64x8xf32>
    %178 = vector.broadcast %128 : vector<1x8xf32> to vector<64x8xf32>
    %179 = arith.addf %177, %178 : vector<64x8xf32>
    %cst_103 = arith.constant dense<0.000000e+00> : vector<64x16xf32>
    %180 = tpu.matmul %179, %129, %cst_103 {dimension_numbers = #tpu.dot_dimension_numbers<[1], [0], [0], [1], [0, 0, 1, 1], [], []>} : vector<64x8xf32>, vector<8x16xf32>, vector<64x16xf32> -> vector<64x16xf32>
    %cst_104 = arith.constant 0.000000e+00 : f32
    %181 = vector.broadcast %cst_104 : f32 to vector<64x16xf32>
    %182 = arith.maximumf %180, %181 : vector<64x16xf32>
    %cst_105 = arith.constant dense<0.000000e+00> : vector<64x8xf32>
    %183 = tpu.matmul %182, %130, %cst_105 {dimension_numbers = #tpu.dot_dimension_numbers<[1], [0], [0], [1], [0, 0, 1, 1], [], []>} : vector<64x16xf32>, vector<16x8xf32>, vector<64x8xf32> -> vector<64x8xf32>
    %184 = arith.addf %183, %157 : vector<64x8xf32>
    %c0_106 = arith.constant 0 : index
    %c0_107 = arith.constant 0 : index
    %185 = vector.load %arg19[%c0_106, %c0_107] : memref<8x4xf32, #tpu.memory_space<vmem>>, vector<8x4xf32>
    %cst_108 = arith.constant dense<0.000000e+00> : vector<64x4xf32>
    %186 = tpu.matmul %184, %185, %cst_108 {dimension_numbers = #tpu.dot_dimension_numbers<[1], [0], [0], [1], [0, 0, 1, 1], [], []>} : vector<64x8xf32>, vector<8x4xf32>, vector<64x4xf32> -> vector<64x4xf32>
    %c0_109 = arith.constant 0 : index
    %c0_110 = arith.constant 0 : index
    %c0_111 = arith.constant 0 : index
    %187 = vector.load %arg20[%c0_109, %c0_110, %c0_111] : memref<1x64x4xf32, #tpu.memory_space<vmem>>, vector<1x64x4xf32>
    %188 = vector.shape_cast %187 : vector<1x64x4xf32> to vector<64x4xf32>
    %189 = vector.shape_cast %186 : vector<64x4xf32> to vector<1x64x4xf32>
    tpu.vector_store %arg20[%c0_109, %c0_110, %c0_111], %189 {strides = array<i32>} : memref<1x64x4xf32, #tpu.memory_space<vmem>>, vector<1x64x4xf32>,
    return
  }
  func.func @transform_0(%arg0: i32) -> (i32, i32, i32) {
    %c0_i32 = arith.constant 0 : i32
    %c0_i32_0 = arith.constant 0 : i32
    %c0_i32_1 = arith.constant 0 : i32
    return %arg0, %c0_i32, %c0_i32_0 : i32, i32, i32
  }
  func.func @transform_1(%arg0: i32) -> (i32, i32, i32) {
    %c4_i32 = arith.constant 4 : i32
    %c0_i32 = arith.constant 0 : i32
    %0 = arith.cmpi eq, %c4_i32, %c0_i32 : i32
    %c1_i32 = arith.constant 1 : i32
    %1 = arith.select %0, %c1_i32, %c4_i32 : i32
    %2 = arith.remsi %arg0, %1 : i32
    %c0_i32_0 = arith.constant 0 : i32
    %3 = arith.cmpi ne, %2, %c0_i32_0 : i32
    %c0_i32_1 = arith.constant 0 : i32
    %4 = arith.cmpi slt, %2, %c0_i32_1 : i32
    %c0_i32_2 = arith.constant 0 : i32
    %5 = arith.cmpi slt, %1, %c0_i32_2 : i32
    %6 = arith.xori %4, %5 : i1
    %7 = arith.andi %6, %3 : i1
    %8 = arith.addi %2, %1 : i32
    %9 = arith.select %7, %8, %2 : i32
    %c0_i32_3 = arith.constant 0 : i32
    %c0_i32_4 = arith.constant 0 : i32
    %c0_i32_5 = arith.constant 0 : i32
    return %9, %c0_i32_3, %c0_i32_4 : i32, i32, i32
  }
  func.func @transform_2(%arg0: i32) -> (i32, i32) {
    %c0_i32 = arith.constant 0 : i32
    %c0_i32_0 = arith.constant 0 : i32
    %c0_i32_1 = arith.constant 0 : i32
    return %c0_i32, %c0_i32_0 : i32, i32
  }
  func.func @transform_3(%arg0: i32) -> (i32, i32) {
    %c0_i32 = arith.constant 0 : i32
    %c0_i32_0 = arith.constant 0 : i32
    %c0_i32_1 = arith.constant 0 : i32
    return %c0_i32, %c0_i32_0 : i32, i32
  }
  func.func @transform_4(%arg0: i32) -> (i32, i32) {
    %c0_i32 = arith.constant 0 : i32
    %c0_i32_0 = arith.constant 0 : i32
    %c0_i32_1 = arith.constant 0 : i32
    return %c0_i32, %c0_i32_0 : i32, i32
  }
  func.func @transform_5(%arg0: i32) -> (i32, i32) {
    %c0_i32 = arith.constant 0 : i32
    %c0_i32_0 = arith.constant 0 : i32
    %c0_i32_1 = arith.constant 0 : i32
    return %c0_i32, %c0_i32_0 : i32, i32
  }
  func.func @transform_6(%arg0: i32) -> (i32, i32) {
    %c0_i32 = arith.constant 0 : i32
    %c0_i32_0 = arith.constant 0 : i32
    %c0_i32_1 = arith.constant 0 : i32
    return %c0_i32, %c0_i32_0 : i32, i32
  }
  func.func @transform_7(%arg0: i32) -> (i32, i32) {
    %c0_i32 = arith.constant 0 : i32
    %c0_i32_0 = arith.constant 0 : i32
    %c0_i32_1 = arith.constant 0 : i32
    return %c0_i32, %c0_i32_0 : i32, i32
  }
  func.func @transform_8(%arg0: i32) -> (i32, i32) {
    %c0_i32 = arith.constant 0 : i32
    %c0_i32_0 = arith.constant 0 : i32
    %c0_i32_1 = arith.constant 0 : i32
    return %c0_i32, %c0_i32_0 : i32, i32
  }
  func.func @transform_9(%arg0: i32) -> (i32, i32) {
    %c0_i32 = arith.constant 0 : i32
    %c0_i32_0 = arith.constant 0 : i32
    %c0_i32_1 = arith.constant 0 : i32
    return %c0_i32, %c0_i32_0 : i32, i32
  }
  func.func @transform_10(%arg0: i32) -> (i32, i32, i32) {
    %c0_i32 = arith.constant 0 : i32
    %c0_i32_0 = arith.constant 0 : i32
    %c0_i32_1 = arith.constant 0 : i32
    %c0_i32_2 = arith.constant 0 : i32
    return %c0_i32, %c0_i32_0, %c0_i32_1 : i32, i32, i32
  }
  func.func @transform_11(%arg0: i32) -> (i32, i32, i32) {
    %c0_i32 = arith.constant 0 : i32
    %c0_i32_0 = arith.constant 0 : i32
    %c0_i32_1 = arith.constant 0 : i32
    %c0_i32_2 = arith.constant 0 : i32
    return %c0_i32, %c0_i32_0, %c0_i32_1 : i32, i32, i32
  }
  func.func @transform_12(%arg0: i32) -> (i32, i32, i32) {
    %c0_i32 = arith.constant 0 : i32
    %c0_i32_0 = arith.constant 0 : i32
    %c0_i32_1 = arith.constant 0 : i32
    %c0_i32_2 = arith.constant 0 : i32
    return %c0_i32, %c0_i32_0, %c0_i32_1 : i32, i32, i32
  }
  func.func @transform_13(%arg0: i32) -> (i32, i32, i32) {
    %c0_i32 = arith.constant 0 : i32
    %c0_i32_0 = arith.constant 0 : i32
    %c0_i32_1 = arith.constant 0 : i32
    %c0_i32_2 = arith.constant 0 : i32
    return %c0_i32, %c0_i32_0, %c0_i32_1 : i32, i32, i32
  }
  func.func @transform_14(%arg0: i32) -> (i32, i32) {
    %c0_i32 = arith.constant 0 : i32
    %c0_i32_0 = arith.constant 0 : i32
    %c0_i32_1 = arith.constant 0 : i32
    return %c0_i32, %c0_i32_0 : i32, i32
  }
  func.func @transform_15(%arg0: i32) -> (i32, i32) {
    %c0_i32 = arith.constant 0 : i32
    %c0_i32_0 = arith.constant 0 : i32
    %c0_i32_1 = arith.constant 0 : i32
    return %c0_i32, %c0_i32_0 : i32, i32
  }
  func.func @transform_16(%arg0: i32) -> (i32, i32) {
    %c0_i32 = arith.constant 0 : i32
    %c0_i32_0 = arith.constant 0 : i32
    %c0_i32_1 = arith.constant 0 : i32
    return %c0_i32, %c0_i32_0 : i32, i32
  }
  func.func @transform_17(%arg0: i32) -> (i32, i32) {
    %c0_i32 = arith.constant 0 : i32
    %c0_i32_0 = arith.constant 0 : i32
    %c0_i32_1 = arith.constant 0 : i32
    return %c0_i32, %c0_i32_0 : i32, i32
  }
  func.func @transform_18(%arg0: i32) -> (i32, i32) {
    %c0_i32 = arith.constant 0 : i32
    %c0_i32_0 = arith.constant 0 : i32
    %c0_i32_1 = arith.constant 0 : i32
    return %c0_i32, %c0_i32_0 : i32, i32
  }
  func.func @transform_19(%arg0: i32) -> (i32, i32, i32) {
    %c0_i32 = arith.constant 0 : i32
    %c0_i32_0 = arith.constant 0 : i32
    %c0_i32_1 = arith.constant 0 : i32
    return %arg0, %c0_i32, %c0_i32_0 : i32, i32, i32
  }
}

</mosaic_0001>

<llo_original>
// kernel: forward.1
$region0: #{forward.1}
  #allocation0 [shape = 'u32[]', space=smem, size = 0x4, offset = 0x4, fixed_abs, tag = 'smem constant byte address 0x4 - core index']
  #allocation1 [shape = 'u32[72,128]{1,0:T(1,128)}', space=vmem, size = 0x9000, scoped, tag = 'internal scratch']
  %s0 = inlined_call_operand.vmem [shape: f32[4,64,36], index: 0, kind: input, shape index: {}]
  %s1 = inlined_call_operand.vmem [shape: f32[4,64,36], index: 1, kind: input, shape index: {}]
  %s2 = inlined_call_operand.vmem [shape: f32[64,1], index: 2, kind: input, shape index: {}]
  %s3 = inlined_call_operand.vmem [shape: f32[64,1], index: 3, kind: input, shape index: {}]
  %s4 = inlined_call_operand.vmem [shape: f32[1,64], index: 4, kind: input, shape index: {}]
  %s5 = inlined_call_operand.vmem [shape: f32[1,64], index: 5, kind: input, shape index: {}]
  %s6 = inlined_call_operand.vmem [shape: f32[36,8], index: 6, kind: input, shape index: {}]
  %s7 = inlined_call_operand.vmem [shape: f32[8,8], index: 7, kind: input, shape index: {}]
  %s8 = inlined_call_operand.vmem [shape: f32[1,8], index: 8, kind: input, shape index: {}, may-alias: {8,14}]
  %s9 = inlined_call_operand.vmem [shape: f32[1,8], index: 9, kind: input, shape index: {}, may-alias: {9,15}]
  %s10 = inlined_call_operand.vmem [shape: f32[2,8,4], index: 10, kind: input, shape index: {}]
  %s11 = inlined_call_operand.vmem [shape: f32[2,8,4], index: 11, kind: input, shape index: {}]
  %s12 = inlined_call_operand.vmem [shape: f32[2,8,4], index: 12, kind: input, shape index: {}]
  %s13 = inlined_call_operand.vmem [shape: f32[2,4,8], index: 13, kind: input, shape index: {}]
  %s14 = inlined_call_operand.vmem [shape: f32[1,8], index: 14, kind: input, shape index: {}, may-alias: {8,14}]
  %s15 = inlined_call_operand.vmem [shape: f32[1,8], index: 15, kind: input, shape index: {}, may-alias: {9,15}]
  %s16 = inlined_call_operand.vmem [shape: f32[8,16], index: 16, kind: input, shape index: {}]
  %s17 = inlined_call_operand.vmem [shape: f32[16,8], index: 17, kind: input, shape index: {}]
  %s18 = inlined_call_operand.vmem [shape: f32[8,4], index: 18, kind: input, shape index: {}]
  %s19 = inlined_call_operand.vmem [shape: f32[4,64,4], index: 19, kind: output, shape index: {}]
  %s20 = sld [smem:[#allocation0]]
  $region109: #{forward.1} parent=0
    _
  %s22 = ssub.s32 1, %s20
  %s23 = scalar_select 0, %s22, %s20
  loop: start=0, step=1, limit=6
  $region2: #{forward.1} parent=0 // loop_pre_header
    _
  $region3: #{forward.1} parent=0 // loop_header
    %s25 = sphi 0, %s29
    %p26 = scmp.ge.s32.totalorder %s25, 6
    %s35 = sphi 0, %s37
    %s38 = sphi 0, %s35
    %s39 = sphi 0, %s38
    %s55 = sphi 0, %s39
    %s85 = sphi 0, %s87
    %s88 = sphi 0, %s85
    %s89 = sphi 0, %s88
    %s105 = sphi 0, %s89
    %s109 = sphi 0, %s109
    %s111 = sphi 0, %s109
    %s112 = sphi 0, %s111
    %s126 = sphi 0, %s112
    %s130 = sphi 0, %s130
    %s132 = sphi 0, %s130
    %s133 = sphi 0, %s132
    %s147 = sphi 0, %s133
    %s151 = sphi 0, %s151
    %s153 = sphi 0, %s151
    %s154 = sphi 0, %s153
    %s168 = sphi 0, %s154
    %s172 = sphi 0, %s172
    %s174 = sphi 0, %s172
    %s175 = sphi 0, %s174
    %s189 = sphi 0, %s175
    %s193 = sphi 0, %s193
    %s195 = sphi 0, %s193
    %s196 = sphi 0, %s195
    %s210 = sphi 0, %s196
    %s214 = sphi 0, %s214
    %s216 = sphi 0, %s214
    %s217 = sphi 0, %s216
    %s231 = sphi 0, %s217
    %s235 = sphi 0, %s235
    %s237 = sphi 0, %s235
    %s238 = sphi 0, %s237
    %s252 = sphi 0, %s238
    %s256 = sphi 0, %s256
    %s258 = sphi 0, %s256
    %s259 = sphi 0, %s258
    %s273 = sphi 0, %s259
    %s277 = sphi 0, %s277
    %s279 = sphi 0, %s277
    %s280 = sphi 0, %s279
    %s294 = sphi 0, %s280
    %s298 = sphi 0, %s298
    %s300 = sphi 0, %s298
    %s301 = sphi 0, %s300
    %s315 = sphi 0, %s301
    %s319 = sphi 0, %s319
    %s321 = sphi 0, %s319
    %s322 = sphi 0, %s321
    %s336 = sphi 0, %s322
    %s340 = sphi 0, %s340
    %s342 = sphi 0, %s340
    %s343 = sphi 0, %s342
    %s357 = sphi 0, %s343
    %s361 = sphi 0, %s361
    %s363 = sphi 0, %s361
    %s364 = sphi 0, %s363
    %s378 = sphi 0, %s364
    %s382 = sphi 0, %s382
    %s384 = sphi 0, %s382
    %s385 = sphi 0, %s384
    %s399 = sphi 0, %s385
    %s403 = sphi 0, %s403
    %s405 = sphi 0, %s403
    %s406 = sphi 0, %s405
    %s420 = sphi 0, %s406
    %s424 = sphi 0, %s424
    %s426 = sphi 0, %s424
    %s427 = sphi 0, %s426
    %s441 = sphi 0, %s427
    %s445 = sphi 0, %s445
    %s447 = sphi 0, %s445
    %s448 = sphi 0, %s447
    %s462 = sphi 0, %s448
    %s468 = sphi 0, %s470
    %s471 = sphi 0, %s468
    %s472 = sphi 0, %s471
    %s488 = sphi 0, %s472
  $region4: #{forward.1} parent=0 // loop_header_branch
    %28 = sbr.rel (%p26) target = $region8
  $region5: #{forward.1} parent=0 // loop_body
    %s30 = ssub.s32 %s25, 1
    %s31 = ssub.s32 %s25, 2
    %s32 = sadd.s32 %s25, 1
    %s33 = ssub.s32 %s25, %s32
    %p34 = scmp.eq.s32.totalorder %s33, 0
    %s36 = sadd.s32 %s35, 1
    %s37 = scalar_select %p34, %s35, %s36
    %p40 = pneg %p34
    %p41 = scmp.eq.s32.totalorder %s25, 3
    %p42 = por %p40, %p41
    %p43 = scmp.ne.s32.totalorder %s35, %s38
    %p44 = scmp.eq.s32.totalorder %s25, 0
    %p45 = por %p43, %p44
    %p46 = scmp.ne.s32.totalorder %s35, %s38
    %p47 = scmp.eq.s32.totalorder %s30, 3
    %p48 = por %p46, %p47
    %p49 = scmp.ne.s32.totalorder %s38, %s39
    %p50 = scmp.eq.s32.totalorder %s30, 0
    %p51 = por %p49, %p50
    %p52 = scmp.ne.s32.totalorder %s38, %s39
    %p53 = scmp.eq.s32.totalorder %s31, 3
    %p54 = por %p52, %p53
    %p56 = scmp.ne.s32.totalorder %s39, %s55
    %p57 = scmp.eq.s32.totalorder %s31, 0
    %p58 = por %p56, %p57
    %p59 = scmp.lt.s32.totalorder %s25, 0
    %s60 = ssub.s32 0, %s25
    %s61 = scalar_select %p59, %s60, %s25
    %s62 = sand.u32 %s61, 3
    %s63 = ssub.s32 0, %s62
    %s64 = scalar_select %p59, %s63, %s62
    %p65 = scmp.ne.s32.totalorder %s64, 0
    %p66 = scmp.lt.s32.totalorder %s64, 0
    %p67 = pnand %p66, %p65
    %p68 = pneg %p67
    %s69 = sadd.s32 %s64, 4
    %s70 = scalar_select %p68, %s69, %s64
    %p71 = scmp.lt.s32.totalorder %s32, 0
    %s72 = ssub.s32 0, %s32
    %s73 = scalar_select %p71, %s72, %s32
    %s74 = sand.u32 %s73, 3
    %s75 = ssub.s32 0, %s74
    %s76 = scalar_select %p71, %s75, %s74
    %p77 = scmp.ne.s32.totalorder %s76, 0
    %p78 = scmp.lt.s32.totalorder %s76, 0
    %p79 = pnand %p78, %p77
    %p80 = pneg %p79
    %s81 = sadd.s32 %s76, 4
    %s82 = scalar_select %p80, %s81, %s76
    %s83 = ssub.s32 %s70, %s82
    %p84 = scmp.eq.s32.totalorder %s83, 0
    %s86 = sadd.s32 %s85, 1
    %s87 = scalar_select %p84, %s85, %s86
    %p90 = pneg %p84
    %p91 = scmp.eq.s32.totalorder %s25, 3
    %p92 = por %p90, %p91
    %p93 = scmp.ne.s32.totalorder %s85, %s88
    %p94 = scmp.eq.s32.totalorder %s25, 0
    %p95 = por %p93, %p94
    %p96 = scmp.ne.s32.totalorder %s85, %s88
    %p97 = scmp.eq.s32.totalorder %s30, 3
    %p98 = por %p96, %p97
    %p99 = scmp.ne.s32.totalorder %s88, %s89
    %p100 = scmp.eq.s32.totalorder %s30, 0
    %p101 = por %p99, %p100
    %p102 = scmp.ne.s32.totalorder %s88, %s89
    %p103 = scmp.eq.s32.totalorder %s31, 3
    %p104 = por %p102, %p103
    %p106 = scmp.ne.s32.totalorder %s89, %s105
    %p107 = scmp.eq.s32.totalorder %s31, 0
    %p108 = por %p106, %p107
    %s110 = sadd.s32 %s109, 1
    %p113 = scmp.eq.s32.totalorder %s25, 3
    %p114 = scmp.ne.s32.totalorder %s109, %s111
    %p115 = scmp.eq.s32.totalorder %s25, 0
    %p116 = por %p114, %p115
    %p117 = scmp.ne.s32.totalorder %s109, %s111
    %p118 = scmp.eq.s32.totalorder %s30, 3
    %p119 = por %p117, %p118
    %p120 = scmp.ne.s32.totalorder %s111, %s112
    %p121 = scmp.eq.s32.totalorder %s30, 0
    %p122 = por %p120, %p121
    %p123 = scmp.ne.s32.totalorder %s111, %s112
    %p124 = scmp.eq.s32.totalorder %s31, 3
    %p125 = por %p123, %p124
    %p127 = scmp.ne.s32.totalorder %s112, %s126
    %p128 = scmp.eq.s32.totalorder %s31, 0
    %p129 = por %p127, %p128
    %s131 = sadd.s32 %s130, 1
    %p134 = scmp.eq.s32.totalorder %s25, 3
    %p135 = scmp.ne.s32.totalorder %s130, %s132
    %p136 = scmp.eq.s32.totalorder %s25, 0
    %p137 = por %p135, %p136
    %p138 = scmp.ne.s32.totalorder %s130, %s132
    %p139 = scmp.eq.s32.totalorder %s30, 3
    %p140 = por %p138, %p139
    %p141 = scmp.ne.s32.totalorder %s132, %s133
    %p142 = scmp.eq.s32.totalorder %s30, 0
    %p143 = por %p141, %p142
    %p144 = scmp.ne.s32.totalorder %s132, %s133
    %p145 = scmp.eq.s32.totalorder %s31, 3
    %p146 = por %p144, %p145
    %p148 = scmp.ne.s32.totalorder %s133, %s147
    %p149 = scmp.eq.s32.totalorder %s31, 0
    %p150 = por %p148, %p149
    %s152 = sadd.s32 %s151, 1
    %p155 = scmp.eq.s32.totalorder %s25, 3
    %p156 = scmp.ne.s32.totalorder %s151, %s153
    %p157 = scmp.eq.s32.totalorder %s25, 0
    %p158 = por %p156, %p157
    %p159 = scmp.ne.s32.totalorder %s151, %s153
    %p160 = scmp.eq.s32.totalorder %s30, 3
    %p161 = por %p159, %p160
    %p162 = scmp.ne.s32.totalorder %s153, %s154
    %p163 = scmp.eq.s32.totalorder %s30, 0
    %p164 = por %p162, %p163
    %p165 = scmp.ne.s32.totalorder %s153, %s154
    %p166 = scmp.eq.s32.totalorder %s31, 3
    %p167 = por %p165, %p166
    %p169 = scmp.ne.s32.totalorder %s154, %s168
    %p170 = scmp.eq.s32.totalorder %s31, 0
    %p171 = por %p169, %p170
    %s173 = sadd.s32 %s172, 1
    %p176 = scmp.eq.s32.totalorder %s25, 3
    %p177 = scmp.ne.s32.totalorder %s172, %s174
    %p178 = scmp.eq.s32.totalorder %s25, 0
    %p179 = por %p177, %p178
    %p180 = scmp.ne.s32.totalorder %s172, %s174
    %p181 = scmp.eq.s32.totalorder %s30, 3
    %p182 = por %p180, %p181
    %p183 = scmp.ne.s32.totalorder %s174, %s175
    %p184 = scmp.eq.s32.totalorder %s30, 0
    %p185 = por %p183, %p184
    %p186 = scmp.ne.s32.totalorder %s174, %s175
    %p187 = scmp.eq.s32.totalorder %s31, 3
    %p188 = por %p186, %p187
    %p190 = scmp.ne.s32.totalorder %s175, %s189
    %p191 = scmp.eq.s32.totalorder %s31, 0
    %p192 = por %p190, %p191
    %s194 = sadd.s32 %s193, 1
    %p197 = scmp.eq.s32.totalorder %s25, 3
    %p198 = scmp.ne.s32.totalorder %s193, %s195
    %p199 = scmp.eq.s32.totalorder %s25, 0
    %p200 = por %p198, %p199
    %p201 = scmp.ne.s32.totalorder %s193, %s195
    %p202 = scmp.eq.s32.totalorder %s30, 3
    %p203 = por %p201, %p202
    %p204 = scmp.ne.s32.totalorder %s195, %s196
    %p205 = scmp.eq.s32.totalorder %s30, 0
    %p206 = por %p204, %p205
    %p207 = scmp.ne.s32.totalorder %s195, %s196
    %p208 = scmp.eq.s32.totalorder %s31, 3
    %p209 = por %p207, %p208
    %p211 = scmp.ne.s32.totalorder %s196, %s210
    %p212 = scmp.eq.s32.totalorder %s31, 0
    %p213 = por %p211, %p212
    %s215 = sadd.s32 %s214, 1
    %p218 = scmp.eq.s32.totalorder %s25, 3
    %p219 = scmp.ne.s32.totalorder %s214, %s216
    %p220 = scmp.eq.s32.totalorder %s25, 0
    %p221 = por %p219, %p220
    %p222 = scmp.ne.s32.totalorder %s214, %s216
    %p223 = scmp.eq.s32.totalorder %s30, 3
    %p224 = por %p222, %p223
    %p225 = scmp.ne.s32.totalorder %s216, %s217
    %p226 = scmp.eq.s32.totalorder %s30, 0
    %p227 = por %p225, %p226
    %p228 = scmp.ne.s32.totalorder %s216, %s217
    %p229 = scmp.eq.s32.totalorder %s31, 3
    %p230 = por %p228, %p229
    %p232 = scmp.ne.s32.totalorder %s217, %s231
    %p233 = scmp.eq.s32.totalorder %s31, 0
    %p234 = por %p232, %p233
    %s236 = sadd.s32 %s235, 1
    %p239 = scmp.eq.s32.totalorder %s25, 3
    %p240 = scmp.ne.s32.totalorder %s235, %s237
    %p241 = scmp.eq.s32.totalorder %s25, 0
    %p242 = por %p240, %p241
    %p243 = scmp.ne.s32.totalorder %s235, %s237
    %p244 = scmp.eq.s32.totalorder %s30, 3
    %p245 = por %p243, %p244
    %p246 = scmp.ne.s32.totalorder %s237, %s238
    %p247 = scmp.eq.s32.totalorder %s30, 0
    %p248 = por %p246, %p247
    %p249 = scmp.ne.s32.totalorder %s237, %s238
    %p250 = scmp.eq.s32.totalorder %s31, 3
    %p251 = por %p249, %p250
    %p253 = scmp.ne.s32.totalorder %s238, %s252
    %p254 = scmp.eq.s32.totalorder %s31, 0
    %p255 = por %p253, %p254
    %s257 = sadd.s32 %s256, 1
    %p260 = scmp.eq.s32.totalorder %s25, 3
    %p261 = scmp.ne.s32.totalorder %s256, %s258
    %p262 = scmp.eq.s32.totalorder %s25, 0
    %p263 = por %p261, %p262
    %p264 = scmp.ne.s32.totalorder %s256, %s258
    %p265 = scmp.eq.s32.totalorder %s30, 3
    %p266 = por %p264, %p265
    %p267 = scmp.ne.s32.totalorder %s258, %s259
    %p268 = scmp.eq.s32.totalorder %s30, 0
    %p269 = por %p267, %p268
    %p270 = scmp.ne.s32.totalorder %s258, %s259
    %p271 = scmp.eq.s32.totalorder %s31, 3
    %p272 = por %p270, %p271
    %p274 = scmp.ne.s32.totalorder %s259, %s273
    %p275 = scmp.eq.s32.totalorder %s31, 0
    %p276 = por %p274, %p275
    %s278 = sadd.s32 %s277, 1
    %p281 = scmp.eq.s32.totalorder %s25, 3
    %p282 = scmp.ne.s32.totalorder %s277, %s279
    %p283 = scmp.eq.s32.totalorder %s25, 0
    %p284 = por %p282, %p283
    %p285 = scmp.ne.s32.totalorder %s277, %s279
    %p286 = scmp.eq.s32.totalorder %s30, 3
    %p287 = por %p285, %p286
    %p288 = scmp.ne.s32.totalorder %s279, %s280
    %p289 = scmp.eq.s32.totalorder %s30, 0
    %p290 = por %p288, %p289
    %p291 = scmp.ne.s32.totalorder %s279, %s280
    %p292 = scmp.eq.s32.totalorder %s31, 3
    %p293 = por %p291, %p292
    %p295 = scmp.ne.s32.totalorder %s280, %s294
    %p296 = scmp.eq.s32.totalorder %s31, 0
    %p297 = por %p295, %p296
    %s299 = sadd.s32 %s298, 1
    %p302 = scmp.eq.s32.totalorder %s25, 3
    %p303 = scmp.ne.s32.totalorder %s298, %s300
    %p304 = scmp.eq.s32.totalorder %s25, 0
    %p305 = por %p303, %p304
    %p306 = scmp.ne.s32.totalorder %s298, %s300
    %p307 = scmp.eq.s32.totalorder %s30, 3
    %p308 = por %p306, %p307
    %p309 = scmp.ne.s32.totalorder %s300, %s301
    %p310 = scmp.eq.s32.totalorder %s30, 0
    %p311 = por %p309, %p310
    %p312 = scmp.ne.s32.totalorder %s300, %s301
    %p313 = scmp.eq.s32.totalorder %s31, 3
    %p314 = por %p312, %p313
    %p316 = scmp.ne.s32.totalorder %s301, %s315
    %p317 = scmp.eq.s32.totalorder %s31, 0
    %p318 = por %p316, %p317
    %s320 = sadd.s32 %s319, 1
    %p323 = scmp.eq.s32.totalorder %s25, 3
    %p324 = scmp.ne.s32.totalorder %s319, %s321
    %p325 = scmp.eq.s32.totalorder %s25, 0
    %p326 = por %p324, %p325
    %p327 = scmp.ne.s32.totalorder %s319, %s321
    %p328 = scmp.eq.s32.totalorder %s30, 3
    %p329 = por %p327, %p328
    %p330 = scmp.ne.s32.totalorder %s321, %s322
    %p331 = scmp.eq.s32.totalorder %s30, 0
    %p332 = por %p330, %p331
    %p333 = scmp.ne.s32.totalorder %s321, %s322
    %p334 = scmp.eq.s32.totalorder %s31, 3
    %p335 = por %p333, %p334
    %p337 = scmp.ne.s32.totalorder %s322, %s336
    %p338 = scmp.eq.s32.totalorder %s31, 0
    %p339 = por %p337, %p338
    %s341 = sadd.s32 %s340, 1
    %p344 = scmp.eq.s32.totalorder %s25, 3
    %p345 = scmp.ne.s32.totalorder %s340, %s342
    %p346 = scmp.eq.s32.totalorder %s25, 0
    %p347 = por %p345, %p346
    %p348 = scmp.ne.s32.totalorder %s340, %s342
    %p349 = scmp.eq.s32.totalorder %s30, 3
    %p350 = por %p348, %p349
    %p351 = scmp.ne.s32.totalorder %s342, %s343
    %p352 = scmp.eq.s32.totalorder %s30, 0
    %p353 = por %p351, %p352
    %p354 = scmp.ne.s32.totalorder %s342, %s343
    %p355 = scmp.eq.s32.totalorder %s31, 3
    %p356 = por %p354, %p355
    %p358 = scmp.ne.s32.totalorder %s343, %s357
    %p359 = scmp.eq.s32.totalorder %s31, 0
    %p360 = por %p358, %p359
    %s362 = sadd.s32 %s361, 1
    %p365 = scmp.eq.s32.totalorder %s25, 3
    %p366 = scmp.ne.s32.totalorder %s361, %s363
    %p367 = scmp.eq.s32.totalorder %s25, 0
    %p368 = por %p366, %p367
    %p369 = scmp.ne.s32.totalorder %s361, %s363
    %p370 = scmp.eq.s32.totalorder %s30, 3
    %p371 = por %p369, %p370
    %p372 = scmp.ne.s32.totalorder %s363, %s364
    %p373 = scmp.eq.s32.totalorder %s30, 0
    %p374 = por %p372, %p373
    %p375 = scmp.ne.s32.totalorder %s363, %s364
    %p376 = scmp.eq.s32.totalorder %s31, 3
    %p377 = por %p375, %p376
    %p379 = scmp.ne.s32.totalorder %s364, %s378
    %p380 = scmp.eq.s32.totalorder %s31, 0
    %p381 = por %p379, %p380
    %s383 = sadd.s32 %s382, 1
    %p386 = scmp.eq.s32.totalorder %s25, 3
    %p387 = scmp.ne.s32.totalorder %s382, %s384
    %p388 = scmp.eq.s32.totalorder %s25, 0
    %p389 = por %p387, %p388
    %p390 = scmp.ne.s32.totalorder %s382, %s384
    %p391 = scmp.eq.s32.totalorder %s30, 3
    %p392 = por %p390, %p391
    %p393 = scmp.ne.s32.totalorder %s384, %s385
    %p394 = scmp.eq.s32.totalorder %s30, 0
    %p395 = por %p393, %p394
    %p396 = scmp.ne.s32.totalorder %s384, %s385
    %p397 = scmp.eq.s32.totalorder %s31, 3
    %p398 = por %p396, %p397
    %p400 = scmp.ne.s32.totalorder %s385, %s399
    %p401 = scmp.eq.s32.totalorder %s31, 0
    %p402 = por %p400, %p401
    %s404 = sadd.s32 %s403, 1
    %p407 = scmp.eq.s32.totalorder %s25, 3
    %p408 = scmp.ne.s32.totalorder %s403, %s405
    %p409 = scmp.eq.s32.totalorder %s25, 0
    %p410 = por %p408, %p409
    %p411 = scmp.ne.s32.totalorder %s403, %s405
    %p412 = scmp.eq.s32.totalorder %s30, 3
    %p413 = por %p411, %p412
    %p414 = scmp.ne.s32.totalorder %s405, %s406
    %p415 = scmp.eq.s32.totalorder %s30, 0
    %p416 = por %p414, %p415
    %p417 = scmp.ne.s32.totalorder %s405, %s406
    %p418 = scmp.eq.s32.totalorder %s31, 3
    %p419 = por %p417, %p418
    %p421 = scmp.ne.s32.totalorder %s406, %s420
    %p422 = scmp.eq.s32.totalorder %s31, 0
    %p423 = por %p421, %p422
    %s425 = sadd.s32 %s424, 1
    %p428 = scmp.eq.s32.totalorder %s25, 3
    %p429 = scmp.ne.s32.totalorder %s424, %s426
    %p430 = scmp.eq.s32.totalorder %s25, 0
    %p431 = por %p429, %p430
    %p432 = scmp.ne.s32.totalorder %s424, %s426
    %p433 = scmp.eq.s32.totalorder %s30, 3
    %p434 = por %p432, %p433
    %p435 = scmp.ne.s32.totalorder %s426, %s427
    %p436 = scmp.eq.s32.totalorder %s30, 0
    %p437 = por %p435, %p436
    %p438 = scmp.ne.s32.totalorder %s426, %s427
    %p439 = scmp.eq.s32.totalorder %s31, 3
    %p440 = por %p438, %p439
    %p442 = scmp.ne.s32.totalorder %s427, %s441
    %p443 = scmp.eq.s32.totalorder %s31, 0
    %p444 = por %p442, %p443
    %s446 = sadd.s32 %s445, 1
    %p449 = scmp.eq.s32.totalorder %s25, 3
    %p450 = scmp.ne.s32.totalorder %s445, %s447
    %p451 = scmp.eq.s32.totalorder %s25, 0
    %p452 = por %p450, %p451
    %p453 = scmp.ne.s32.totalorder %s445, %s447
    %p454 = scmp.eq.s32.totalorder %s30, 3
    %p455 = por %p453, %p454
    %p456 = scmp.ne.s32.totalorder %s447, %s448
    %p457 = scmp.eq.s32.totalorder %s30, 0
    %p458 = por %p456, %p457
    %p459 = scmp.ne.s32.totalorder %s447, %s448
    %p460 = scmp.eq.s32.totalorder %s31, 3
    %p461 = por %p459, %p460
    %p463 = scmp.ne.s32.totalorder %s448, %s462
    %p464 = scmp.eq.s32.totalorder %s31, 0
    %p465 = por %p463, %p464
    %s466 = ssub.s32 %s25, %s32
    %p467 = scmp.eq.s32.totalorder %s466, 0
    %s469 = sadd.s32 %s468, 1
    %s470 = scalar_select %p467, %s468, %s469
    %p473 = pneg %p467
    %p474 = scmp.eq.s32.totalorder %s25, 3
    %p475 = por %p473, %p474
    %p476 = scmp.ne.s32.totalorder %s468, %s471
    %p477 = scmp.eq.s32.totalorder %s25, 0
    %p478 = por %p476, %p477
    %p479 = scmp.ne.s32.totalorder %s468, %s471
    %p480 = scmp.eq.s32.totalorder %s30, 3
    %p481 = por %p479, %p480
    %p482 = scmp.ne.s32.totalorder %s471, %s472
    %p483 = scmp.eq.s32.totalorder %s30, 0
    %p484 = por %p482, %p483
    %p485 = scmp.ne.s32.totalorder %s471, %s472
    %p486 = scmp.eq.s32.totalorder %s31, 3
    %p487 = por %p485, %p486
    %p489 = scmp.ne.s32.totalorder %s472, %s488
    %p490 = scmp.eq.s32.totalorder %s31, 0
    %p491 = por %p489, %p490
    %p492 = scmp.le.s32.totalorder 1, %s25
    %p493 = scmp.lt.s32.totalorder %s25, 5
    %p494 = pnand %p492, %p493
    %p495 = pneg %p494
    // Predicated region
    $region9: #{forward.1} parent=5 // pred_check
      _
    $region10: #{forward.1} parent=5 // pred_check_branch
      %497 = sbr.rel (%p494) target = $region12
    $region11: #{forward.1} parent=5 // pred_region
      %s498 = ssub.s32 %s25, 1
      // Predicated region
      $region13: #{forward.1} parent=11 // pred_check
        %p499 = pneg %p122
      $region14: #{forward.1} parent=11 // pred_check_branch
        %501 = sbr.rel (%p499) target = $region16
      $region15: #{forward.1} parent=11 // pred_region
        _
      $region16: #{forward.1} parent=11 // pred_fallthru
        _
      // Predicated region
      $region17: #{forward.1} parent=11 // pred_check
        %p502 = pneg %p143
      $region18: #{forward.1} parent=11 // pred_check_branch
        %504 = sbr.rel (%p502) target = $region20
      $region19: #{forward.1} parent=11 // pred_region
        _
      $region20: #{forward.1} parent=11 // pred_fallthru
        _
      // Predicated region
      $region21: #{forward.1} parent=11 // pred_check
        %p505 = pneg %p164
      $region22: #{forward.1} parent=11 // pred_check_branch
        %507 = sbr.rel (%p505) target = $region24
      $region23: #{forward.1} parent=11 // pred_region
        _
      $region24: #{forward.1} parent=11 // pred_fallthru
        _
      // Predicated region
      $region25: #{forward.1} parent=11 // pred_check
        %p508 = pneg %p185
      $region26: #{forward.1} parent=11 // pred_check_branch
        %510 = sbr.rel (%p508) target = $region28
      $region27: #{forward.1} parent=11 // pred_region
        _
      $region28: #{forward.1} parent=11 // pred_fallthru
        _
      // Predicated region
      $region29: #{forward.1} parent=11 // pred_check
        %p511 = pneg %p206
      $region30: #{forward.1} parent=11 // pred_check_branch
        %513 = sbr.rel (%p511) target = $region32
      $region31: #{forward.1} parent=11 // pred_region
        _
      $region32: #{forward.1} parent=11 // pred_fallthru
        _
      // Predicated region
      $region33: #{forward.1} parent=11 // pred_check
        %p514 = pneg %p227
      $region34: #{forward.1} parent=11 // pred_check_branch
        %516 = sbr.rel (%p514) target = $region36
      $region35: #{forward.1} parent=11 // pred_region
        _
      $region36: #{forward.1} parent=11 // pred_fallthru
        _
      // Predicated region
      $region37: #{forward.1} parent=11 // pred_check
        %p517 = pneg %p248
      $region38: #{forward.1} parent=11 // pred_check_branch
        %519 = sbr.rel (%p517) target = $region40
      $region39: #{forward.1} parent=11 // pred_region
        _
      $region40: #{forward.1} parent=11 // pred_fallthru
        _
      // Predicated region
      $region41: #{forward.1} parent=11 // pred_check
        %p520 = pneg %p269
      $region42: #{forward.1} parent=11 // pred_check_branch
        %522 = sbr.rel (%p520) target = $region44
      $region43: #{forward.1} parent=11 // pred_region
        _
      $region44: #{forward.1} parent=11 // pred_fallthru
        _
      // Predicated region
      $region45: #{forward.1} parent=11 // pred_check
        %p523 = pneg %p290
      $region46: #{forward.1} parent=11 // pred_check_branch
        %525 = sbr.rel (%p523) target = $region48
      $region47: #{forward.1} parent=11 // pred_region
        _
      $region48: #{forward.1} parent=11 // pred_fallthru
        _
      // Predicated region
      $region49: #{forward.1} parent=11 // pred_check
        %p526 = pneg %p311
      $region50: #{forward.1} parent=11 // pred_check_branch
        %528 = sbr.rel (%p526) target = $region52
      $region51: #{forward.1} parent=11 // pred_region
        _
      $region52: #{forward.1} parent=11 // pred_fallthru
        _
      // Predicated region
      $region53: #{forward.1} parent=11 // pred_check
        %p529 = pneg %p332
      $region54: #{forward.1} parent=11 // pred_check_branch
        %531 = sbr.rel (%p529) target = $region56
      $region55: #{forward.1} parent=11 // pred_region
        _
      $region56: #{forward.1} parent=11 // pred_fallthru
        _
      // Predicated region
      $region57: #{forward.1} parent=11 // pred_check
        %p532 = pneg %p353
      $region58: #{forward.1} parent=11 // pred_check_branch
        %534 = sbr.rel (%p532) target = $region60
      $region59: #{forward.1} parent=11 // pred_region
        _
      $region60: #{forward.1} parent=11 // pred_fallthru
        _
      // Predicated region
      $region61: #{forward.1} parent=11 // pred_check
        %p535 = pneg %p374
      $region62: #{forward.1} parent=11 // pred_check_branch
        %537 = sbr.rel (%p535) target = $region64
      $region63: #{forward.1} parent=11 // pred_region
        _
      $region64: #{forward.1} parent=11 // pred_fallthru
        _
      // Predicated region
      $region65: #{forward.1} parent=11 // pred_check
        %p538 = pneg %p395
      $region66: #{forward.1} parent=11 // pred_check_branch
        %540 = sbr.rel (%p538) target = $region68
      $region67: #{forward.1} parent=11 // pred_region
        _
      $region68: #{forward.1} parent=11 // pred_fallthru
        _
      // Predicated region
      $region69: #{forward.1} parent=11 // pred_check
        %p541 = pneg %p416
      $region70: #{forward.1} parent=11 // pred_check_branch
        %543 = sbr.rel (%p541) target = $region72
      $region71: #{forward.1} parent=11 // pred_region
        _
      $region72: #{forward.1} parent=11 // pred_fallthru
        _
      // Predicated region
      $region73: #{forward.1} parent=11 // pred_check
        %p544 = pneg %p437
      $region74: #{forward.1} parent=11 // pred_check_branch
        %546 = sbr.rel (%p544) target = $region76
      $region75: #{forward.1} parent=11 // pred_region
        _
      $region76: #{forward.1} parent=11 // pred_fallthru
        _
      // Predicated region
      $region77: #{forward.1} parent=11 // pred_check
        %p547 = pneg %p458
      $region78: #{forward.1} parent=11 // pred_check_branch
        %549 = sbr.rel (%p547) target = $region80
      $region79: #{forward.1} parent=11 // pred_region
        _
      $region80: #{forward.1} parent=11 // pred_fallthru
        _
    $region12: #{forward.1} parent=5 // pred_fallthru
      _
    %p550 = scmp.lt.s32.totalorder %s25, 4
    // Predicated region
    $region81: #{forward.1} parent=5 // pred_check
      %p551 = pneg %p550
    $region82: #{forward.1} parent=5 // pred_check_branch
      %553 = sbr.rel (%p551) target = $region84
    $region83: #{forward.1} parent=5 // pred_region
      // Predicated region
      $region85: #{forward.1} parent=83 // pred_check
        %p554 = pneg %p45
      $region86: #{forward.1} parent=83 // pred_check_branch
        %556 = sbr.rel (%p554) target = $region88
      $region87: #{forward.1} parent=83 // pred_region
        %p557 = scmp.lt.s32.totalorder %s25, 3
        %s558 = scalar_select %p557, %s25, 3
        %s559 = smul.addr %s558, 8
        %s560 = smul.addr %s559, 8
        %s561 = scalar_lea.vmem %s0, %s560
      $region88: #{forward.1} parent=83 // pred_fallthru
        _
      // Predicated region
      $region89: #{forward.1} parent=83 // pred_check
        %p562 = pneg %p95
      $region90: #{forward.1} parent=83 // pred_check_branch
        %564 = sbr.rel (%p562) target = $region92
      $region91: #{forward.1} parent=83 // pred_region
        %p565 = scmp.lt.s32.totalorder %s25, 0
        %s566 = ssub.s32 0, %s25
        %s567 = scalar_select %p565, %s566, %s25
        %s568 = sand.u32 %s567, 3
        %s569 = ssub.s32 0, %s568
        %s570 = scalar_select %p565, %s569, %s568
        %p571 = scmp.ne.s32.totalorder %s570, 0
        %p572 = scmp.lt.s32.totalorder %s570, 0
        %p573 = pnand %p572, %p571
        %p574 = pneg %p573
        %s575 = sadd.s32 %s570, 4
        %s576 = scalar_select %p574, %s575, %s570
        %p577 = scmp.lt.s32.totalorder %s576, 3
        %s578 = scalar_select %p577, %s576, 3
        %s579 = smul.addr %s578, 8
        %s580 = smul.addr %s579, 8
        %s581 = scalar_lea.vmem %s1, %s580
        %p582 = scmp.lt.s32.totalorder %s25, 0
        %s583 = ssub.s32 0, %s25
        %s584 = scalar_select %p582, %s583, %s25
        %s585 = sand.u32 %s584, 3
        %s586 = ssub.s32 0, %s585
        %s587 = scalar_select %p582, %s586, %s585
        %p588 = scmp.ne.s32.totalorder %s587, 0
        %p589 = scmp.lt.s32.totalorder %s587, 0
        %p590 = pnand %p589, %p588
        %p591 = pneg %p590
        %s592 = sadd.s32 %s587, 4
        %s593 = scalar_select %p591, %s592, %s587
      $region92: #{forward.1} parent=83 // pred_fallthru
        _
    $region84: #{forward.1} parent=5 // pred_fallthru
      _
    %p594 = scmp.le.s32.totalorder 1, %s25
    %p595 = scmp.lt.s32.totalorder %s25, 5
    %p596 = pnand %p594, %p595
    %p597 = pneg %p596
    // Predicated region
    $region93: #{forward.1} parent=5 // pred_check
      _
    $region94: #{forward.1} parent=5 // pred_check_branch
      %599 = sbr.rel (%p596) target = $region96
    $region95: #{forward.1} parent=5 // pred_region
      %s600 = ssub.s32 %s25, 1
      %p601 = scmp.lt.s32.totalorder %s30, 3
      %s602 = scalar_select %p601, %s30, 3
      %s603 = smul.addr %s602, 8
      %s604 = smul.addr %s603, 8
      %s605 = scalar_lea.vmem %s0, %s604
      %p606 = pneg %p51
      %p607 = pneg %p48
      %p608 = scmp.lt.s32.totalorder %s30, 0
      %s609 = ssub.s32 0, %s30
      %s610 = scalar_select %p608, %s609, %s30
      %s611 = sand.u32 %s610, 3
      %s612 = ssub.s32 0, %s611
      %s613 = scalar_select %p608, %s612, %s611
      %p614 = scmp.ne.s32.totalorder %s613, 0
      %p615 = scmp.lt.s32.totalorder %s613, 0
      %p616 = pnand %p615, %p614
      %p617 = pneg %p616
      %s618 = sadd.s32 %s613, 4
      %s619 = scalar_select %p617, %s618, %s613
      %p620 = scmp.lt.s32.totalorder %s619, 3
      %s621 = scalar_select %p620, %s619, 3
      %s622 = smul.addr %s621, 8
      %s623 = smul.addr %s622, 8
      %s624 = scalar_lea.vmem %s1, %s623
      %p625 = pneg %p101
      %p626 = pneg %p98
      %p627 = pneg %p122
      %p628 = pneg %p119
      %p629 = pneg %p143
      %p630 = pneg %p140
      %p631 = pneg %p164
      %p632 = pneg %p161
      %p633 = pneg %p185
      %p634 = pneg %p182
      %p635 = pneg %p206
      %p636 = pneg %p203
      %p637 = pneg %p227
      %p638 = pneg %p224
      %p639 = pneg %p248
      %p640 = pneg %p245
      %p641 = pneg %p269
      %p642 = pneg %p266
      %p643 = pneg %p290
      %p644 = pneg %p287
      %p645 = pneg %p311
      %p646 = pneg %p308
      %p647 = pneg %p332
      %p648 = pneg %p329
      %p649 = pneg %p353
      %p650 = pneg %p350
      %p651 = pneg %p374
      %p652 = pneg %p371
      %p653 = pneg %p395
      %p654 = pneg %p392
      %p655 = pneg %p416
      %p656 = pneg %p413
      %p657 = pneg %p437
      %p658 = pneg %p434
      %p659 = pneg %p458
      %p660 = pneg %p455
      %p661 = pneg %p484
      %p662 = pneg %p481
      %p663 = scmp.lt.s32.totalorder %s30, 3
      %s664 = scalar_select %p663, %s30, 3
      %s665 = smul.addr %s664, 8
      %s666 = smul.addr %s665, 8
      %s667 = scalar_lea.vmem %s19, %s666
      %p668 = scmp.lt.s32.totalorder %s30, 3
      %s669 = scalar_select %p668, %s30, 3
      %s670 = smul.addr %s669, 8
      %s671 = smul.addr %s670, 8
      %s672 = scalar_lea.vmem %s0, %s671
      %p673 = scmp.lt.s32.totalorder %s30, 0
      %s674 = ssub.s32 0, %s30
      %s675 = scalar_select %p673, %s674, %s30
      %s676 = sand.u32 %s675, 3
      %s677 = ssub.s32 0, %s676
      %s678 = scalar_select %p673, %s677, %s676
      %p679 = scmp.ne.s32.totalorder %s678, 0
      %p680 = scmp.lt.s32.totalorder %s678, 0
      %p681 = pnand %p680, %p679
      %p682 = pneg %p681
      %s683 = sadd.s32 %s678, 4
      %s684 = scalar_select %p682, %s683, %s678
      %p685 = scmp.lt.s32.totalorder %s684, 3
      %s686 = scalar_select %p685, %s684, 3
      %s687 = smul.addr %s686, 8
      %s688 = smul.addr %s687, 8
      %s689 = scalar_lea.vmem %s1, %s688
      %p690 = scmp.lt.s32.totalorder %s30, 0
      %s691 = ssub.s32 0, %s30
      %s692 = scalar_select %p690, %s691, %s30
      %s693 = sand.u32 %s692, 3
      %s694 = ssub.s32 0, %s693
      %s695 = scalar_select %p690, %s694, %s693
      %p696 = scmp.ne.s32.totalorder %s695, 0
      %p697 = scmp.lt.s32.totalorder %s695, 0
      %p698 = pnand %p697, %p696
      %p699 = pneg %p698
      %s700 = sadd.s32 %s695, 4
      %s701 = scalar_select %p699, %s700, %s695
      %p702 = scmp.lt.s32.totalorder %s30, 3
      %s703 = scalar_select %p702, %s30, 3
      %s704 = smul.addr %s703, 8
      %s705 = smul.addr %s704, 8
      %s706 = scalar_lea.vmem %s19, %s705
      %v707 = vld [vmem:[%s672] sm:$0xff]
      %v708 = vld [vmem:[%s672 + $0x8] sm:$0xff]
      %v709 = vld [vmem:[%s672 + $0x10] sm:$0xff]
      %v710 = vld [vmem:[%s672 + $0x18] sm:$0xff]
      %v711 = vld [vmem:[%s672 + $0x20] sm:$0xff]
      %v712 = vld [vmem:[%s672 + $0x28] sm:$0xff]
      %v713 = vld [vmem:[%s672 + $0x30] sm:$0xff]
      %v714 = vld [vmem:[%s672 + $0x38] sm:$0xff]
      %v715 = vld [vmem:[%s6] sm:$0xff]
      %v716 = vld [vmem:[%s6 + $0x8] sm:$0xff]
      %v717 = vld [vmem:[%s6 + $0x10] sm:$0xff]
      %v718 = vld [vmem:[%s6 + $0x18] sm:$0xff]
      %v719 = vld [vmem:[%s6 + $0x20] sm:$0xf]
      %vm720 = vcmask 293888
      %v722 = vsel %vm720, %v707, 0
      %v725 = vsel %vm720, %v708, 0
      %v728 = vsel %vm720, %v709, 0
      %v731 = vsel %vm720, %v710, 0
      %v734 = vsel %vm720, %v711, 0
      %v737 = vsel %vm720, %v712, 0
      %v740 = vsel %vm720, %v713, 0
      %v743 = vsel %vm720, %v714, 0
      %vm745 = vcmask 1043456
      %v747 = vsel %vm745, %v719, 0
      %749 = vmatpush.msra.mxu0 0.0
      %750 = vmatpush.msra.mxu0 0.0
      %751 = vmatpush.msra.mxu0 0.0
      %752 = vmatpush.msra.mxu0 0.0
      %753 = vmatpush.msra.mxu0 0.0
      %754 = vmatpush.msra.mxu0 0.0
      %755 = vmatpush.msra.mxu0 0.0
      %756 = vmatpush.msra.mxu0 0.0
      %757 = vmatpush.msra.mxu0 0.0
      %758 = vmatpush.msra.mxu0 0.0
      %759 = vmatpush.msra.mxu0 0.0
      %760 = vmatpush.msra.mxu0 %v747
      %761 = vmatpush.msra.mxu0 %v718
      %762 = vmatpush.msra.mxu0 %v717
      %763 = vmatpush.msra.mxu0 %v716
      %764 = vmatpush.msra.mxu0 %v715
      %765 = vmatmul.f32.gmra.mxu0 %v722
      %v766 = vpop.f32.mrf.mxu0
      %v767 = vadd.f32 0.0, %v766
      %768 = vmatmul.f32.gmra.mxu0 %v725
      %v769 = vpop.f32.mrf.mxu0
      %v770 = vadd.f32 0.0, %v769
      %771 = vmatmul.f32.gmra.mxu0 %v728
      %v772 = vpop.f32.mrf.mxu0
      %v773 = vadd.f32 0.0, %v772
      %774 = vmatmul.f32.gmra.mxu0 %v731
      %v775 = vpop.f32.mrf.mxu0
      %v776 = vadd.f32 0.0, %v775
      %777 = vmatmul.f32.gmra.mxu0 %v734
      %v778 = vpop.f32.mrf.mxu0
      %v779 = vadd.f32 0.0, %v778
      %780 = vmatmul.f32.gmra.mxu0 %v737
      %v781 = vpop.f32.mrf.mxu0
      %v782 = vadd.f32 0.0, %v781
      %783 = vmatmul.f32.gmra.mxu0 %v740
      %v784 = vpop.f32.mrf.mxu0
      %v785 = vadd.f32 0.0, %v784
      %786 = vmatmul.f32.gmra.mxu0 %v743
      %v787 = vpop.f32.mrf.mxu0
      %v788 = vadd.f32 0.0, %v787
      %789 = vdwg.mxu0
      %v790 = vmax.f32 %v767, 0.0
      %v791 = vmax.f32 %v770, 0.0
      %v792 = vmax.f32 %v773, 0.0
      %v793 = vmax.f32 %v776, 0.0
      %v794 = vmax.f32 %v779, 0.0
      %v795 = vmax.f32 %v782, 0.0
      %v796 = vmax.f32 %v785, 0.0
      %v797 = vmax.f32 %v788, 0.0
      %v798 = vld [vmem:[%s7] sm:$0xff]
      %vm799 = vcmask 64512
      %v801 = vsel %vm799, %v790, 0
      %v804 = vsel %vm799, %v791, 0
      %v807 = vsel %vm799, %v792, 0
      %v810 = vsel %vm799, %v793, 0
      %v813 = vsel %vm799, %v794, 0
      %v816 = vsel %vm799, %v795, 0
      %v819 = vsel %vm799, %v796, 0
      %v822 = vsel %vm799, %v797, 0
      %824 = vmatpush.msra.mxu0 0.0
      %825 = vmatpush.msra.mxu0 0.0
      %826 = vmatpush.msra.mxu0 0.0
      %827 = vmatpush.msra.mxu0 0.0
      %828 = vmatpush.msra.mxu0 0.0
      %829 = vmatpush.msra.mxu0 0.0
      %830 = vmatpush.msra.mxu0 0.0
      %831 = vmatpush.msra.mxu0 0.0
      %832 = vmatpush.msra.mxu0 0.0
      %833 = vmatpush.msra.mxu0 0.0
      %834 = vmatpush.msra.mxu0 0.0
      %835 = vmatpush.msra.mxu0 0.0
      %836 = vmatpush.msra.mxu0 0.0
      %837 = vmatpush.msra.mxu0 0.0
      %838 = vmatpush.msra.mxu0 0.0
      %839 = vmatpush.msra.mxu0 %v798
      %840 = vmatmul.f32.gmra.mxu0 %v801
      %v841 = vpop.f32.mrf.mxu0
      %v842 = vadd.f32 0.0, %v841
      %843 = vmatmul.f32.gmra.mxu0 %v804
      %v844 = vpop.f32.mrf.mxu0
      %v845 = vadd.f32 0.0, %v844
      %846 = vmatmul.f32.gmra.mxu0 %v807
      %v847 = vpop.f32.mrf.mxu0
      %v848 = vadd.f32 0.0, %v847
      %849 = vmatmul.f32.gmra.mxu0 %v810
      %v850 = vpop.f32.mrf.mxu0
      %v851 = vadd.f32 0.0, %v850
      %852 = vmatmul.f32.gmra.mxu0 %v813
      %v853 = vpop.f32.mrf.mxu0
      %v854 = vadd.f32 0.0, %v853
      %855 = vmatmul.f32.gmra.mxu0 %v816
      %v856 = vpop.f32.mrf.mxu0
      %v857 = vadd.f32 0.0, %v856
      %858 = vmatmul.f32.gmra.mxu0 %v819
      %v859 = vpop.f32.mrf.mxu0
      %v860 = vadd.f32 0.0, %v859
      %861 = vmatmul.f32.gmra.mxu0 %v822
      %v862 = vpop.f32.mrf.mxu0
      %v863 = vadd.f32 0.0, %v862
      %864 = vdwg.mxu0
      %v865 = vld [vmem:[%s689] sm:$0xff]
      %v866 = vld [vmem:[%s689 + $0x8] sm:$0xff]
      %v867 = vld [vmem:[%s689 + $0x10] sm:$0xff]
      %v868 = vld [vmem:[%s689 + $0x18] sm:$0xff]
      %v869 = vld [vmem:[%s689 + $0x20] sm:$0xff]
      %v870 = vld [vmem:[%s689 + $0x28] sm:$0xff]
      %v871 = vld [vmem:[%s689 + $0x30] sm:$0xff]
      %v872 = vld [vmem:[%s689 + $0x38] sm:$0xff]
      %v874 = vsel %vm720, %v865, 0
      %v877 = vsel %vm720, %v866, 0
      %v880 = vsel %vm720, %v867, 0
      %v883 = vsel %vm720, %v868, 0
      %v886 = vsel %vm720, %v869, 0
      %v889 = vsel %vm720, %v870, 0
      %v892 = vsel %vm720, %v871, 0
      %v895 = vsel %vm720, %v872, 0
      %897 = vmatpush.msra.mxu0 0.0
      %898 = vmatpush.msra.mxu0 0.0
      %899 = vmatpush.msra.mxu0 0.0
      %900 = vmatpush.msra.mxu0 0.0
      %901 = vmatpush.msra.mxu0 0.0
      %902 = vmatpush.msra.mxu0 0.0
      %903 = vmatpush.msra.mxu0 0.0
      %904 = vmatpush.msra.mxu0 0.0
      %905 = vmatpush.msra.mxu0 0.0
      %906 = vmatpush.msra.mxu0 0.0
      %907 = vmatpush.msra.mxu0 0.0
      %908 = vmatpush.msra.mxu0 %v747
      %909 = vmatpush.msra.mxu0 %v718
      %910 = vmatpush.msra.mxu0 %v717
      %911 = vmatpush.msra.mxu0 %v716
      %912 = vmatpush.msra.mxu0 %v715
      %913 = vmatmul.f32.gmra.mxu0 %v874
      %v914 = vpop.f32.mrf.mxu0
      %v915 = vadd.f32 0.0, %v914
      %916 = vmatmul.f32.gmra.mxu0 %v877
      %v917 = vpop.f32.mrf.mxu0
      %v918 = vadd.f32 0.0, %v917
      %919 = vmatmul.f32.gmra.mxu0 %v880
      %v920 = vpop.f32.mrf.mxu0
      %v921 = vadd.f32 0.0, %v920
      %922 = vmatmul.f32.gmra.mxu0 %v883
      %v923 = vpop.f32.mrf.mxu0
      %v924 = vadd.f32 0.0, %v923
      %925 = vmatmul.f32.gmra.mxu0 %v886
      %v926 = vpop.f32.mrf.mxu0
      %v927 = vadd.f32 0.0, %v926
      %928 = vmatmul.f32.gmra.mxu0 %v889
      %v929 = vpop.f32.mrf.mxu0
      %v930 = vadd.f32 0.0, %v929
      %931 = vmatmul.f32.gmra.mxu0 %v892
      %v932 = vpop.f32.mrf.mxu0
      %v933 = vadd.f32 0.0, %v932
      %934 = vmatmul.f32.gmra.mxu0 %v895
      %v935 = vpop.f32.mrf.mxu0
      %v936 = vadd.f32 0.0, %v935
      %937 = vdwg.mxu0
      %v938 = vmax.f32 %v915, 0.0
      %v939 = vmax.f32 %v918, 0.0
      %v940 = vmax.f32 %v921, 0.0
      %v941 = vmax.f32 %v924, 0.0
      %v942 = vmax.f32 %v927, 0.0
      %v943 = vmax.f32 %v930, 0.0
      %v944 = vmax.f32 %v933, 0.0
      %v945 = vmax.f32 %v936, 0.0
      %v947 = vsel %vm799, %v938, 0
      %v950 = vsel %vm799, %v939, 0
      %v953 = vsel %vm799, %v940, 0
      %v956 = vsel %vm799, %v941, 0
      %v959 = vsel %vm799, %v942, 0
      %v962 = vsel %vm799, %v943, 0
      %v965 = vsel %vm799, %v944, 0
      %v968 = vsel %vm799, %v945, 0
      %970 = vmatpush.msra.mxu0 0.0
      %971 = vmatpush.msra.mxu0 0.0
      %972 = vmatpush.msra.mxu0 0.0
      %973 = vmatpush.msra.mxu0 0.0
      %974 = vmatpush.msra.mxu0 0.0
      %975 = vmatpush.msra.mxu0 0.0
      %976 = vmatpush.msra.mxu0 0.0
      %977 = vmatpush.msra.mxu0 0.0
      %978 = vmatpush.msra.mxu0 0.0
      %979 = vmatpush.msra.mxu0 0.0
      %980 = vmatpush.msra.mxu0 0.0
      %981 = vmatpush.msra.mxu0 0.0
      %982 = vmatpush.msra.mxu0 0.0
      %983 = vmatpush.msra.mxu0 0.0
      %984 = vmatpush.msra.mxu0 0.0
      %985 = vmatpush.msra.mxu0 %v798
      %986 = vmatmul.f32.gmra.mxu0 %v947
      %v987 = vpop.f32.mrf.mxu0
      %v988 = vadd.f32 0.0, %v987
      %989 = vmatmul.f32.gmra.mxu0 %v950
      %v990 = vpop.f32.mrf.mxu0
      %v991 = vadd.f32 0.0, %v990
      %992 = vmatmul.f32.gmra.mxu0 %v953
      %v993 = vpop.f32.mrf.mxu0
      %v994 = vadd.f32 0.0, %v993
      %995 = vmatmul.f32.gmra.mxu0 %v956
      %v996 = vpop.f32.mrf.mxu0
      %v997 = vadd.f32 0.0, %v996
      %998 = vmatmul.f32.gmra.mxu0 %v959
      %v999 = vpop.f32.mrf.mxu0
      %v1000 = vadd.f32 0.0, %v999
      %1001 = vmatmul.f32.gmra.mxu0 %v962
      %v1002 = vpop.f32.mrf.mxu0
      %v1003 = vadd.f32 0.0, %v1002
      %1004 = vmatmul.f32.gmra.mxu0 %v965
      %v1005 = vpop.f32.mrf.mxu0
      %v1006 = vadd.f32 0.0, %v1005
      %1007 = vmatmul.f32.gmra.mxu0 %v968
      %v1008 = vpop.f32.mrf.mxu0
      %v1009 = vadd.f32 0.0, %v1008
      %1010 = vdwg.mxu0
      %v1011 = vadd.f32 %v842, %v988
      %v1012 = vadd.f32 %v845, %v991
      %v1013 = vadd.f32 %v848, %v994
      %v1014 = vadd.f32 %v851, %v997
      %v1015 = vadd.f32 %v854, %v1000
      %v1016 = vadd.f32 %v857, %v1003
      %v1017 = vadd.f32 %v860, %v1006
      %v1018 = vadd.f32 %v863, %v1009
      %v1019 = vld [vmem:[%s8] sm:$0x1]
      %v1020 = vld [vmem:[%s9] sm:$0x1]
      %v1021 = vsel %vm799, %v1011, 0.0
      %1022 = vadd.xlane.f32.xlu0 %v1021
      %v1023 = vpop.xlane.xlu0 %1022
      %v1024 = vsel %vm799, %v1012, 0.0
      %1025 = vadd.xlane.f32.xlu0 %v1024
      %v1026 = vpop.xlane.xlu0 %1025
      %v1027 = vsel %vm799, %v1013, 0.0
      %1028 = vadd.xlane.f32.xlu0 %v1027
      %v1029 = vpop.xlane.xlu0 %1028
      %v1030 = vsel %vm799, %v1014, 0.0
      %1031 = vadd.xlane.f32.xlu0 %v1030
      %v1032 = vpop.xlane.xlu0 %1031
      %v1033 = vsel %vm799, %v1015, 0.0
      %1034 = vadd.xlane.f32.xlu0 %v1033
      %v1035 = vpop.xlane.xlu0 %1034
      %v1036 = vsel %vm799, %v1016, 0.0
      %1037 = vadd.xlane.f32.xlu0 %v1036
      %v1038 = vpop.xlane.xlu0 %1037
      %v1039 = vsel %vm799, %v1017, 0.0
      %1040 = vadd.xlane.f32.xlu0 %v1039
      %v1041 = vpop.xlane.xlu0 %1040
      %v1042 = vsel %vm799, %v1018, 0.0
      %1043 = vadd.xlane.f32.xlu0 %v1042
      %v1044 = vpop.xlane.xlu0 %1043
      %v1045 = vrcp.pop 8.0
      %v1046 = vmul.f32 8.0, %v1045
      %v1047 = vsub.f32 1.0, %v1046
      %v1048 = vmul.f32 %v1045, %v1047
      %v1049 = vadd.f32 %v1045, %v1048
      %vm1050 = vweird.f32 %v1045
      %v1051 = vsel %vm1050, %v1045, %v1049
      %v1052 = vmul.f32 %v1023, %v1051
      %v1053 = vmul.f32 %v1026, %v1051
      %v1054 = vmul.f32 %v1029, %v1051
      %v1055 = vmul.f32 %v1032, %v1051
      %v1056 = vmul.f32 %v1035, %v1051
      %v1057 = vmul.f32 %v1038, %v1051
      %v1058 = vmul.f32 %v1041, %v1051
      %v1059 = vmul.f32 %v1044, %v1051
      %v1060 = vsub.f32 %v1011, %v1052
      %v1061 = vsub.f32 %v1012, %v1053
      %v1062 = vsub.f32 %v1013, %v1054
      %v1063 = vsub.f32 %v1014, %v1055
      %v1064 = vsub.f32 %v1015, %v1056
      %v1065 = vsub.f32 %v1016, %v1057
      %v1066 = vsub.f32 %v1017, %v1058
      %v1067 = vsub.f32 %v1018, %v1059
      %v1068 = vmul.f32 %v1060, %v1060
      %v1069 = vmul.f32 %v1061, %v1061
      %v1070 = vmul.f32 %v1062, %v1062
      %v1071 = vmul.f32 %v1063, %v1063
      %v1072 = vmul.f32 %v1064, %v1064
      %v1073 = vmul.f32 %v1065, %v1065
      %v1074 = vmul.f32 %v1066, %v1066
      %v1075 = vmul.f32 %v1067, %v1067
      %v1076 = vsel %vm799, %v1068, 0.0
      %1077 = vadd.xlane.f32.xlu0 %v1076
      %v1078 = vpop.xlane.xlu0 %1077
      %v1079 = vsel %vm799, %v1069, 0.0
      %1080 = vadd.xlane.f32.xlu0 %v1079
      %v1081 = vpop.xlane.xlu0 %1080
      %v1082 = vsel %vm799, %v1070, 0.0
      %1083 = vadd.xlane.f32.xlu0 %v1082
      %v1084 = vpop.xlane.xlu0 %1083
      %v1085 = vsel %vm799, %v1071, 0.0
      %1086 = vadd.xlane.f32.xlu0 %v1085
      %v1087 = vpop.xlane.xlu0 %1086
      %v1088 = vsel %vm799, %v1072, 0.0
      %1089 = vadd.xlane.f32.xlu0 %v1088
      %v1090 = vpop.xlane.xlu0 %1089
      %v1091 = vsel %vm799, %v1073, 0.0
      %1092 = vadd.xlane.f32.xlu0 %v1091
      %v1093 = vpop.xlane.xlu0 %1092
      %v1094 = vsel %vm799, %v1074, 0.0
      %1095 = vadd.xlane.f32.xlu0 %v1094
      %v1096 = vpop.xlane.xlu0 %1095
      %v1097 = vsel %vm799, %v1075, 0.0
      %1098 = vadd.xlane.f32.xlu0 %v1097
      %v1099 = vpop.xlane.xlu0 %1098
      %v1100 = vmul.f32 %v1078, %v1051
      %v1101 = vmul.f32 %v1081, %v1051
      %v1102 = vmul.f32 %v1084, %v1051
      %v1103 = vmul.f32 %v1087, %v1051
      %v1104 = vmul.f32 %v1090, %v1051
      %v1105 = vmul.f32 %v1093, %v1051
      %v1106 = vmul.f32 %v1096, %v1051
      %v1107 = vmul.f32 %v1099, %v1051
      %v1108 = vadd.f32 %v1100, 1e-05
      %v1109 = vadd.f32 %v1101, 1e-05
      %v1110 = vadd.f32 %v1102, 1e-05
      %v1111 = vadd.f32 %v1103, 1e-05
      %v1112 = vadd.f32 %v1104, 1e-05
      %v1113 = vadd.f32 %v1105, 1e-05
      %v1114 = vadd.f32 %v1106, 1e-05
      %v1115 = vadd.f32 %v1107, 1e-05
      %v1116 = vrsqrt.pop %v1108
      %v1117 = vmul.f32 %v1116, %v1108
      %v1118 = vmul.f32 %v1117, %v1116
      %v1119 = vmul.f32 0.5, %v1118
      %v1120 = vsub.f32 1.5, %v1119
      %v1121 = vmul.f32 %v1116, %v1120
      %vm1122 = vweird.f32 %v1108
      %vm1123 = vweird.f32 %v1116
      %vm1124 = vmor %vm1122, %vm1123
      %v1125 = vsel %vm1124, %v1116, %v1121
      %v1126 = vrsqrt.pop %v1109
      %v1127 = vmul.f32 %v1126, %v1109
      %v1128 = vmul.f32 %v1127, %v1126
      %v1129 = vmul.f32 0.5, %v1128
      %v1130 = vsub.f32 1.5, %v1129
      %v1131 = vmul.f32 %v1126, %v1130
      %vm1132 = vweird.f32 %v1109
      %vm1133 = vweird.f32 %v1126
      %vm1134 = vmor %vm1132, %vm1133
      %v1135 = vsel %vm1134, %v1126, %v1131
      %v1136 = vrsqrt.pop %v1110
      %v1137 = vmul.f32 %v1136, %v1110
      %v1138 = vmul.f32 %v1137, %v1136
      %v1139 = vmul.f32 0.5, %v1138
      %v1140 = vsub.f32 1.5, %v1139
      %v1141 = vmul.f32 %v1136, %v1140
      %vm1142 = vweird.f32 %v1110
      %vm1143 = vweird.f32 %v1136
      %vm1144 = vmor %vm1142, %vm1143
      %v1145 = vsel %vm1144, %v1136, %v1141
      %v1146 = vrsqrt.pop %v1111
      %v1147 = vmul.f32 %v1146, %v1111
      %v1148 = vmul.f32 %v1147, %v1146
      %v1149 = vmul.f32 0.5, %v1148
      %v1150 = vsub.f32 1.5, %v1149
      %v1151 = vmul.f32 %v1146, %v1150
      %vm1152 = vweird.f32 %v1111
      %vm1153 = vweird.f32 %v1146
      %vm1154 = vmor %vm1152, %vm1153
      %v1155 = vsel %vm1154, %v1146, %v1151
      %v1156 = vrsqrt.pop %v1112
      %v1157 = vmul.f32 %v1156, %v1112
      %v1158 = vmul.f32 %v1157, %v1156
      %v1159 = vmul.f32 0.5, %v1158
      %v1160 = vsub.f32 1.5, %v1159
      %v1161 = vmul.f32 %v1156, %v1160
      %vm1162 = vweird.f32 %v1112
      %vm1163 = vweird.f32 %v1156
      %vm1164 = vmor %vm1162, %vm1163
      %v1165 = vsel %vm1164, %v1156, %v1161
      %v1166 = vrsqrt.pop %v1113
      %v1167 = vmul.f32 %v1166, %v1113
      %v1168 = vmul.f32 %v1167, %v1166
      %v1169 = vmul.f32 0.5, %v1168
      %v1170 = vsub.f32 1.5, %v1169
      %v1171 = vmul.f32 %v1166, %v1170
      %vm1172 = vweird.f32 %v1113
      %vm1173 = vweird.f32 %v1166
      %vm1174 = vmor %vm1172, %vm1173
      %v1175 = vsel %vm1174, %v1166, %v1171
      %v1176 = vrsqrt.pop %v1114
      %v1177 = vmul.f32 %v1176, %v1114
      %v1178 = vmul.f32 %v1177, %v1176
      %v1179 = vmul.f32 0.5, %v1178
      %v1180 = vsub.f32 1.5, %v1179
      %v1181 = vmul.f32 %v1176, %v1180
      %vm1182 = vweird.f32 %v1114
      %vm1183 = vweird.f32 %v1176
      %vm1184 = vmor %vm1182, %vm1183
      %v1185 = vsel %vm1184, %v1176, %v1181
      %v1186 = vrsqrt.pop %v1115
      %v1187 = vmul.f32 %v1186, %v1115
      %v1188 = vmul.f32 %v1187, %v1186
      %v1189 = vmul.f32 0.5, %v1188
      %v1190 = vsub.f32 1.5, %v1189
      %v1191 = vmul.f32 %v1186, %v1190
      %vm1192 = vweird.f32 %v1115
      %vm1193 = vweird.f32 %v1186
      %vm1194 = vmor %vm1192, %vm1193
      %v1195 = vsel %vm1194, %v1186, %v1191
      %v1196 = vmul.f32 %v1060, %v1125
      %v1197 = vmul.f32 %v1061, %v1135
      %v1198 = vmul.f32 %v1062, %v1145
      %v1199 = vmul.f32 %v1063, %v1155
      %v1200 = vmul.f32 %v1064, %v1165
      %v1201 = vmul.f32 %v1065, %v1175
      %v1202 = vmul.f32 %v1066, %v1185
      %v1203 = vmul.f32 %v1067, %v1195
      %v1205 = vperm.slane %v1019, 0
      %v1207 = vmul.f32 %v1196, %v1205
      %v1208 = vmul.f32 %v1197, %v1205
      %v1209 = vmul.f32 %v1198, %v1205
      %v1210 = vmul.f32 %v1199, %v1205
      %v1211 = vmul.f32 %v1200, %v1205
      %v1212 = vmul.f32 %v1201, %v1205
      %v1213 = vmul.f32 %v1202, %v1205
      %v1214 = vmul.f32 %v1203, %v1205
      %v1216 = vperm.slane %v1020, 0
      %v1218 = vadd.f32 %v1207, %v1216
      %v1219 = vadd.f32 %v1208, %v1216
      %v1220 = vadd.f32 %v1209, %v1216
      %v1221 = vadd.f32 %v1210, %v1216
      %v1222 = vadd.f32 %v1211, %v1216
      %v1223 = vadd.f32 %v1212, %v1216
      %v1224 = vadd.f32 %v1213, %v1216
      %v1225 = vadd.f32 %v1214, %v1216
      %v1226 = vld [vmem:[%s2] sm:$0xff]
      %v1227 = vld [vmem:[%s2 + $0x8] sm:$0xff]
      %v1228 = vld [vmem:[%s2 + $0x10] sm:$0xff]
      %v1229 = vld [vmem:[%s2 + $0x18] sm:$0xff]
      %v1230 = vld [vmem:[%s2 + $0x20] sm:$0xff]
      %v1231 = vld [vmem:[%s2 + $0x28] sm:$0xff]
      %v1232 = vld [vmem:[%s2 + $0x30] sm:$0xff]
      %v1233 = vld [vmem:[%s2 + $0x38] sm:$0xff]
      %v1234 = vld [vmem:[%s3] sm:$0xff]
      %v1235 = vld [vmem:[%s3 + $0x8] sm:$0xff]
      %v1236 = vld [vmem:[%s3 + $0x10] sm:$0xff]
      %v1237 = vld [vmem:[%s3 + $0x18] sm:$0xff]
      %v1238 = vld [vmem:[%s3 + $0x20] sm:$0xff]
      %v1239 = vld [vmem:[%s3 + $0x28] sm:$0xff]
      %v1240 = vld [vmem:[%s3 + $0x30] sm:$0xff]
      %v1241 = vld [vmem:[%s3 + $0x38] sm:$0xff]
      %v1242 = vld [vmem:[%s4] sm:$0x1]
      %v1243 = vld [vmem:[%s5] sm:$0x1]
      %v1244 = vsub.f32 %v1226, 2.0
      %v1245 = vsub.f32 %v1227, 2.0
      %v1246 = vsub.f32 %v1228, 2.0
      %v1247 = vsub.f32 %v1229, 2.0
      %v1248 = vsub.f32 %v1230, 2.0
      %v1249 = vsub.f32 %v1231, 2.0
      %v1250 = vsub.f32 %v1232, 2.0
      %v1251 = vsub.f32 %v1233, 2.0
      %v1253 = vperm.slane %v1242, 0
      %1256 = vset.pattern.permute.xlu0 0
      %1257 = vperm.xlu0 %1256, %v1244
      %v1258 = vpop.permute.xlu0 %1257
      %1261 = vset.pattern.permute.xlu0 0
      %1262 = vperm.xlu0 %1261, %v1245
      %v1263 = vpop.permute.xlu0 %1262
      %1266 = vset.pattern.permute.xlu0 0
      %1267 = vperm.xlu0 %1266, %v1246
      %v1268 = vpop.permute.xlu0 %1267
      %1271 = vset.pattern.permute.xlu0 0
      %1272 = vperm.xlu0 %1271, %v1247
      %v1273 = vpop.permute.xlu0 %1272
      %1276 = vset.pattern.permute.xlu0 0
      %1277 = vperm.xlu0 %1276, %v1248
      %v1278 = vpop.permute.xlu0 %1277
      %1281 = vset.pattern.permute.xlu0 0
      %1282 = vperm.xlu0 %1281, %v1249
      %v1283 = vpop.permute.xlu0 %1282
      %1286 = vset.pattern.permute.xlu0 0
      %1287 = vperm.xlu0 %1286, %v1250
      %v1288 = vpop.permute.xlu0 %1287
      %1291 = vset.pattern.permute.xlu0 0
      %1292 = vperm.xlu0 %1291, %v1251
      %v1293 = vpop.permute.xlu0 %1292
      %vm1295 = vcmp.ge.f32.partialorder %v1253, %v1258
      %vm1296 = vcmp.ge.f32.partialorder %v1253, %v1263
      %vm1297 = vcmp.ge.f32.partialorder %v1253, %v1268
      %vm1298 = vcmp.ge.f32.partialorder %v1253, %v1273
      %vm1299 = vcmp.ge.f32.partialorder %v1253, %v1278
      %vm1300 = vcmp.ge.f32.partialorder %v1253, %v1283
      %vm1301 = vcmp.ge.f32.partialorder %v1253, %v1288
      %vm1302 = vcmp.ge.f32.partialorder %v1253, %v1293
      %v1303 = vadd.f32 %v1226, 3.0
      %v1304 = vadd.f32 %v1227, 3.0
      %v1305 = vadd.f32 %v1228, 3.0
      %v1306 = vadd.f32 %v1229, 3.0
      %v1307 = vadd.f32 %v1230, 3.0
      %v1308 = vadd.f32 %v1231, 3.0
      %v1309 = vadd.f32 %v1232, 3.0
      %v1310 = vadd.f32 %v1233, 3.0
      %1312 = vset.pattern.permute.xlu0 0
      %1313 = vperm.xlu0 %1312, %v1303
      %v1314 = vpop.permute.xlu0 %1313
      %1317 = vset.pattern.permute.xlu0 0
      %1318 = vperm.xlu0 %1317, %v1304
      %v1319 = vpop.permute.xlu0 %1318
      %1322 = vset.pattern.permute.xlu0 0
      %1323 = vperm.xlu0 %1322, %v1305
      %v1324 = vpop.permute.xlu0 %1323
      %1327 = vset.pattern.permute.xlu0 0
      %1328 = vperm.xlu0 %1327, %v1306
      %v1329 = vpop.permute.xlu0 %1328
      %1332 = vset.pattern.permute.xlu0 0
      %1333 = vperm.xlu0 %1332, %v1307
      %v1334 = vpop.permute.xlu0 %1333
      %1337 = vset.pattern.permute.xlu0 0
      %1338 = vperm.xlu0 %1337, %v1308
      %v1339 = vpop.permute.xlu0 %1338
      %1342 = vset.pattern.permute.xlu0 0
      %1343 = vperm.xlu0 %1342, %v1309
      %v1344 = vpop.permute.xlu0 %1343
      %1347 = vset.pattern.permute.xlu0 0
      %1348 = vperm.xlu0 %1347, %v1310
      %v1349 = vpop.permute.xlu0 %1348
      %vm1351 = vcmp.lt.f32.partialorder %v1253, %v1314
      %vm1352 = vcmp.lt.f32.partialorder %v1253, %v1319
      %vm1353 = vcmp.lt.f32.partialorder %v1253, %v1324
      %vm1354 = vcmp.lt.f32.partialorder %v1253, %v1329
      %vm1355 = vcmp.lt.f32.partialorder %v1253, %v1334
      %vm1356 = vcmp.lt.f32.partialorder %v1253, %v1339
      %vm1357 = vcmp.lt.f32.partialorder %v1253, %v1344
      %vm1358 = vcmp.lt.f32.partialorder %v1253, %v1349
      %vm1359 = vmand %vm1295, %vm1351
      %vm1360 = vmand %vm1296, %vm1352
      %vm1361 = vmand %vm1297, %vm1353
      %vm1362 = vmand %vm1298, %vm1354
      %vm1363 = vmand %vm1299, %vm1355
      %vm1364 = vmand %vm1300, %vm1356
      %vm1365 = vmand %vm1301, %vm1357
      %vm1366 = vmand %vm1302, %vm1358
      %v1367 = vsub.f32 %v1234, 2.0
      %v1368 = vsub.f32 %v1235, 2.0
      %v1369 = vsub.f32 %v1236, 2.0
      %v1370 = vsub.f32 %v1237, 2.0
      %v1371 = vsub.f32 %v1238, 2.0
      %v1372 = vsub.f32 %v1239, 2.0
      %v1373 = vsub.f32 %v1240, 2.0
      %v1374 = vsub.f32 %v1241, 2.0
      %v1376 = vperm.slane %v1243, 0
      %1379 = vset.pattern.permute.xlu0 0
      %1380 = vperm.xlu0 %1379, %v1367
      %v1381 = vpop.permute.xlu0 %1380
      %1384 = vset.pattern.permute.xlu0 0
      %1385 = vperm.xlu0 %1384, %v1368
      %v1386 = vpop.permute.xlu0 %1385
      %1389 = vset.pattern.permute.xlu0 0
      %1390 = vperm.xlu0 %1389, %v1369
      %v1391 = vpop.permute.xlu0 %1390
      %1394 = vset.pattern.permute.xlu0 0
      %1395 = vperm.xlu0 %1394, %v1370
      %v1396 = vpop.permute.xlu0 %1395
      %1399 = vset.pattern.permute.xlu0 0
      %1400 = vperm.xlu0 %1399, %v1371
      %v1401 = vpop.permute.xlu0 %1400
      %1404 = vset.pattern.permute.xlu0 0
      %1405 = vperm.xlu0 %1404, %v1372
      %v1406 = vpop.permute.xlu0 %1405
      %1409 = vset.pattern.permute.xlu0 0
      %1410 = vperm.xlu0 %1409, %v1373
      %v1411 = vpop.permute.xlu0 %1410
      %1414 = vset.pattern.permute.xlu0 0
      %1415 = vperm.xlu0 %1414, %v1374
      %v1416 = vpop.permute.xlu0 %1415
      %vm1418 = vcmp.ge.f32.partialorder %v1376, %v1381
      %vm1419 = vcmp.ge.f32.partialorder %v1376, %v1386
      %vm1420 = vcmp.ge.f32.partialorder %v1376, %v1391
      %vm1421 = vcmp.ge.f32.partialorder %v1376, %v1396
      %vm1422 = vcmp.ge.f32.partialorder %v1376, %v1401
      %vm1423 = vcmp.ge.f32.partialorder %v1376, %v1406
      %vm1424 = vcmp.ge.f32.partialorder %v1376, %v1411
      %vm1425 = vcmp.ge.f32.partialorder %v1376, %v1416
      %vm1426 = vmand %vm1359, %vm1418
      %vm1427 = vmand %vm1360, %vm1419
      %vm1428 = vmand %vm1361, %vm1420
      %vm1429 = vmand %vm1362, %vm1421
      %vm1430 = vmand %vm1363, %vm1422
      %vm1431 = vmand %vm1364, %vm1423
      %vm1432 = vmand %vm1365, %vm1424
      %vm1433 = vmand %vm1366, %vm1425
      %v1434 = vadd.f32 %v1234, 3.0
      %v1435 = vadd.f32 %v1235, 3.0
      %v1436 = vadd.f32 %v1236, 3.0
      %v1437 = vadd.f32 %v1237, 3.0
      %v1438 = vadd.f32 %v1238, 3.0
      %v1439 = vadd.f32 %v1239, 3.0
      %v1440 = vadd.f32 %v1240, 3.0
      %v1441 = vadd.f32 %v1241, 3.0
      %1443 = vset.pattern.permute.xlu0 0
      %1444 = vperm.xlu0 %1443, %v1434
      %v1445 = vpop.permute.xlu0 %1444
      %1448 = vset.pattern.permute.xlu0 0
      %1449 = vperm.xlu0 %1448, %v1435
      %v1450 = vpop.permute.xlu0 %1449
      %1453 = vset.pattern.permute.xlu0 0
      %1454 = vperm.xlu0 %1453, %v1436
      %v1455 = vpop.permute.xlu0 %1454
      %1458 = vset.pattern.permute.xlu0 0
      %1459 = vperm.xlu0 %1458, %v1437
      %v1460 = vpop.permute.xlu0 %1459
      %1463 = vset.pattern.permute.xlu0 0
      %1464 = vperm.xlu0 %1463, %v1438
      %v1465 = vpop.permute.xlu0 %1464
      %1468 = vset.pattern.permute.xlu0 0
      %1469 = vperm.xlu0 %1468, %v1439
      %v1470 = vpop.permute.xlu0 %1469
      %1473 = vset.pattern.permute.xlu0 0
      %1474 = vperm.xlu0 %1473, %v1440
      %v1475 = vpop.permute.xlu0 %1474
      %1478 = vset.pattern.permute.xlu0 0
      %1479 = vperm.xlu0 %1478, %v1441
      %v1480 = vpop.permute.xlu0 %1479
      %vm1482 = vcmp.lt.f32.partialorder %v1376, %v1445
      %vm1483 = vcmp.lt.f32.partialorder %v1376, %v1450
      %vm1484 = vcmp.lt.f32.partialorder %v1376, %v1455
      %vm1485 = vcmp.lt.f32.partialorder %v1376, %v1460
      %vm1486 = vcmp.lt.f32.partialorder %v1376, %v1465
      %vm1487 = vcmp.lt.f32.partialorder %v1376, %v1470
      %vm1488 = vcmp.lt.f32.partialorder %v1376, %v1475
      %vm1489 = vcmp.lt.f32.partialorder %v1376, %v1480
      %vm1490 = vmand %vm1426, %vm1482
      %vm1491 = vmand %vm1427, %vm1483
      %vm1492 = vmand %vm1428, %vm1484
      %vm1493 = vmand %vm1429, %vm1485
      %vm1494 = vmand %vm1430, %vm1486
      %vm1495 = vmand %vm1431, %vm1487
      %vm1496 = vmand %vm1432, %vm1488
      %vm1497 = vmand %vm1433, %vm1489
      %v1498 = vsel %vm1490, 0.0, -1e+30
      %v1499 = vsel %vm1491, 0.0, -1e+30
      %v1500 = vsel %vm1492, 0.0, -1e+30
      %v1501 = vsel %vm1493, 0.0, -1e+30
      %v1502 = vsel %vm1494, 0.0, -1e+30
      %v1503 = vsel %vm1495, 0.0, -1e+30
      %v1504 = vsel %vm1496, 0.0, -1e+30
      %v1505 = vsel %vm1497, 0.0, -1e+30
      %v1506 = vld [vmem:[%s10] sm:$0xff]
      %v1508 = vsel %vm799, %v1218, 0
      %v1511 = vsel %vm799, %v1219, 0
      %v1514 = vsel %vm799, %v1220, 0
      %v1517 = vsel %vm799, %v1221, 0
      %v1520 = vsel %vm799, %v1222, 0
      %v1523 = vsel %vm799, %v1223, 0
      %v1526 = vsel %vm799, %v1224, 0
      %v1529 = vsel %vm799, %v1225, 0
      %1531 = vmatpush.msra.mxu0 0.0
      %1532 = vmatpush.msra.mxu0 0.0
      %1533 = vmatpush.msra.mxu0 0.0
      %1534 = vmatpush.msra.mxu0 0.0
      %1535 = vmatpush.msra.mxu0 0.0
      %1536 = vmatpush.msra.mxu0 0.0
      %1537 = vmatpush.msra.mxu0 0.0
      %1538 = vmatpush.msra.mxu0 0.0
      %1539 = vmatpush.msra.mxu0 0.0
      %1540 = vmatpush.msra.mxu0 0.0
      %1541 = vmatpush.msra.mxu0 0.0
      %1542 = vmatpush.msra.mxu0 0.0
      %1543 = vmatpush.msra.mxu0 0.0
      %1544 = vmatpush.msra.mxu0 0.0
      %1545 = vmatpush.msra.mxu0 0.0
      %1546 = vmatpush.msra.mxu0 %v1506
      %1547 = vmatmul.f32.gmra.mxu0 %v1508
      %v1548 = vpop.f32.mrf.mxu0
      %v1549 = vadd.f32 0.0, %v1548
      %1550 = vmatmul.f32.gmra.mxu0 %v1511
      %v1551 = vpop.f32.mrf.mxu0
      %v1552 = vadd.f32 0.0, %v1551
      %1553 = vmatmul.f32.gmra.mxu0 %v1514
      %v1554 = vpop.f32.mrf.mxu0
      %v1555 = vadd.f32 0.0, %v1554
      %1556 = vmatmul.f32.gmra.mxu0 %v1517
      %v1557 = vpop.f32.mrf.mxu0
      %v1558 = vadd.f32 0.0, %v1557
      %1559 = vmatmul.f32.gmra.mxu0 %v1520
      %v1560 = vpop.f32.mrf.mxu0
      %v1561 = vadd.f32 0.0, %v1560
      %1562 = vmatmul.f32.gmra.mxu0 %v1523
      %v1563 = vpop.f32.mrf.mxu0
      %v1564 = vadd.f32 0.0, %v1563
      %1565 = vmatmul.f32.gmra.mxu0 %v1526
      %v1566 = vpop.f32.mrf.mxu0
      %v1567 = vadd.f32 0.0, %v1566
      %1568 = vmatmul.f32.gmra.mxu0 %v1529
      %v1569 = vpop.f32.mrf.mxu0
      %v1570 = vadd.f32 0.0, %v1569
      %1571 = vdwg.mxu0
      %v1572 = vld [vmem:[%s11] sm:$0xff]
      %1573 = vmatpush.msra.mxu0 0.0
      %1574 = vmatpush.msra.mxu0 0.0
      %1575 = vmatpush.msra.mxu0 0.0
      %1576 = vmatpush.msra.mxu0 0.0
      %1577 = vmatpush.msra.mxu0 0.0
      %1578 = vmatpush.msra.mxu0 0.0
      %1579 = vmatpush.msra.mxu0 0.0
      %1580 = vmatpush.msra.mxu0 0.0
      %1581 = vmatpush.msra.mxu0 0.0
      %1582 = vmatpush.msra.mxu0 0.0
      %1583 = vmatpush.msra.mxu0 0.0
      %1584 = vmatpush.msra.mxu0 0.0
      %1585 = vmatpush.msra.mxu0 0.0
      %1586 = vmatpush.msra.mxu0 0.0
      %1587 = vmatpush.msra.mxu0 0.0
      %1588 = vmatpush.msra.mxu0 %v1572
      %1589 = vmatmul.f32.gmra.mxu0 %v1508
      %v1590 = vpop.f32.mrf.mxu0
      %v1591 = vadd.f32 0.0, %v1590
      %1592 = vmatmul.f32.gmra.mxu0 %v1511
      %v1593 = vpop.f32.mrf.mxu0
      %v1594 = vadd.f32 0.0, %v1593
      %1595 = vmatmul.f32.gmra.mxu0 %v1514
      %v1596 = vpop.f32.mrf.mxu0
      %v1597 = vadd.f32 0.0, %v1596
      %1598 = vmatmul.f32.gmra.mxu0 %v1517
      %v1599 = vpop.f32.mrf.mxu0
      %v1600 = vadd.f32 0.0, %v1599
      %1601 = vmatmul.f32.gmra.mxu0 %v1520
      %v1602 = vpop.f32.mrf.mxu0
      %v1603 = vadd.f32 0.0, %v1602
      %1604 = vmatmul.f32.gmra.mxu0 %v1523
      %v1605 = vpop.f32.mrf.mxu0
      %v1606 = vadd.f32 0.0, %v1605
      %1607 = vmatmul.f32.gmra.mxu0 %v1526
      %v1608 = vpop.f32.mrf.mxu0
      %v1609 = vadd.f32 0.0, %v1608
      %1610 = vmatmul.f32.gmra.mxu0 %v1529
      %v1611 = vpop.f32.mrf.mxu0
      %v1612 = vadd.f32 0.0, %v1611
      %1613 = vdwg.mxu0
      %v1614 = vld [vmem:[%s12] sm:$0xff]
      %v1616 = vsel %vm799, %v842, 0
      %v1619 = vsel %vm799, %v845, 0
      %v1622 = vsel %vm799, %v848, 0
      %v1625 = vsel %vm799, %v851, 0
      %v1628 = vsel %vm799, %v854, 0
      %v1631 = vsel %vm799, %v857, 0
      %v1634 = vsel %vm799, %v860, 0
      %v1637 = vsel %vm799, %v863, 0
      %1639 = vmatpush.msra.mxu0 0.0
      %1640 = vmatpush.msra.mxu0 0.0
      %1641 = vmatpush.msra.mxu0 0.0
      %1642 = vmatpush.msra.mxu0 0.0
      %1643 = vmatpush.msra.mxu0 0.0
      %1644 = vmatpush.msra.mxu0 0.0
      %1645 = vmatpush.msra.mxu0 0.0
      %1646 = vmatpush.msra.mxu0 0.0
      %1647 = vmatpush.msra.mxu0 0.0
      %1648 = vmatpush.msra.mxu0 0.0
      %1649 = vmatpush.msra.mxu0 0.0
      %1650 = vmatpush.msra.mxu0 0.0
      %1651 = vmatpush.msra.mxu0 0.0
      %1652 = vmatpush.msra.mxu0 0.0
      %1653 = vmatpush.msra.mxu0 0.0
      %1654 = vmatpush.msra.mxu0 %v1614
      %1655 = vmatmul.f32.gmra.mxu0 %v1616
      %v1656 = vpop.f32.mrf.mxu0
      %v1657 = vadd.f32 0.0, %v1656
      %1658 = vmatmul.f32.gmra.mxu0 %v1619
      %v1659 = vpop.f32.mrf.mxu0
      %v1660 = vadd.f32 0.0, %v1659
      %1661 = vmatmul.f32.gmra.mxu0 %v1622
      %v1662 = vpop.f32.mrf.mxu0
      %v1663 = vadd.f32 0.0, %v1662
      %1664 = vmatmul.f32.gmra.mxu0 %v1625
      %v1665 = vpop.f32.mrf.mxu0
      %v1666 = vadd.f32 0.0, %v1665
      %1667 = vmatmul.f32.gmra.mxu0 %v1628
      %v1668 = vpop.f32.mrf.mxu0
      %v1669 = vadd.f32 0.0, %v1668
      %1670 = vmatmul.f32.gmra.mxu0 %v1631
      %v1671 = vpop.f32.mrf.mxu0
      %v1672 = vadd.f32 0.0, %v1671
      %1673 = vmatmul.f32.gmra.mxu0 %v1634
      %v1674 = vpop.f32.mrf.mxu0
      %v1675 = vadd.f32 0.0, %v1674
      %1676 = vmatmul.f32.gmra.mxu0 %v1637
      %v1677 = vpop.f32.mrf.mxu0
      %v1678 = vadd.f32 0.0, %v1677
      %1679 = vdwg.mxu0
      %vm1680 = vcmask 31744
      %v1682 = vsel %vm1680, %v1549, 0
      %v1685 = vsel %vm1680, %v1552, 0
      %v1688 = vsel %vm1680, %v1555, 0
      %v1691 = vsel %vm1680, %v1558, 0
      %v1694 = vsel %vm1680, %v1561, 0
      %v1697 = vsel %vm1680, %v1564, 0
      %v1700 = vsel %vm1680, %v1567, 0
      %v1703 = vsel %vm1680, %v1570, 0
      %v1706 = vsel %vm1680, %v1591, 0
      %v1709 = vsel %vm1680, %v1594, 0
      %v1712 = vsel %vm1680, %v1597, 0
      %v1715 = vsel %vm1680, %v1600, 0
      %v1718 = vsel %vm1680, %v1603, 0
      %v1721 = vsel %vm1680, %v1606, 0
      %v1724 = vsel %vm1680, %v1609, 0
      %v1727 = vsel %vm1680, %v1612, 0
      %1729 = vmatpush.xpose.msra.mxu0 0.0
      %1730 = vmatpush.xpose.msra.mxu0 0.0
      %1731 = vmatpush.xpose.msra.mxu0 0.0
      %1732 = vmatpush.xpose.msra.mxu0 0.0
      %1733 = vmatpush.xpose.msra.mxu0 0.0
      %1734 = vmatpush.xpose.msra.mxu0 0.0
      %1735 = vmatpush.xpose.msra.mxu0 0.0
      %1736 = vmatpush.xpose.msra.mxu0 0.0
      %1737 = vmatpush.xpose.msra.mxu0 %v1727
      %1738 = vmatpush.xpose.msra.mxu0 %v1724
      %1739 = vmatpush.xpose.msra.mxu0 %v1721
      %1740 = vmatpush.xpose.msra.mxu0 %v1718
      %1741 = vmatpush.xpose.msra.mxu0 %v1715
      %1742 = vmatpush.xpose.msra.mxu0 %v1712
      %1743 = vmatpush.xpose.msra.mxu0 %v1709
      %1744 = vmatpush.xpose.msra.mxu0 %v1706
      %1745 = vmatmul.f32.gmra.mxu0 %v1682
      %v1746 = vpop.f32.mrf.mxu0
      %v1747 = vadd.f32 0.0, %v1746
      %1748 = vmatmul.f32.gmra.mxu0 %v1685
      %v1749 = vpop.f32.mrf.mxu0
      %v1750 = vadd.f32 0.0, %v1749
      %1751 = vmatmul.f32.gmra.mxu0 %v1688
      %v1752 = vpop.f32.mrf.mxu0
      %v1753 = vadd.f32 0.0, %v1752
      %1754 = vmatmul.f32.gmra.mxu0 %v1691
      %v1755 = vpop.f32.mrf.mxu0
      %v1756 = vadd.f32 0.0, %v1755
      %1757 = vmatmul.f32.gmra.mxu0 %v1694
      %v1758 = vpop.f32.mrf.mxu0
      %v1759 = vadd.f32 0.0, %v1758
      %1760 = vmatmul.f32.gmra.mxu0 %v1697
      %v1761 = vpop.f32.mrf.mxu0
      %v1762 = vadd.f32 0.0, %v1761
      %1763 = vmatmul.f32.gmra.mxu0 %v1700
      %v1764 = vpop.f32.mrf.mxu0
      %v1765 = vadd.f32 0.0, %v1764
      %1766 = vmatmul.f32.gmra.mxu0 %v1703
      %v1767 = vpop.f32.mrf.mxu0
      %v1768 = vadd.f32 0.0, %v1767
      %1769 = vdwg.mxu0
      %v1770 = vmul.f32 %v1747, 0.5
      %v1771 = vmul.f32 %v1750, 0.5
      %v1772 = vmul.f32 %v1753, 0.5
      %v1773 = vmul.f32 %v1756, 0.5
      %v1774 = vmul.f32 %v1759, 0.5
      %v1775 = vmul.f32 %v1762, 0.5
      %v1776 = vmul.f32 %v1765, 0.5
      %v1777 = vmul.f32 %v1768, 0.5
      %v1778 = vadd.f32 %v1770, %v1498
      %v1779 = vadd.f32 %v1771, %v1499
      %v1780 = vadd.f32 %v1772, %v1500
      %v1781 = vadd.f32 %v1773, %v1501
      %v1782 = vadd.f32 %v1774, %v1502
      %v1783 = vadd.f32 %v1775, %v1503
      %v1784 = vadd.f32 %v1776, %v1504
      %v1785 = vadd.f32 %v1777, %v1505
      %vm1786 = vcmask 523264
      %v1787 = vsel %vm1786, %v1778, -inf
      %1788 = vmax.xlane.f32.xlu0 %v1787
      %v1789 = vpop.xlane.xlu0 %1788
      %v1790 = vsel %vm1786, %v1779, -inf
      %1791 = vmax.xlane.f32.xlu0 %v1790
      %v1792 = vpop.xlane.xlu0 %1791
      %v1793 = vsel %vm1786, %v1780, -inf
      %1794 = vmax.xlane.f32.xlu0 %v1793
      %v1795 = vpop.xlane.xlu0 %1794
      %v1796 = vsel %vm1786, %v1781, -inf
      %1797 = vmax.xlane.f32.xlu0 %v1796
      %v1798 = vpop.xlane.xlu0 %1797
      %v1799 = vsel %vm1786, %v1782, -inf
      %1800 = vmax.xlane.f32.xlu0 %v1799
      %v1801 = vpop.xlane.xlu0 %1800
      %v1802 = vsel %vm1786, %v1783, -inf
      %1803 = vmax.xlane.f32.xlu0 %v1802
      %v1804 = vpop.xlane.xlu0 %1803
      %v1805 = vsel %vm1786, %v1784, -inf
      %1806 = vmax.xlane.f32.xlu0 %v1805
      %v1807 = vpop.xlane.xlu0 %1806
      %v1808 = vsel %vm1786, %v1785, -inf
      %1809 = vmax.xlane.f32.xlu0 %v1808
      %v1810 = vpop.xlane.xlu0 %1809
      %v1811 = vsub.f32 %v1778, %v1789
      %v1812 = vsub.f32 %v1779, %v1792
      %v1813 = vsub.f32 %v1780, %v1795
      %v1814 = vsub.f32 %v1781, %v1798
      %v1815 = vsub.f32 %v1782, %v1801
      %v1816 = vsub.f32 %v1783, %v1804
      %v1817 = vsub.f32 %v1784, %v1807
      %v1818 = vsub.f32 %v1785, %v1810
      %v1819 = vmul.f32 %v1811, 1.442695
      %v1820 = vpow.pop %v1819
      %v1821 = vmul.f32 %v1812, 1.442695
      %v1822 = vpow.pop %v1821
      %v1823 = vmul.f32 %v1813, 1.442695
      %v1824 = vpow.pop %v1823
      %v1825 = vmul.f32 %v1814, 1.442695
      %v1826 = vpow.pop %v1825
      %v1827 = vmul.f32 %v1815, 1.442695
      %v1828 = vpow.pop %v1827
      %v1829 = vmul.f32 %v1816, 1.442695
      %v1830 = vpow.pop %v1829
      %v1831 = vmul.f32 %v1817, 1.442695
      %v1832 = vpow.pop %v1831
      %v1833 = vmul.f32 %v1818, 1.442695
      %v1834 = vpow.pop %v1833
      %v1835 = vsel %vm1786, %v1820, 0.0
      %1836 = vadd.xlane.f32.xlu0 %v1835
      %v1837 = vpop.xlane.xlu0 %1836
      %v1838 = vsel %vm1786, %v1822, 0.0
      %1839 = vadd.xlane.f32.xlu0 %v1838
      %v1840 = vpop.xlane.xlu0 %1839
      %v1841 = vsel %vm1786, %v1824, 0.0
      %1842 = vadd.xlane.f32.xlu0 %v1841
      %v1843 = vpop.xlane.xlu0 %1842
      %v1844 = vsel %vm1786, %v1826, 0.0
      %1845 = vadd.xlane.f32.xlu0 %v1844
      %v1846 = vpop.xlane.xlu0 %1845
      %v1847 = vsel %vm1786, %v1828, 0.0
      %1848 = vadd.xlane.f32.xlu0 %v1847
      %v1849 = vpop.xlane.xlu0 %1848
      %v1850 = vsel %vm1786, %v1830, 0.0
      %1851 = vadd.xlane.f32.xlu0 %v1850
      %v1852 = vpop.xlane.xlu0 %1851
      %v1853 = vsel %vm1786, %v1832, 0.0
      %1854 = vadd.xlane.f32.xlu0 %v1853
      %v1855 = vpop.xlane.xlu0 %1854
      %v1856 = vsel %vm1786, %v1834, 0.0
      %1857 = vadd.xlane.f32.xlu0 %v1856
      %v1858 = vpop.xlane.xlu0 %1857
      %v1859 = vrcp.pop %v1837
      %v1860 = vrcp.pop %v1840
      %v1861 = vrcp.pop %v1843
      %v1862 = vrcp.pop %v1846
      %v1863 = vrcp.pop %v1849
      %v1864 = vrcp.pop %v1852
      %v1865 = vrcp.pop %v1855
      %v1866 = vrcp.pop %v1858
      %v1867 = vmul.f32 %v1820, %v1859
      %v1868 = vmul.f32 %v1822, %v1860
      %v1869 = vmul.f32 %v1824, %v1861
      %v1870 = vmul.f32 %v1826, %v1862
      %v1871 = vmul.f32 %v1828, %v1863
      %v1872 = vmul.f32 %v1830, %v1864
      %v1873 = vmul.f32 %v1832, %v1865
      %v1874 = vmul.f32 %v1834, %v1866
      %v1876 = vsel %vm1786, %v1867, 0
      %v1879 = vsel %vm1786, %v1868, 0
      %v1882 = vsel %vm1786, %v1869, 0
      %v1885 = vsel %vm1786, %v1870, 0
      %v1888 = vsel %vm1786, %v1871, 0
      %v1891 = vsel %vm1786, %v1872, 0
      %v1894 = vsel %vm1786, %v1873, 0
      %v1897 = vsel %vm1786, %v1874, 0
      %1899 = vmatpush.msra.mxu0 0.0
      %1900 = vmatpush.msra.mxu0 0.0
      %1901 = vmatpush.msra.mxu0 0.0
      %1902 = vmatpush.msra.mxu0 0.0
      %1903 = vmatpush.msra.mxu0 0.0
      %1904 = vmatpush.msra.mxu0 0.0
      %1905 = vmatpush.msra.mxu0 0.0
      %1906 = vmatpush.msra.mxu0 0.0
      %1907 = vmatpush.msra.mxu0 %v1678
      %1908 = vmatpush.msra.mxu0 %v1675
      %1909 = vmatpush.msra.mxu0 %v1672
      %1910 = vmatpush.msra.mxu0 %v1669
      %1911 = vmatpush.msra.mxu0 %v1666
      %1912 = vmatpush.msra.mxu0 %v1663
      %1913 = vmatpush.msra.mxu0 %v1660
      %1914 = vmatpush.msra.mxu0 %v1657
      %1915 = vmatmul.f32.gmra.mxu0 %v1876
      %v1916 = vpop.f32.mrf.mxu0
      %v1917 = vadd.f32 0.0, %v1916
      %1918 = vmatmul.f32.gmra.mxu0 %v1879
      %v1919 = vpop.f32.mrf.mxu0
      %v1920 = vadd.f32 0.0, %v1919
      %1921 = vmatmul.f32.gmra.mxu0 %v1882
      %v1922 = vpop.f32.mrf.mxu0
      %v1923 = vadd.f32 0.0, %v1922
      %1924 = vmatmul.f32.gmra.mxu0 %v1885
      %v1925 = vpop.f32.mrf.mxu0
      %v1926 = vadd.f32 0.0, %v1925
      %1927 = vmatmul.f32.gmra.mxu0 %v1888
      %v1928 = vpop.f32.mrf.mxu0
      %v1929 = vadd.f32 0.0, %v1928
      %1930 = vmatmul.f32.gmra.mxu0 %v1891
      %v1931 = vpop.f32.mrf.mxu0
      %v1932 = vadd.f32 0.0, %v1931
      %1933 = vmatmul.f32.gmra.mxu0 %v1894
      %v1934 = vpop.f32.mrf.mxu0
      %v1935 = vadd.f32 0.0, %v1934
      %1936 = vmatmul.f32.gmra.mxu0 %v1897
      %v1937 = vpop.f32.mrf.mxu0
      %v1938 = vadd.f32 0.0, %v1937
      %1939 = vdwg.mxu0
      %v1940 = vld [vmem:[%s13] sm:$0xf]
      %v1942 = vsel %vm1680, %v1917, 0
      %v1945 = vsel %vm1680, %v1920, 0
      %v1948 = vsel %vm1680, %v1923, 0
      %v1951 = vsel %vm1680, %v1926, 0
      %v1954 = vsel %vm1680, %v1929, 0
      %v1957 = vsel %vm1680, %v1932, 0
      %v1960 = vsel %vm1680, %v1935, 0
      %v1963 = vsel %vm1680, %v1938, 0
      %v1966 = vsel %vm745, %v1940, 0
      %1968 = vmatpush.msra.mxu0 0.0
      %1969 = vmatpush.msra.mxu0 0.0
      %1970 = vmatpush.msra.mxu0 0.0
      %1971 = vmatpush.msra.mxu0 0.0
      %1972 = vmatpush.msra.mxu0 0.0
      %1973 = vmatpush.msra.mxu0 0.0
      %1974 = vmatpush.msra.mxu0 0.0
      %1975 = vmatpush.msra.mxu0 0.0
      %1976 = vmatpush.msra.mxu0 0.0
      %1977 = vmatpush.msra.mxu0 0.0
      %1978 = vmatpush.msra.mxu0 0.0
      %1979 = vmatpush.msra.mxu0 0.0
      %1980 = vmatpush.msra.mxu0 0.0
      %1981 = vmatpush.msra.mxu0 0.0
      %1982 = vmatpush.msra.mxu0 0.0
      %1983 = vmatpush.msra.mxu0 %v1966
      %1984 = vmatmul.f32.gmra.mxu0 %v1942
      %v1985 = vpop.f32.mrf.mxu0
      %v1986 = vadd.f32 0.0, %v1985
      %1987 = vmatmul.f32.gmra.mxu0 %v1945
      %v1988 = vpop.f32.mrf.mxu0
      %v1989 = vadd.f32 0.0, %v1988
      %1990 = vmatmul.f32.gmra.mxu0 %v1948
      %v1991 = vpop.f32.mrf.mxu0
      %v1992 = vadd.f32 0.0, %v1991
      %1993 = vmatmul.f32.gmra.mxu0 %v1951
      %v1994 = vpop.f32.mrf.mxu0
      %v1995 = vadd.f32 0.0, %v1994
      %1996 = vmatmul.f32.gmra.mxu0 %v1954
      %v1997 = vpop.f32.mrf.mxu0
      %v1998 = vadd.f32 0.0, %v1997
      %1999 = vmatmul.f32.gmra.mxu0 %v1957
      %v2000 = vpop.f32.mrf.mxu0
      %v2001 = vadd.f32 0.0, %v2000
      %2002 = vmatmul.f32.gmra.mxu0 %v1960
      %v2003 = vpop.f32.mrf.mxu0
      %v2004 = vadd.f32 0.0, %v2003
      %2005 = vmatmul.f32.gmra.mxu0 %v1963
      %v2006 = vpop.f32.mrf.mxu0
      %v2007 = vadd.f32 0.0, %v2006
      %2008 = vdwg.mxu0
      %v2009 = vadd.f32 %v842, %v1986
      %v2010 = vadd.f32 %v845, %v1989
      %v2011 = vadd.f32 %v848, %v1992
      %v2012 = vadd.f32 %v851, %v1995
      %v2013 = vadd.f32 %v854, %v1998
      %v2014 = vadd.f32 %v857, %v2001
      %v2015 = vadd.f32 %v860, %v2004
      %v2016 = vadd.f32 %v863, %v2007
      %s2017 = scalar_lea.vmem %s10, 8
      %v2018 = vld [vmem:[%s2017] sm:$0xff]
      %2019 = vmatpush.msra.mxu0 0.0
      %2020 = vmatpush.msra.mxu0 0.0
      %2021 = vmatpush.msra.mxu0 0.0
      %2022 = vmatpush.msra.mxu0 0.0
      %2023 = vmatpush.msra.mxu0 0.0
      %2024 = vmatpush.msra.mxu0 0.0
      %2025 = vmatpush.msra.mxu0 0.0
      %2026 = vmatpush.msra.mxu0 0.0
      %2027 = vmatpush.msra.mxu0 0.0
      %2028 = vmatpush.msra.mxu0 0.0
      %2029 = vmatpush.msra.mxu0 0.0
      %2030 = vmatpush.msra.mxu0 0.0
      %2031 = vmatpush.msra.mxu0 0.0
      %2032 = vmatpush.msra.mxu0 0.0
      %2033 = vmatpush.msra.mxu0 0.0
      %2034 = vmatpush.msra.mxu0 %v2018
      %2035 = vmatmul.f32.gmra.mxu0 %v1508
      %v2036 = vpop.f32.mrf.mxu0
      %v2037 = vadd.f32 0.0, %v2036
      %2038 = vmatmul.f32.gmra.mxu0 %v1511
      %v2039 = vpop.f32.mrf.mxu0
      %v2040 = vadd.f32 0.0, %v2039
      %2041 = vmatmul.f32.gmra.mxu0 %v1514
      %v2042 = vpop.f32.mrf.mxu0
      %v2043 = vadd.f32 0.0, %v2042
      %2044 = vmatmul.f32.gmra.mxu0 %v1517
      %v2045 = vpop.f32.mrf.mxu0
      %v2046 = vadd.f32 0.0, %v2045
      %2047 = vmatmul.f32.gmra.mxu0 %v1520
      %v2048 = vpop.f32.mrf.mxu0
      %v2049 = vadd.f32 0.0, %v2048
      %2050 = vmatmul.f32.gmra.mxu0 %v1523
      %v2051 = vpop.f32.mrf.mxu0
      %v2052 = vadd.f32 0.0, %v2051
      %2053 = vmatmul.f32.gmra.mxu0 %v1526
      %v2054 = vpop.f32.mrf.mxu0
      %v2055 = vadd.f32 0.0, %v2054
      %2056 = vmatmul.f32.gmra.mxu0 %v1529
      %v2057 = vpop.f32.mrf.mxu0
      %v2058 = vadd.f32 0.0, %v2057
      %2059 = vdwg.mxu0
      %s2060 = scalar_lea.vmem %s11, 8
      %v2061 = vld [vmem:[%s2060] sm:$0xff]
      %2062 = vmatpush.msra.mxu0 0.0
      %2063 = vmatpush.msra.mxu0 0.0
      %2064 = vmatpush.msra.mxu0 0.0
      %2065 = vmatpush.msra.mxu0 0.0
      %2066 = vmatpush.msra.mxu0 0.0
      %2067 = vmatpush.msra.mxu0 0.0
      %2068 = vmatpush.msra.mxu0 0.0
      %2069 = vmatpush.msra.mxu0 0.0
      %2070 = vmatpush.msra.mxu0 0.0
      %2071 = vmatpush.msra.mxu0 0.0
      %2072 = vmatpush.msra.mxu0 0.0
      %2073 = vmatpush.msra.mxu0 0.0
      %2074 = vmatpush.msra.mxu0 0.0
      %2075 = vmatpush.msra.mxu0 0.0
      %2076 = vmatpush.msra.mxu0 0.0
      %2077 = vmatpush.msra.mxu0 %v2061
      %2078 = vmatmul.f32.gmra.mxu0 %v1508
      %v2079 = vpop.f32.mrf.mxu0
      %v2080 = vadd.f32 0.0, %v2079
      %2081 = vmatmul.f32.gmra.mxu0 %v1511
      %v2082 = vpop.f32.mrf.mxu0
      %v2083 = vadd.f32 0.0, %v2082
      %2084 = vmatmul.f32.gmra.mxu0 %v1514
      %v2085 = vpop.f32.mrf.mxu0
      %v2086 = vadd.f32 0.0, %v2085
      %2087 = vmatmul.f32.gmra.mxu0 %v1517
      %v2088 = vpop.f32.mrf.mxu0
      %v2089 = vadd.f32 0.0, %v2088
      %2090 = vmatmul.f32.gmra.mxu0 %v1520
      %v2091 = vpop.f32.mrf.mxu0
      %v2092 = vadd.f32 0.0, %v2091
      %2093 = vmatmul.f32.gmra.mxu0 %v1523
      %v2094 = vpop.f32.mrf.mxu0
      %v2095 = vadd.f32 0.0, %v2094
      %2096 = vmatmul.f32.gmra.mxu0 %v1526
      %v2097 = vpop.f32.mrf.mxu0
      %v2098 = vadd.f32 0.0, %v2097
      %2099 = vmatmul.f32.gmra.mxu0 %v1529
      %v2100 = vpop.f32.mrf.mxu0
      %v2101 = vadd.f32 0.0, %v2100
      %2102 = vdwg.mxu0
      %s2103 = scalar_lea.vmem %s12, 8
      %v2104 = vld [vmem:[%s2103] sm:$0xff]
      %2105 = vmatpush.msra.mxu0 0.0
      %2106 = vmatpush.msra.mxu0 0.0
      %2107 = vmatpush.msra.mxu0 0.0
      %2108 = vmatpush.msra.mxu0 0.0
      %2109 = vmatpush.msra.mxu0 0.0
      %2110 = vmatpush.msra.mxu0 0.0
      %2111 = vmatpush.msra.mxu0 0.0
      %2112 = vmatpush.msra.mxu0 0.0
      %2113 = vmatpush.msra.mxu0 0.0
      %2114 = vmatpush.msra.mxu0 0.0
      %2115 = vmatpush.msra.mxu0 0.0
      %2116 = vmatpush.msra.mxu0 0.0
      %2117 = vmatpush.msra.mxu0 0.0
      %2118 = vmatpush.msra.mxu0 0.0
      %2119 = vmatpush.msra.mxu0 0.0
      %2120 = vmatpush.msra.mxu0 %v2104
      %2121 = vmatmul.f32.gmra.mxu0 %v1616
      %v2122 = vpop.f32.mrf.mxu0
      %v2123 = vadd.f32 0.0, %v2122
      %2124 = vmatmul.f32.gmra.mxu0 %v1619
      %v2125 = vpop.f32.mrf.mxu0
      %v2126 = vadd.f32 0.0, %v2125
      %2127 = vmatmul.f32.gmra.mxu0 %v1622
      %v2128 = vpop.f32.mrf.mxu0
      %v2129 = vadd.f32 0.0, %v2128
      %2130 = vmatmul.f32.gmra.mxu0 %v1625
      %v2131 = vpop.f32.mrf.mxu0
      %v2132 = vadd.f32 0.0, %v2131
      %2133 = vmatmul.f32.gmra.mxu0 %v1628
      %v2134 = vpop.f32.mrf.mxu0
      %v2135 = vadd.f32 0.0, %v2134
      %2136 = vmatmul.f32.gmra.mxu0 %v1631
      %v2137 = vpop.f32.mrf.mxu0
      %v2138 = vadd.f32 0.0, %v2137
      %2139 = vmatmul.f32.gmra.mxu0 %v1634
      %v2140 = vpop.f32.mrf.mxu0
      %v2141 = vadd.f32 0.0, %v2140
      %2142 = vmatmul.f32.gmra.mxu0 %v1637
      %v2143 = vpop.f32.mrf.mxu0
      %v2144 = vadd.f32 0.0, %v2143
      %2145 = vdwg.mxu0
      %v2147 = vsel %vm1680, %v2037, 0
      %v2150 = vsel %vm1680, %v2040, 0
      %v2153 = vsel %vm1680, %v2043, 0
      %v2156 = vsel %vm1680, %v2046, 0
      %v2159 = vsel %vm1680, %v2049, 0
      %v2162 = vsel %vm1680, %v2052, 0
      %v2165 = vsel %vm1680, %v2055, 0
      %v2168 = vsel %vm1680, %v2058, 0
      %v2171 = vsel %vm1680, %v2080, 0
      %v2174 = vsel %vm1680, %v2083, 0
      %v2177 = vsel %vm1680, %v2086, 0
      %v2180 = vsel %vm1680, %v2089, 0
      %v2183 = vsel %vm1680, %v2092, 0
      %v2186 = vsel %vm1680, %v2095, 0
      %v2189 = vsel %vm1680, %v2098, 0
      %v2192 = vsel %vm1680, %v2101, 0
      %2194 = vmatpush.xpose.msra.mxu0 0.0
      %2195 = vmatpush.xpose.msra.mxu0 0.0
      %2196 = vmatpush.xpose.msra.mxu0 0.0
      %2197 = vmatpush.xpose.msra.mxu0 0.0
      %2198 = vmatpush.xpose.msra.mxu0 0.0
      %2199 = vmatpush.xpose.msra.mxu0 0.0
      %2200 = vmatpush.xpose.msra.mxu0 0.0
      %2201 = vmatpush.xpose.msra.mxu0 0.0
      %2202 = vmatpush.xpose.msra.mxu0 %v2192
      %2203 = vmatpush.xpose.msra.mxu0 %v2189
      %2204 = vmatpush.xpose.msra.mxu0 %v2186
      %2205 = vmatpush.xpose.msra.mxu0 %v2183
      %2206 = vmatpush.xpose.msra.mxu0 %v2180
      %2207 = vmatpush.xpose.msra.mxu0 %v2177
      %2208 = vmatpush.xpose.msra.mxu0 %v2174
      %2209 = vmatpush.xpose.msra.mxu0 %v2171
      %2210 = vmatmul.f32.gmra.mxu0 %v2147
      %v2211 = vpop.f32.mrf.mxu0
      %v2212 = vadd.f32 0.0, %v2211
      %2213 = vmatmul.f32.gmra.mxu0 %v2150
      %v2214 = vpop.f32.mrf.mxu0
      %v2215 = vadd.f32 0.0, %v2214
      %2216 = vmatmul.f32.gmra.mxu0 %v2153
      %v2217 = vpop.f32.mrf.mxu0
      %v2218 = vadd.f32 0.0, %v2217
      %2219 = vmatmul.f32.gmra.mxu0 %v2156
      %v2220 = vpop.f32.mrf.mxu0
      %v2221 = vadd.f32 0.0, %v2220
      %2222 = vmatmul.f32.gmra.mxu0 %v2159
      %v2223 = vpop.f32.mrf.mxu0
      %v2224 = vadd.f32 0.0, %v2223
      %2225 = vmatmul.f32.gmra.mxu0 %v2162
      %v2226 = vpop.f32.mrf.mxu0
      %v2227 = vadd.f32 0.0, %v2226
      %2228 = vmatmul.f32.gmra.mxu0 %v2165
      %v2229 = vpop.f32.mrf.mxu0
      %v2230 = vadd.f32 0.0, %v2229
      %2231 = vmatmul.f32.gmra.mxu0 %v2168
      %v2232 = vpop.f32.mrf.mxu0
      %v2233 = vadd.f32 0.0, %v2232
      %2234 = vdwg.mxu0
      %v2235 = vmul.f32 %v2212, 0.5
      %v2236 = vmul.f32 %v2215, 0.5
      %v2237 = vmul.f32 %v2218, 0.5
      %v2238 = vmul.f32 %v2221, 0.5
      %v2239 = vmul.f32 %v2224, 0.5
      %v2240 = vmul.f32 %v2227, 0.5
      %v2241 = vmul.f32 %v2230, 0.5
      %v2242 = vmul.f32 %v2233, 0.5
      %v2243 = vadd.f32 %v2235, %v1498
      %v2244 = vadd.f32 %v2236, %v1499
      %v2245 = vadd.f32 %v2237, %v1500
      %v2246 = vadd.f32 %v2238, %v1501
      %v2247 = vadd.f32 %v2239, %v1502
      %v2248 = vadd.f32 %v2240, %v1503
      %v2249 = vadd.f32 %v2241, %v1504
      %v2250 = vadd.f32 %v2242, %v1505
      %v2251 = vsel %vm1786, %v2243, -inf
      %2252 = vmax.xlane.f32.xlu0 %v2251
      %v2253 = vpop.xlane.xlu0 %2252
      %v2254 = vsel %vm1786, %v2244, -inf
      %2255 = vmax.xlane.f32.xlu0 %v2254
      %v2256 = vpop.xlane.xlu0 %2255
      %v2257 = vsel %vm1786, %v2245, -inf
      %2258 = vmax.xlane.f32.xlu0 %v2257
      %v2259 = vpop.xlane.xlu0 %2258
      %v2260 = vsel %vm1786, %v2246, -inf
      %2261 = vmax.xlane.f32.xlu0 %v2260
      %v2262 = vpop.xlane.xlu0 %2261
      %v2263 = vsel %vm1786, %v2247, -inf
      %2264 = vmax.xlane.f32.xlu0 %v2263
      %v2265 = vpop.xlane.xlu0 %2264
      %v2266 = vsel %vm1786, %v2248, -inf
      %2267 = vmax.xlane.f32.xlu0 %v2266
      %v2268 = vpop.xlane.xlu0 %2267
      %v2269 = vsel %vm1786, %v2249, -inf
      %2270 = vmax.xlane.f32.xlu0 %v2269
      %v2271 = vpop.xlane.xlu0 %2270
      %v2272 = vsel %vm1786, %v2250, -inf
      %2273 = vmax.xlane.f32.xlu0 %v2272
      %v2274 = vpop.xlane.xlu0 %2273
      %v2275 = vsub.f32 %v2243, %v2253
      %v2276 = vsub.f32 %v2244, %v2256
      %v2277 = vsub.f32 %v2245, %v2259
      %v2278 = vsub.f32 %v2246, %v2262
      %v2279 = vsub.f32 %v2247, %v2265
      %v2280 = vsub.f32 %v2248, %v2268
      %v2281 = vsub.f32 %v2249, %v2271
      %v2282 = vsub.f32 %v2250, %v2274
      %v2283 = vmul.f32 %v2275, 1.442695
      %v2284 = vpow.pop %v2283
      %v2285 = vmul.f32 %v2276, 1.442695
      %v2286 = vpow.pop %v2285
      %v2287 = vmul.f32 %v2277, 1.442695
      %v2288 = vpow.pop %v2287
      %v2289 = vmul.f32 %v2278, 1.442695
      %v2290 = vpow.pop %v2289
      %v2291 = vmul.f32 %v2279, 1.442695
      %v2292 = vpow.pop %v2291
      %v2293 = vmul.f32 %v2280, 1.442695
      %v2294 = vpow.pop %v2293
      %v2295 = vmul.f32 %v2281, 1.442695
      %v2296 = vpow.pop %v2295
      %v2297 = vmul.f32 %v2282, 1.442695
      %v2298 = vpow.pop %v2297
      %v2299 = vsel %vm1786, %v2284, 0.0
      %2300 = vadd.xlane.f32.xlu0 %v2299
      %v2301 = vpop.xlane.xlu0 %2300
      %v2302 = vsel %vm1786, %v2286, 0.0
      %2303 = vadd.xlane.f32.xlu0 %v2302
      %v2304 = vpop.xlane.xlu0 %2303
      %v2305 = vsel %vm1786, %v2288, 0.0
      %2306 = vadd.xlane.f32.xlu0 %v2305
      %v2307 = vpop.xlane.xlu0 %2306
      %v2308 = vsel %vm1786, %v2290, 0.0
      %2309 = vadd.xlane.f32.xlu0 %v2308
      %v2310 = vpop.xlane.xlu0 %2309
      %v2311 = vsel %vm1786, %v2292, 0.0
      %2312 = vadd.xlane.f32.xlu0 %v2311
      %v2313 = vpop.xlane.xlu0 %2312
      %v2314 = vsel %vm1786, %v2294, 0.0
      %2315 = vadd.xlane.f32.xlu0 %v2314
      %v2316 = vpop.xlane.xlu0 %2315
      %v2317 = vsel %vm1786, %v2296, 0.0
      %2318 = vadd.xlane.f32.xlu0 %v2317
      %v2319 = vpop.xlane.xlu0 %2318
      %v2320 = vsel %vm1786, %v2298, 0.0
      %2321 = vadd.xlane.f32.xlu0 %v2320
      %v2322 = vpop.xlane.xlu0 %2321
      %v2323 = vrcp.pop %v2301
      %v2324 = vrcp.pop %v2304
      %v2325 = vrcp.pop %v2307
      %v2326 = vrcp.pop %v2310
      %v2327 = vrcp.pop %v2313
      %v2328 = vrcp.pop %v2316
      %v2329 = vrcp.pop %v2319
      %v2330 = vrcp.pop %v2322
      %v2331 = vmul.f32 %v2284, %v2323
      %v2332 = vmul.f32 %v2286, %v2324
      %v2333 = vmul.f32 %v2288, %v2325
      %v2334 = vmul.f32 %v2290, %v2326
      %v2335 = vmul.f32 %v2292, %v2327
      %v2336 = vmul.f32 %v2294, %v2328
      %v2337 = vmul.f32 %v2296, %v2329
      %v2338 = vmul.f32 %v2298, %v2330
      %v2340 = vsel %vm1786, %v2331, 0
      %v2343 = vsel %vm1786, %v2332, 0
      %v2346 = vsel %vm1786, %v2333, 0
      %v2349 = vsel %vm1786, %v2334, 0
      %v2352 = vsel %vm1786, %v2335, 0
      %v2355 = vsel %vm1786, %v2336, 0
      %v2358 = vsel %vm1786, %v2337, 0
      %v2361 = vsel %vm1786, %v2338, 0
      %2363 = vmatpush.msra.mxu0 0.0
      %2364 = vmatpush.msra.mxu0 0.0
      %2365 = vmatpush.msra.mxu0 0.0
      %2366 = vmatpush.msra.mxu0 0.0
      %2367 = vmatpush.msra.mxu0 0.0
      %2368 = vmatpush.msra.mxu0 0.0
      %2369 = vmatpush.msra.mxu0 0.0
      %2370 = vmatpush.msra.mxu0 0.0
      %2371 = vmatpush.msra.mxu0 %v2144
      %2372 = vmatpush.msra.mxu0 %v2141
      %2373 = vmatpush.msra.mxu0 %v2138
      %2374 = vmatpush.msra.mxu0 %v2135
      %2375 = vmatpush.msra.mxu0 %v2132
      %2376 = vmatpush.msra.mxu0 %v2129
      %2377 = vmatpush.msra.mxu0 %v2126
      %2378 = vmatpush.msra.mxu0 %v2123
      %2379 = vmatmul.f32.gmra.mxu0 %v2340
      %v2380 = vpop.f32.mrf.mxu0
      %v2381 = vadd.f32 0.0, %v2380
      %2382 = vmatmul.f32.gmra.mxu0 %v2343
      %v2383 = vpop.f32.mrf.mxu0
      %v2384 = vadd.f32 0.0, %v2383
      %2385 = vmatmul.f32.gmra.mxu0 %v2346
      %v2386 = vpop.f32.mrf.mxu0
      %v2387 = vadd.f32 0.0, %v2386
      %2388 = vmatmul.f32.gmra.mxu0 %v2349
      %v2389 = vpop.f32.mrf.mxu0
      %v2390 = vadd.f32 0.0, %v2389
      %2391 = vmatmul.f32.gmra.mxu0 %v2352
      %v2392 = vpop.f32.mrf.mxu0
      %v2393 = vadd.f32 0.0, %v2392
      %2394 = vmatmul.f32.gmra.mxu0 %v2355
      %v2395 = vpop.f32.mrf.mxu0
      %v2396 = vadd.f32 0.0, %v2395
      %2397 = vmatmul.f32.gmra.mxu0 %v2358
      %v2398 = vpop.f32.mrf.mxu0
      %v2399 = vadd.f32 0.0, %v2398
      %2400 = vmatmul.f32.gmra.mxu0 %v2361
      %v2401 = vpop.f32.mrf.mxu0
      %v2402 = vadd.f32 0.0, %v2401
      %2403 = vdwg.mxu0
      %s2404 = scalar_lea.vmem %s13, 4
      %v2405 = vld [vmem:[%s2404] sm:$0xf]
      %v2407 = vsel %vm1680, %v2381, 0
      %v2410 = vsel %vm1680, %v2384, 0
      %v2413 = vsel %vm1680, %v2387, 0
      %v2416 = vsel %vm1680, %v2390, 0
      %v2419 = vsel %vm1680, %v2393, 0
      %v2422 = vsel %vm1680, %v2396, 0
      %v2425 = vsel %vm1680, %v2399, 0
      %v2428 = vsel %vm1680, %v2402, 0
      %v2431 = vsel %vm745, %v2405, 0
      %2433 = vmatpush.msra.mxu0 0.0
      %2434 = vmatpush.msra.mxu0 0.0
      %2435 = vmatpush.msra.mxu0 0.0
      %2436 = vmatpush.msra.mxu0 0.0
      %2437 = vmatpush.msra.mxu0 0.0
      %2438 = vmatpush.msra.mxu0 0.0
      %2439 = vmatpush.msra.mxu0 0.0
      %2440 = vmatpush.msra.mxu0 0.0
      %2441 = vmatpush.msra.mxu0 0.0
      %2442 = vmatpush.msra.mxu0 0.0
      %2443 = vmatpush.msra.mxu0 0.0
      %2444 = vmatpush.msra.mxu0 0.0
      %2445 = vmatpush.msra.mxu0 0.0
      %2446 = vmatpush.msra.mxu0 0.0
      %2447 = vmatpush.msra.mxu0 0.0
      %2448 = vmatpush.msra.mxu0 %v2431
      %2449 = vmatmul.f32.gmra.mxu0 %v2407
      %v2450 = vpop.f32.mrf.mxu0
      %v2451 = vadd.f32 0.0, %v2450
      %2452 = vmatmul.f32.gmra.mxu0 %v2410
      %v2453 = vpop.f32.mrf.mxu0
      %v2454 = vadd.f32 0.0, %v2453
      %2455 = vmatmul.f32.gmra.mxu0 %v2413
      %v2456 = vpop.f32.mrf.mxu0
      %v2457 = vadd.f32 0.0, %v2456
      %2458 = vmatmul.f32.gmra.mxu0 %v2416
      %v2459 = vpop.f32.mrf.mxu0
      %v2460 = vadd.f32 0.0, %v2459
      %2461 = vmatmul.f32.gmra.mxu0 %v2419
      %v2462 = vpop.f32.mrf.mxu0
      %v2463 = vadd.f32 0.0, %v2462
      %2464 = vmatmul.f32.gmra.mxu0 %v2422
      %v2465 = vpop.f32.mrf.mxu0
      %v2466 = vadd.f32 0.0, %v2465
      %2467 = vmatmul.f32.gmra.mxu0 %v2425
      %v2468 = vpop.f32.mrf.mxu0
      %v2469 = vadd.f32 0.0, %v2468
      %2470 = vmatmul.f32.gmra.mxu0 %v2428
      %v2471 = vpop.f32.mrf.mxu0
      %v2472 = vadd.f32 0.0, %v2471
      %2473 = vdwg.mxu0
      %v2474 = vadd.f32 %v2009, %v2451
      %v2475 = vadd.f32 %v2010, %v2454
      %v2476 = vadd.f32 %v2011, %v2457
      %v2477 = vadd.f32 %v2012, %v2460
      %v2478 = vadd.f32 %v2013, %v2463
      %v2479 = vadd.f32 %v2014, %v2466
      %v2480 = vadd.f32 %v2015, %v2469
      %v2481 = vadd.f32 %v2016, %v2472
      %v2482 = vld [vmem:[%s14] sm:$0x1]
      %v2483 = vld [vmem:[%s15] sm:$0x1]
      %v2484 = vld [vmem:[%s16] sm:$0xff]
      %v2485 = vld [vmem:[%s17] sm:$0xff]
      %v2486 = vld [vmem:[%s17 + $0x8] sm:$0xff]
      %v2487 = vsel %vm799, %v2474, 0.0
      %2488 = vadd.xlane.f32.xlu0 %v2487
      %v2489 = vpop.xlane.xlu0 %2488
      %v2490 = vsel %vm799, %v2475, 0.0
      %2491 = vadd.xlane.f32.xlu0 %v2490
      %v2492 = vpop.xlane.xlu0 %2491
      %v2493 = vsel %vm799, %v2476, 0.0
      %2494 = vadd.xlane.f32.xlu0 %v2493
      %v2495 = vpop.xlane.xlu0 %2494
      %v2496 = vsel %vm799, %v2477, 0.0
      %2497 = vadd.xlane.f32.xlu0 %v2496
      %v2498 = vpop.xlane.xlu0 %2497
      %v2499 = vsel %vm799, %v2478, 0.0
      %2500 = vadd.xlane.f32.xlu0 %v2499
      %v2501 = vpop.xlane.xlu0 %2500
      %v2502 = vsel %vm799, %v2479, 0.0
      %2503 = vadd.xlane.f32.xlu0 %v2502
      %v2504 = vpop.xlane.xlu0 %2503
      %v2505 = vsel %vm799, %v2480, 0.0
      %2506 = vadd.xlane.f32.xlu0 %v2505
      %v2507 = vpop.xlane.xlu0 %2506
      %v2508 = vsel %vm799, %v2481, 0.0
      %2509 = vadd.xlane.f32.xlu0 %v2508
      %v2510 = vpop.xlane.xlu0 %2509
      %v2511 = vmul.f32 %v2489, %v1051
      %v2512 = vmul.f32 %v2492, %v1051
      %v2513 = vmul.f32 %v2495, %v1051
      %v2514 = vmul.f32 %v2498, %v1051
      %v2515 = vmul.f32 %v2501, %v1051
      %v2516 = vmul.f32 %v2504, %v1051
      %v2517 = vmul.f32 %v2507, %v1051
      %v2518 = vmul.f32 %v2510, %v1051
      %v2519 = vsub.f32 %v2474, %v2511
      %v2520 = vsub.f32 %v2475, %v2512
      %v2521 = vsub.f32 %v2476, %v2513
      %v2522 = vsub.f32 %v2477, %v2514
      %v2523 = vsub.f32 %v2478, %v2515
      %v2524 = vsub.f32 %v2479, %v2516
      %v2525 = vsub.f32 %v2480, %v2517
      %v2526 = vsub.f32 %v2481, %v2518
      %v2527 = vmul.f32 %v2519, %v2519
      %v2528 = vmul.f32 %v2520, %v2520
      %v2529 = vmul.f32 %v2521, %v2521
      %v2530 = vmul.f32 %v2522, %v2522
      %v2531 = vmul.f32 %v2523, %v2523
      %v2532 = vmul.f32 %v2524, %v2524
      %v2533 = vmul.f32 %v2525, %v2525
      %v2534 = vmul.f32 %v2526, %v2526
      %v2535 = vsel %vm799, %v2527, 0.0
      %2536 = vadd.xlane.f32.xlu0 %v2535
      %v2537 = vpop.xlane.xlu0 %2536
      %v2538 = vsel %vm799, %v2528, 0.0
      %2539 = vadd.xlane.f32.xlu0 %v2538
      %v2540 = vpop.xlane.xlu0 %2539
      %v2541 = vsel %vm799, %v2529, 0.0
      %2542 = vadd.xlane.f32.xlu0 %v2541
      %v2543 = vpop.xlane.xlu0 %2542
      %v2544 = vsel %vm799, %v2530, 0.0
      %2545 = vadd.xlane.f32.xlu0 %v2544
      %v2546 = vpop.xlane.xlu0 %2545
      %v2547 = vsel %vm799, %v2531, 0.0
      %2548 = vadd.xlane.f32.xlu0 %v2547
      %v2549 = vpop.xlane.xlu0 %2548
      %v2550 = vsel %vm799, %v2532, 0.0
      %2551 = vadd.xlane.f32.xlu0 %v2550
      %v2552 = vpop.xlane.xlu0 %2551
      %v2553 = vsel %vm799, %v2533, 0.0
      %2554 = vadd.xlane.f32.xlu0 %v2553
      %v2555 = vpop.xlane.xlu0 %2554
      %v2556 = vsel %vm799, %v2534, 0.0
      %2557 = vadd.xlane.f32.xlu0 %v2556
      %v2558 = vpop.xlane.xlu0 %2557
      %v2559 = vmul.f32 %v2537, %v1051
      %v2560 = vmul.f32 %v2540, %v1051
      %v2561 = vmul.f32 %v2543, %v1051
      %v2562 = vmul.f32 %v2546, %v1051
      %v2563 = vmul.f32 %v2549, %v1051
      %v2564 = vmul.f32 %v2552, %v1051
      %v2565 = vmul.f32 %v2555, %v1051
      %v2566 = vmul.f32 %v2558, %v1051
      %v2567 = vadd.f32 %v2559, 1e-05
      %v2568 = vadd.f32 %v2560, 1e-05
      %v2569 = vadd.f32 %v2561, 1e-05
      %v2570 = vadd.f32 %v2562, 1e-05
      %v2571 = vadd.f32 %v2563, 1e-05
      %v2572 = vadd.f32 %v2564, 1e-05
      %v2573 = vadd.f32 %v2565, 1e-05
      %v2574 = vadd.f32 %v2566, 1e-05
      %v2575 = vrsqrt.pop %v2567
      %v2576 = vmul.f32 %v2575, %v2567
      %v2577 = vmul.f32 %v2576, %v2575
      %v2578 = vmul.f32 0.5, %v2577
      %v2579 = vsub.f32 1.5, %v2578
      %v2580 = vmul.f32 %v2575, %v2579
      %vm2581 = vweird.f32 %v2567
      %vm2582 = vweird.f32 %v2575
      %vm2583 = vmor %vm2581, %vm2582
      %v2584 = vsel %vm2583, %v2575, %v2580
      %v2585 = vrsqrt.pop %v2568
      %v2586 = vmul.f32 %v2585, %v2568
      %v2587 = vmul.f32 %v2586, %v2585
      %v2588 = vmul.f32 0.5, %v2587
      %v2589 = vsub.f32 1.5, %v2588
      %v2590 = vmul.f32 %v2585, %v2589
      %vm2591 = vweird.f32 %v2568
      %vm2592 = vweird.f32 %v2585
      %vm2593 = vmor %vm2591, %vm2592
      %v2594 = vsel %vm2593, %v2585, %v2590
      %v2595 = vrsqrt.pop %v2569
      %v2596 = vmul.f32 %v2595, %v2569
      %v2597 = vmul.f32 %v2596, %v2595
      %v2598 = vmul.f32 0.5, %v2597
      %v2599 = vsub.f32 1.5, %v2598
      %v2600 = vmul.f32 %v2595, %v2599
      %vm2601 = vweird.f32 %v2569
      %vm2602 = vweird.f32 %v2595
      %vm2603 = vmor %vm2601, %vm2602
      %v2604 = vsel %vm2603, %v2595, %v2600
      %v2605 = vrsqrt.pop %v2570
      %v2606 = vmul.f32 %v2605, %v2570
      %v2607 = vmul.f32 %v2606, %v2605
      %v2608 = vmul.f32 0.5, %v2607
      %v2609 = vsub.f32 1.5, %v2608
      %v2610 = vmul.f32 %v2605, %v2609
      %vm2611 = vweird.f32 %v2570
      %vm2612 = vweird.f32 %v2605
      %vm2613 = vmor %vm2611, %vm2612
      %v2614 = vsel %vm2613, %v2605, %v2610
      %v2615 = vrsqrt.pop %v2571
      %v2616 = vmul.f32 %v2615, %v2571
      %v2617 = vmul.f32 %v2616, %v2615
      %v2618 = vmul.f32 0.5, %v2617
      %v2619 = vsub.f32 1.5, %v2618
      %v2620 = vmul.f32 %v2615, %v2619
      %vm2621 = vweird.f32 %v2571
      %vm2622 = vweird.f32 %v2615
      %vm2623 = vmor %vm2621, %vm2622
      %v2624 = vsel %vm2623, %v2615, %v2620
      %v2625 = vrsqrt.pop %v2572
      %v2626 = vmul.f32 %v2625, %v2572
      %v2627 = vmul.f32 %v2626, %v2625
      %v2628 = vmul.f32 0.5, %v2627
      %v2629 = vsub.f32 1.5, %v2628
      %v2630 = vmul.f32 %v2625, %v2629
      %vm2631 = vweird.f32 %v2572
      %vm2632 = vweird.f32 %v2625
      %vm2633 = vmor %vm2631, %vm2632
      %v2634 = vsel %vm2633, %v2625, %v2630
      %v2635 = vrsqrt.pop %v2573
      %v2636 = vmul.f32 %v2635, %v2573
      %v2637 = vmul.f32 %v2636, %v2635
      %v2638 = vmul.f32 0.5, %v2637
      %v2639 = vsub.f32 1.5, %v2638
      %v2640 = vmul.f32 %v2635, %v2639
      %vm2641 = vweird.f32 %v2573
      %vm2642 = vweird.f32 %v2635
      %vm2643 = vmor %vm2641, %vm2642
      %v2644 = vsel %vm2643, %v2635, %v2640
      %v2645 = vrsqrt.pop %v2574
      %v2646 = vmul.f32 %v2645, %v2574
      %v2647 = vmul.f32 %v2646, %v2645
      %v2648 = vmul.f32 0.5, %v2647
      %v2649 = vsub.f32 1.5, %v2648
      %v2650 = vmul.f32 %v2645, %v2649
      %vm2651 = vweird.f32 %v2574
      %vm2652 = vweird.f32 %v2645
      %vm2653 = vmor %vm2651, %vm2652
      %v2654 = vsel %vm2653, %v2645, %v2650
      %v2655 = vmul.f32 %v2519, %v2584
      %v2656 = vmul.f32 %v2520, %v2594
      %v2657 = vmul.f32 %v2521, %v2604
      %v2658 = vmul.f32 %v2522, %v2614
      %v2659 = vmul.f32 %v2523, %v2624
      %v2660 = vmul.f32 %v2524, %v2634
      %v2661 = vmul.f32 %v2525, %v2644
      %v2662 = vmul.f32 %v2526, %v2654
      %v2664 = vperm.slane %v2482, 0
      %v2666 = vmul.f32 %v2655, %v2664
      %v2667 = vmul.f32 %v2656, %v2664
      %v2668 = vmul.f32 %v2657, %v2664
      %v2669 = vmul.f32 %v2658, %v2664
      %v2670 = vmul.f32 %v2659, %v2664
      %v2671 = vmul.f32 %v2660, %v2664
      %v2672 = vmul.f32 %v2661, %v2664
      %v2673 = vmul.f32 %v2662, %v2664
      %v2675 = vperm.slane %v2483, 0
      %v2677 = vadd.f32 %v2666, %v2675
      %v2678 = vadd.f32 %v2667, %v2675
      %v2679 = vadd.f32 %v2668, %v2675
      %v2680 = vadd.f32 %v2669, %v2675
      %v2681 = vadd.f32 %v2670, %v2675
      %v2682 = vadd.f32 %v2671, %v2675
      %v2683 = vadd.f32 %v2672, %v2675
      %v2684 = vadd.f32 %v2673, %v2675
      %v2686 = vsel %vm799, %v2677, 0
      %v2689 = vsel %vm799, %v2678, 0
      %v2692 = vsel %vm799, %v2679, 0
      %v2695 = vsel %vm799, %v2680, 0
      %v2698 = vsel %vm799, %v2681, 0
      %v2701 = vsel %vm799, %v2682, 0
      %v2704 = vsel %vm799, %v2683, 0
      %v2707 = vsel %vm799, %v2684, 0
      %2709 = vmatpush.msra.mxu0 0.0
      %2710 = vmatpush.msra.mxu0 0.0
      %2711 = vmatpush.msra.mxu0 0.0
      %2712 = vmatpush.msra.mxu0 0.0
      %2713 = vmatpush.msra.mxu0 0.0
      %2714 = vmatpush.msra.mxu0 0.0
      %2715 = vmatpush.msra.mxu0 0.0
      %2716 = vmatpush.msra.mxu0 0.0
      %2717 = vmatpush.msra.mxu0 0.0
      %2718 = vmatpush.msra.mxu0 0.0
      %2719 = vmatpush.msra.mxu0 0.0
      %2720 = vmatpush.msra.mxu0 0.0
      %2721 = vmatpush.msra.mxu0 0.0
      %2722 = vmatpush.msra.mxu0 0.0
      %2723 = vmatpush.msra.mxu0 0.0
      %2724 = vmatpush.msra.mxu0 %v2484
      %2725 = vmatmul.f32.gmra.mxu0 %v2686
      %v2726 = vpop.f32.mrf.mxu0
      %v2727 = vadd.f32 0.0, %v2726
      %2728 = vmatmul.f32.gmra.mxu0 %v2689
      %v2729 = vpop.f32.mrf.mxu0
      %v2730 = vadd.f32 0.0, %v2729
      %2731 = vmatmul.f32.gmra.mxu0 %v2692
      %v2732 = vpop.f32.mrf.mxu0
      %v2733 = vadd.f32 0.0, %v2732
      %2734 = vmatmul.f32.gmra.mxu0 %v2695
      %v2735 = vpop.f32.mrf.mxu0
      %v2736 = vadd.f32 0.0, %v2735
      %2737 = vmatmul.f32.gmra.mxu0 %v2698
      %v2738 = vpop.f32.mrf.mxu0
      %v2739 = vadd.f32 0.0, %v2738
      %2740 = vmatmul.f32.gmra.mxu0 %v2701
      %v2741 = vpop.f32.mrf.mxu0
      %v2742 = vadd.f32 0.0, %v2741
      %2743 = vmatmul.f32.gmra.mxu0 %v2704
      %v2744 = vpop.f32.mrf.mxu0
      %v2745 = vadd.f32 0.0, %v2744
      %2746 = vmatmul.f32.gmra.mxu0 %v2707
      %v2747 = vpop.f32.mrf.mxu0
      %v2748 = vadd.f32 0.0, %v2747
      %2749 = vdwg.mxu0
      %v2750 = vmax.f32 %v2727, 0.0
      %v2751 = vmax.f32 %v2730, 0.0
      %v2752 = vmax.f32 %v2733, 0.0
      %v2753 = vmax.f32 %v2736, 0.0
      %v2754 = vmax.f32 %v2739, 0.0
      %v2755 = vmax.f32 %v2742, 0.0
      %v2756 = vmax.f32 %v2745, 0.0
      %v2757 = vmax.f32 %v2748, 0.0
      %vm2758 = vcmask 130048
      %v2760 = vsel %vm2758, %v2750, 0
      %v2763 = vsel %vm2758, %v2751, 0
      %v2766 = vsel %vm2758, %v2752, 0
      %v2769 = vsel %vm2758, %v2753, 0
      %v2772 = vsel %vm2758, %v2754, 0
      %v2775 = vsel %vm2758, %v2755, 0
      %v2778 = vsel %vm2758, %v2756, 0
      %v2781 = vsel %vm2758, %v2757, 0
      %2783 = vmatpush.msra.mxu0 0.0
      %2784 = vmatpush.msra.mxu0 0.0
      %2785 = vmatpush.msra.mxu0 0.0
      %2786 = vmatpush.msra.mxu0 0.0
      %2787 = vmatpush.msra.mxu0 0.0
      %2788 = vmatpush.msra.mxu0 0.0
      %2789 = vmatpush.msra.mxu0 0.0
      %2790 = vmatpush.msra.mxu0 0.0
      %2791 = vmatpush.msra.mxu0 0.0
      %2792 = vmatpush.msra.mxu0 0.0
      %2793 = vmatpush.msra.mxu0 0.0
      %2794 = vmatpush.msra.mxu0 0.0
      %2795 = vmatpush.msra.mxu0 0.0
      %2796 = vmatpush.msra.mxu0 0.0
      %2797 = vmatpush.msra.mxu0 %v2486
      %2798 = vmatpush.msra.mxu0 %v2485
      %2799 = vmatmul.f32.gmra.mxu0 %v2760
      %v2800 = vpop.f32.mrf.mxu0
      %v2801 = vadd.f32 %v2474, %v2800
      %2802 = vmatmul.f32.gmra.mxu0 %v2763
      %v2803 = vpop.f32.mrf.mxu0
      %v2804 = vadd.f32 %v2475, %v2803
      %2805 = vmatmul.f32.gmra.mxu0 %v2766
      %v2806 = vpop.f32.mrf.mxu0
      %v2807 = vadd.f32 %v2476, %v2806
      %2808 = vmatmul.f32.gmra.mxu0 %v2769
      %v2809 = vpop.f32.mrf.mxu0
      %v2810 = vadd.f32 %v2477, %v2809
      %2811 = vmatmul.f32.gmra.mxu0 %v2772
      %v2812 = vpop.f32.mrf.mxu0
      %v2813 = vadd.f32 %v2478, %v2812
      %2814 = vmatmul.f32.gmra.mxu0 %v2775
      %v2815 = vpop.f32.mrf.mxu0
      %v2816 = vadd.f32 %v2479, %v2815
      %2817 = vmatmul.f32.gmra.mxu0 %v2778
      %v2818 = vpop.f32.mrf.mxu0
      %v2819 = vadd.f32 %v2480, %v2818
      %2820 = vmatmul.f32.gmra.mxu0 %v2781
      %v2821 = vpop.f32.mrf.mxu0
      %v2822 = vadd.f32 %v2481, %v2821
      %2823 = vdwg.mxu0
      %v2824 = vsel %vm799, %v2801, 0.0
      %2825 = vadd.xlane.f32.xlu0 %v2824
      %v2826 = vpop.xlane.xlu0 %2825
      %v2827 = vsel %vm799, %v2804, 0.0
      %2828 = vadd.xlane.f32.xlu0 %v2827
      %v2829 = vpop.xlane.xlu0 %2828
      %v2830 = vsel %vm799, %v2807, 0.0
      %2831 = vadd.xlane.f32.xlu0 %v2830
      %v2832 = vpop.xlane.xlu0 %2831
      %v2833 = vsel %vm799, %v2810, 0.0
      %2834 = vadd.xlane.f32.xlu0 %v2833
      %v2835 = vpop.xlane.xlu0 %2834
      %v2836 = vsel %vm799, %v2813, 0.0
      %2837 = vadd.xlane.f32.xlu0 %v2836
      %v2838 = vpop.xlane.xlu0 %2837
      %v2839 = vsel %vm799, %v2816, 0.0
      %2840 = vadd.xlane.f32.xlu0 %v2839
      %v2841 = vpop.xlane.xlu0 %2840
      %v2842 = vsel %vm799, %v2819, 0.0
      %2843 = vadd.xlane.f32.xlu0 %v2842
      %v2844 = vpop.xlane.xlu0 %2843
      %v2845 = vsel %vm799, %v2822, 0.0
      %2846 = vadd.xlane.f32.xlu0 %v2845
      %v2847 = vpop.xlane.xlu0 %2846
      %v2848 = vmul.f32 %v2826, %v1051
      %v2849 = vmul.f32 %v2829, %v1051
      %v2850 = vmul.f32 %v2832, %v1051
      %v2851 = vmul.f32 %v2835, %v1051
      %v2852 = vmul.f32 %v2838, %v1051
      %v2853 = vmul.f32 %v2841, %v1051
      %v2854 = vmul.f32 %v2844, %v1051
      %v2855 = vmul.f32 %v2847, %v1051
      %v2856 = vsub.f32 %v2801, %v2848
      %v2857 = vsub.f32 %v2804, %v2849
      %v2858 = vsub.f32 %v2807, %v2850
      %v2859 = vsub.f32 %v2810, %v2851
      %v2860 = vsub.f32 %v2813, %v2852
      %v2861 = vsub.f32 %v2816, %v2853
      %v2862 = vsub.f32 %v2819, %v2854
      %v2863 = vsub.f32 %v2822, %v2855
      %v2864 = vmul.f32 %v2856, %v2856
      %v2865 = vmul.f32 %v2857, %v2857
      %v2866 = vmul.f32 %v2858, %v2858
      %v2867 = vmul.f32 %v2859, %v2859
      %v2868 = vmul.f32 %v2860, %v2860
      %v2869 = vmul.f32 %v2861, %v2861
      %v2870 = vmul.f32 %v2862, %v2862
      %v2871 = vmul.f32 %v2863, %v2863
      %v2872 = vsel %vm799, %v2864, 0.0
      %2873 = vadd.xlane.f32.xlu0 %v2872
      %v2874 = vpop.xlane.xlu0 %2873
      %v2875 = vsel %vm799, %v2865, 0.0
      %2876 = vadd.xlane.f32.xlu0 %v2875
      %v2877 = vpop.xlane.xlu0 %2876
      %v2878 = vsel %vm799, %v2866, 0.0
      %2879 = vadd.xlane.f32.xlu0 %v2878
      %v2880 = vpop.xlane.xlu0 %2879
      %v2881 = vsel %vm799, %v2867, 0.0
      %2882 = vadd.xlane.f32.xlu0 %v2881
      %v2883 = vpop.xlane.xlu0 %2882
      %v2884 = vsel %vm799, %v2868, 0.0
      %2885 = vadd.xlane.f32.xlu0 %v2884
      %v2886 = vpop.xlane.xlu0 %2885
      %v2887 = vsel %vm799, %v2869, 0.0
      %2888 = vadd.xlane.f32.xlu0 %v2887
      %v2889 = vpop.xlane.xlu0 %2888
      %v2890 = vsel %vm799, %v2870, 0.0
      %2891 = vadd.xlane.f32.xlu0 %v2890
      %v2892 = vpop.xlane.xlu0 %2891
      %v2893 = vsel %vm799, %v2871, 0.0
      %2894 = vadd.xlane.f32.xlu0 %v2893
      %v2895 = vpop.xlane.xlu0 %2894
      %v2896 = vmul.f32 %v2874, %v1051
      %v2897 = vmul.f32 %v2877, %v1051
      %v2898 = vmul.f32 %v2880, %v1051
      %v2899 = vmul.f32 %v2883, %v1051
      %v2900 = vmul.f32 %v2886, %v1051
      %v2901 = vmul.f32 %v2889, %v1051
      %v2902 = vmul.f32 %v2892, %v1051
      %v2903 = vmul.f32 %v2895, %v1051
      %v2904 = vadd.f32 %v2896, 1e-05
      %v2905 = vadd.f32 %v2897, 1e-05
      %v2906 = vadd.f32 %v2898, 1e-05
      %v2907 = vadd.f32 %v2899, 1e-05
      %v2908 = vadd.f32 %v2900, 1e-05
      %v2909 = vadd.f32 %v2901, 1e-05
      %v2910 = vadd.f32 %v2902, 1e-05
      %v2911 = vadd.f32 %v2903, 1e-05
      %v2912 = vrsqrt.pop %v2904
      %v2913 = vmul.f32 %v2912, %v2904
      %v2914 = vmul.f32 %v2913, %v2912
      %v2915 = vmul.f32 0.5, %v2914
      %v2916 = vsub.f32 1.5, %v2915
      %v2917 = vmul.f32 %v2912, %v2916
      %vm2918 = vweird.f32 %v2904
      %vm2919 = vweird.f32 %v2912
      %vm2920 = vmor %vm2918, %vm2919
      %v2921 = vsel %vm2920, %v2912, %v2917
      %v2922 = vrsqrt.pop %v2905
      %v2923 = vmul.f32 %v2922, %v2905
      %v2924 = vmul.f32 %v2923, %v2922
      %v2925 = vmul.f32 0.5, %v2924
      %v2926 = vsub.f32 1.5, %v2925
      %v2927 = vmul.f32 %v2922, %v2926
      %vm2928 = vweird.f32 %v2905
      %vm2929 = vweird.f32 %v2922
      %vm2930 = vmor %vm2928, %vm2929
      %v2931 = vsel %vm2930, %v2922, %v2927
      %v2932 = vrsqrt.pop %v2906
      %v2933 = vmul.f32 %v2932, %v2906
      %v2934 = vmul.f32 %v2933, %v2932
      %v2935 = vmul.f32 0.5, %v2934
      %v2936 = vsub.f32 1.5, %v2935
      %v2937 = vmul.f32 %v2932, %v2936
      %vm2938 = vweird.f32 %v2906
      %vm2939 = vweird.f32 %v2932
      %vm2940 = vmor %vm2938, %vm2939
      %v2941 = vsel %vm2940, %v2932, %v2937
      %v2942 = vrsqrt.pop %v2907
      %v2943 = vmul.f32 %v2942, %v2907
      %v2944 = vmul.f32 %v2943, %v2942
      %v2945 = vmul.f32 0.5, %v2944
      %v2946 = vsub.f32 1.5, %v2945
      %v2947 = vmul.f32 %v2942, %v2946
      %vm2948 = vweird.f32 %v2907
      %vm2949 = vweird.f32 %v2942
      %vm2950 = vmor %vm2948, %vm2949
      %v2951 = vsel %vm2950, %v2942, %v2947
      %v2952 = vrsqrt.pop %v2908
      %v2953 = vmul.f32 %v2952, %v2908
      %v2954 = vmul.f32 %v2953, %v2952
      %v2955 = vmul.f32 0.5, %v2954
      %v2956 = vsub.f32 1.5, %v2955
      %v2957 = vmul.f32 %v2952, %v2956
      %vm2958 = vweird.f32 %v2908
      %vm2959 = vweird.f32 %v2952
      %vm2960 = vmor %vm2958, %vm2959
      %v2961 = vsel %vm2960, %v2952, %v2957
      %v2962 = vrsqrt.pop %v2909
      %v2963 = vmul.f32 %v2962, %v2909
      %v2964 = vmul.f32 %v2963, %v2962
      %v2965 = vmul.f32 0.5, %v2964
      %v2966 = vsub.f32 1.5, %v2965
      %v2967 = vmul.f32 %v2962, %v2966
      %vm2968 = vweird.f32 %v2909
      %vm2969 = vweird.f32 %v2962
      %vm2970 = vmor %vm2968, %vm2969
      %v2971 = vsel %vm2970, %v2962, %v2967
      %v2972 = vrsqrt.pop %v2910
      %v2973 = vmul.f32 %v2972, %v2910
      %v2974 = vmul.f32 %v2973, %v2972
      %v2975 = vmul.f32 0.5, %v2974
      %v2976 = vsub.f32 1.5, %v2975
      %v2977 = vmul.f32 %v2972, %v2976
      %vm2978 = vweird.f32 %v2910
      %vm2979 = vweird.f32 %v2972
      %vm2980 = vmor %vm2978, %vm2979
      %v2981 = vsel %vm2980, %v2972, %v2977
      %v2982 = vrsqrt.pop %v2911
      %v2983 = vmul.f32 %v2982, %v2911
      %v2984 = vmul.f32 %v2983, %v2982
      %v2985 = vmul.f32 0.5, %v2984
      %v2986 = vsub.f32 1.5, %v2985
      %v2987 = vmul.f32 %v2982, %v2986
      %vm2988 = vweird.f32 %v2911
      %vm2989 = vweird.f32 %v2982
      %vm2990 = vmor %vm2988, %vm2989
      %v2991 = vsel %vm2990, %v2982, %v2987
      %v2992 = vmul.f32 %v2856, %v2921
      %v2993 = vmul.f32 %v2857, %v2931
      %v2994 = vmul.f32 %v2858, %v2941
      %v2995 = vmul.f32 %v2859, %v2951
      %v2996 = vmul.f32 %v2860, %v2961
      %v2997 = vmul.f32 %v2861, %v2971
      %v2998 = vmul.f32 %v2862, %v2981
      %v2999 = vmul.f32 %v2863, %v2991
      %v3000 = vmul.f32 %v2992, %v2664
      %v3001 = vmul.f32 %v2993, %v2664
      %v3002 = vmul.f32 %v2994, %v2664
      %v3003 = vmul.f32 %v2995, %v2664
      %v3004 = vmul.f32 %v2996, %v2664
      %v3005 = vmul.f32 %v2997, %v2664
      %v3006 = vmul.f32 %v2998, %v2664
      %v3007 = vmul.f32 %v2999, %v2664
      %v3008 = vadd.f32 %v3000, %v2675
      %v3009 = vadd.f32 %v3001, %v2675
      %v3010 = vadd.f32 %v3002, %v2675
      %v3011 = vadd.f32 %v3003, %v2675
      %v3012 = vadd.f32 %v3004, %v2675
      %v3013 = vadd.f32 %v3005, %v2675
      %v3014 = vadd.f32 %v3006, %v2675
      %v3015 = vadd.f32 %v3007, %v2675
      %v3017 = vsel %vm799, %v3008, 0
      %v3020 = vsel %vm799, %v3009, 0
      %v3023 = vsel %vm799, %v3010, 0
      %v3026 = vsel %vm799, %v3011, 0
      %v3029 = vsel %vm799, %v3012, 0
      %v3032 = vsel %vm799, %v3013, 0
      %v3035 = vsel %vm799, %v3014, 0
      %v3038 = vsel %vm799, %v3015, 0
      %3040 = vmatpush.msra.mxu0 0.0
      %3041 = vmatpush.msra.mxu0 0.0
      %3042 = vmatpush.msra.mxu0 0.0
      %3043 = vmatpush.msra.mxu0 0.0
      %3044 = vmatpush.msra.mxu0 0.0
      %3045 = vmatpush.msra.mxu0 0.0
      %3046 = vmatpush.msra.mxu0 0.0
      %3047 = vmatpush.msra.mxu0 0.0
      %3048 = vmatpush.msra.mxu0 0.0
      %3049 = vmatpush.msra.mxu0 0.0
      %3050 = vmatpush.msra.mxu0 0.0
      %3051 = vmatpush.msra.mxu0 0.0
      %3052 = vmatpush.msra.mxu0 0.0
      %3053 = vmatpush.msra.mxu0 0.0
      %3054 = vmatpush.msra.mxu0 0.0
      %3055 = vmatpush.msra.mxu0 %v2484
      %3056 = vmatmul.f32.gmra.mxu0 %v3017
      %v3057 = vpop.f32.mrf.mxu0
      %v3058 = vadd.f32 0.0, %v3057
      %3059 = vmatmul.f32.gmra.mxu0 %v3020
      %v3060 = vpop.f32.mrf.mxu0
      %v3061 = vadd.f32 0.0, %v3060
      %3062 = vmatmul.f32.gmra.mxu0 %v3023
      %v3063 = vpop.f32.mrf.mxu0
      %v3064 = vadd.f32 0.0, %v3063
      %3065 = vmatmul.f32.gmra.mxu0 %v3026
      %v3066 = vpop.f32.mrf.mxu0
      %v3067 = vadd.f32 0.0, %v3066
      %3068 = vmatmul.f32.gmra.mxu0 %v3029
      %v3069 = vpop.f32.mrf.mxu0
      %v3070 = vadd.f32 0.0, %v3069
      %3071 = vmatmul.f32.gmra.mxu0 %v3032
      %v3072 = vpop.f32.mrf.mxu0
      %v3073 = vadd.f32 0.0, %v3072
      %3074 = vmatmul.f32.gmra.mxu0 %v3035
      %v3075 = vpop.f32.mrf.mxu0
      %v3076 = vadd.f32 0.0, %v3075
      %3077 = vmatmul.f32.gmra.mxu0 %v3038
      %v3078 = vpop.f32.mrf.mxu0
      %v3079 = vadd.f32 0.0, %v3078
      %3080 = vdwg.mxu0
      %v3081 = vmax.f32 %v3058, 0.0
      %v3082 = vmax.f32 %v3061, 0.0
      %v3083 = vmax.f32 %v3064, 0.0
      %v3084 = vmax.f32 %v3067, 0.0
      %v3085 = vmax.f32 %v3070, 0.0
      %v3086 = vmax.f32 %v3073, 0.0
      %v3087 = vmax.f32 %v3076, 0.0
      %v3088 = vmax.f32 %v3079, 0.0
      %v3090 = vsel %vm2758, %v3081, 0
      %v3093 = vsel %vm2758, %v3082, 0
      %v3096 = vsel %vm2758, %v3083, 0
      %v3099 = vsel %vm2758, %v3084, 0
      %v3102 = vsel %vm2758, %v3085, 0
      %v3105 = vsel %vm2758, %v3086, 0
      %v3108 = vsel %vm2758, %v3087, 0
      %v3111 = vsel %vm2758, %v3088, 0
      %3113 = vmatpush.msra.mxu0 0.0
      %3114 = vmatpush.msra.mxu0 0.0
      %3115 = vmatpush.msra.mxu0 0.0
      %3116 = vmatpush.msra.mxu0 0.0
      %3117 = vmatpush.msra.mxu0 0.0
      %3118 = vmatpush.msra.mxu0 0.0
      %3119 = vmatpush.msra.mxu0 0.0
      %3120 = vmatpush.msra.mxu0 0.0
      %3121 = vmatpush.msra.mxu0 0.0
      %3122 = vmatpush.msra.mxu0 0.0
      %3123 = vmatpush.msra.mxu0 0.0
      %3124 = vmatpush.msra.mxu0 0.0
      %3125 = vmatpush.msra.mxu0 0.0
      %3126 = vmatpush.msra.mxu0 0.0
      %3127 = vmatpush.msra.mxu0 %v2486
      %3128 = vmatpush.msra.mxu0 %v2485
      %3129 = vmatmul.f32.gmra.mxu0 %v3090
      %v3130 = vpop.f32.mrf.mxu0
      %v3131 = vadd.f32 %v2801, %v3130
      %3132 = vmatmul.f32.gmra.mxu0 %v3093
      %v3133 = vpop.f32.mrf.mxu0
      %v3134 = vadd.f32 %v2804, %v3133
      %3135 = vmatmul.f32.gmra.mxu0 %v3096
      %v3136 = vpop.f32.mrf.mxu0
      %v3137 = vadd.f32 %v2807, %v3136
      %3138 = vmatmul.f32.gmra.mxu0 %v3099
      %v3139 = vpop.f32.mrf.mxu0
      %v3140 = vadd.f32 %v2810, %v3139
      %3141 = vmatmul.f32.gmra.mxu0 %v3102
      %v3142 = vpop.f32.mrf.mxu0
      %v3143 = vadd.f32 %v2813, %v3142
      %3144 = vmatmul.f32.gmra.mxu0 %v3105
      %v3145 = vpop.f32.mrf.mxu0
      %v3146 = vadd.f32 %v2816, %v3145
      %3147 = vmatmul.f32.gmra.mxu0 %v3108
      %v3148 = vpop.f32.mrf.mxu0
      %v3149 = vadd.f32 %v2819, %v3148
      %3150 = vmatmul.f32.gmra.mxu0 %v3111
      %v3151 = vpop.f32.mrf.mxu0
      %v3152 = vadd.f32 %v2822, %v3151
      %3153 = vdwg.mxu0
      %v3154 = vld [vmem:[%s18] sm:$0xff]
      %v3156 = vsel %vm799, %v3131, 0
      %v3159 = vsel %vm799, %v3134, 0
      %v3162 = vsel %vm799, %v3137, 0
      %v3165 = vsel %vm799, %v3140, 0
      %v3168 = vsel %vm799, %v3143, 0
      %v3171 = vsel %vm799, %v3146, 0
      %v3174 = vsel %vm799, %v3149, 0
      %v3177 = vsel %vm799, %v3152, 0
      %3179 = vmatpush.msra.mxu0 0.0
      %3180 = vmatpush.msra.mxu0 0.0
      %3181 = vmatpush.msra.mxu0 0.0
      %3182 = vmatpush.msra.mxu0 0.0
      %3183 = vmatpush.msra.mxu0 0.0
      %3184 = vmatpush.msra.mxu0 0.0
      %3185 = vmatpush.msra.mxu0 0.0
      %3186 = vmatpush.msra.mxu0 0.0
      %3187 = vmatpush.msra.mxu0 0.0
      %3188 = vmatpush.msra.mxu0 0.0
      %3189 = vmatpush.msra.mxu0 0.0
      %3190 = vmatpush.msra.mxu0 0.0
      %3191 = vmatpush.msra.mxu0 0.0
      %3192 = vmatpush.msra.mxu0 0.0
      %3193 = vmatpush.msra.mxu0 0.0
      %3194 = vmatpush.msra.mxu0 %v3154
      %3195 = vmatmul.f32.gmra.mxu0 %v3156
      %v3196 = vpop.f32.mrf.mxu0
      %v3197 = vadd.f32 0.0, %v3196
      %3198 = vmatmul.f32.gmra.mxu0 %v3159
      %v3199 = vpop.f32.mrf.mxu0
      %v3200 = vadd.f32 0.0, %v3199
      %3201 = vmatmul.f32.gmra.mxu0 %v3162
      %v3202 = vpop.f32.mrf.mxu0
      %v3203 = vadd.f32 0.0, %v3202
      %3204 = vmatmul.f32.gmra.mxu0 %v3165
      %v3205 = vpop.f32.mrf.mxu0
      %v3206 = vadd.f32 0.0, %v3205
      %3207 = vmatmul.f32.gmra.mxu0 %v3168
      %v3208 = vpop.f32.mrf.mxu0
      %v3209 = vadd.f32 0.0, %v3208
      %3210 = vmatmul.f32.gmra.mxu0 %v3171
      %v3211 = vpop.f32.mrf.mxu0
      %v3212 = vadd.f32 0.0, %v3211
      %3213 = vmatmul.f32.gmra.mxu0 %v3174
      %v3214 = vpop.f32.mrf.mxu0
      %v3215 = vadd.f32 0.0, %v3214
      %3216 = vmatmul.f32.gmra.mxu0 %v3177
      %v3217 = vpop.f32.mrf.mxu0
      %v3218 = vadd.f32 0.0, %v3217
      %3219 = vdwg.mxu0
      %3220 = vst.msk [vmem:[%s706] sm:$0xff] %vm1680, %v3197
      %3221 = vst.msk [vmem:[%s706 + $0x8] sm:$0xff] %vm1680, %v3200
      %3222 = vst.msk [vmem:[%s706 + $0x10] sm:$0xff] %vm1680, %v3203
      %3223 = vst.msk [vmem:[%s706 + $0x18] sm:$0xff] %vm1680, %v3206
      %3224 = vst.msk [vmem:[%s706 + $0x20] sm:$0xff] %vm1680, %v3209
      %3225 = vst.msk [vmem:[%s706 + $0x28] sm:$0xff] %vm1680, %v3212
      %3226 = vst.msk [vmem:[%s706 + $0x30] sm:$0xff] %vm1680, %v3215
      %3227 = vst.msk [vmem:[%s706 + $0x38] sm:$0xff] %vm1680, %v3218
      %p3228 = scmp.lt.s32.totalorder %s30, 3
      %s3229 = scalar_select %p3228, %s30, 3
      %s3230 = smul.addr %s3229, 8
      %s3231 = smul.addr %s3230, 8
      %s3232 = scalar_lea.vmem %s19, %s3231
      // Predicated region
      $region97: #{forward.1} parent=95 // pred_check
        %p3233 = pneg %p481
      $region98: #{forward.1} parent=95 // pred_check_branch
        %3235 = sbr.rel (%p3233) target = $region100
      $region99: #{forward.1} parent=95 // pred_region
        _
      $region100: #{forward.1} parent=95 // pred_fallthru
        _
    $region96: #{forward.1} parent=5 // pred_fallthru
      _
    %p3236 = scmp.le.s32.totalorder 2, %s25
    // Predicated region
    $region101: #{forward.1} parent=5 // pred_check
      %p3237 = pneg %p3236
    $region102: #{forward.1} parent=5 // pred_check_branch
      %3239 = sbr.rel (%p3237) target = $region104
    $region103: #{forward.1} parent=5 // pred_region
      %s3240 = ssub.s32 %s25, 2
      // Predicated region
      $region105: #{forward.1} parent=103 // pred_check
        %p3241 = pneg %p487
      $region106: #{forward.1} parent=103 // pred_check_branch
        %3243 = sbr.rel (%p3241) target = $region108
      $region107: #{forward.1} parent=103 // pred_region
        %p3244 = scmp.lt.s32.totalorder %s31, 3
        %s3245 = scalar_select %p3244, %s31, 3
        %s3246 = smul.addr %s3245, 8
        %s3247 = smul.addr %s3246, 8
        %s3248 = scalar_lea.vmem %s19, %s3247
      $region108: #{forward.1} parent=103 // pred_fallthru
        _
    $region104: #{forward.1} parent=5 // pred_fallthru
      _
  $region6: #{forward.1} parent=0 // loop_footer
    %s29 = sadd.s32 1, %s25
  $region7: #{forward.1} parent=0 // loop_footer_branch
    %24 = sbr.rel target = $region3
  $region8: #{forward.1} parent=0 // loop_exit
    _

</llo_original>
